<compile_context>
chip_gen: v6e
topology: v6e:2x2x1
jax: 0.10.0
libtpu: 0.0.40
codegen_flags: <defaults>
</compile_context>

<pallas_src>
import functools
import math

import jax
import jax.numpy as jnp
from jax.experimental import pallas as pl
from jax.experimental.pallas import tpu as pltpu


def _round_up(x, m):
    return ((x + m - 1) // m) * m


# ---------------------------------------------------------------------------
# Fused multi-layer GRU stack kernel (one pallas_call per stream):
#   per layer: whole-sequence GI = X @ Wih + bih (one batched MXU pass),
#   then the serial recurrence with fused LayerNorm + ReLU (Dropout == id),
#   optionally emitting the raw GRU outputs (pre-LN) and, on the last layer,
#   the mean over the sequence.  Inter-layer activations and GI stay in VMEM.
# ---------------------------------------------------------------------------
def _gru_stack_kernel(*refs, seq_len, batch_p, hidden, n_layers,
                      emit_pre, emit_mean, emit_final):
    S, Bp, H = seq_len, batch_p, hidden

    # ---- unpack refs: inputs..., outputs..., scratch... --------------------
    idx = 0
    x_ref = refs[idx]; idx += 1
    layer_refs = []
    for _ in range(n_layers):
        layer_refs.append(refs[idx:idx + 6]); idx += 6
    pre_refs = []
    if emit_pre:
        pre_refs = list(refs[idx:idx + n_layers]); idx += n_layers
    mean_ref = None
    if emit_mean:
        mean_ref = refs[idx]; idx += 1
    final_ref = None
    if emit_final:
        final_ref = refs[idx]; idx += 1
    gi_ref = refs[idx]; idx += 1                    # (S*Bp, 3H) f32, reused
    act_ref = None
    if n_layers > 1:
        act_ref = refs[idx]; idx += 1               # (S*Bp, H) f32, reused

    for li in range(n_layers):
        wih_ref, bih_ref, whh_ref, bhh_ref, g_ref, b_ref = layer_refs[li]
        is_last = li == n_layers - 1

        # Whole-sequence (non-recurrent) input projection: one batched MXU
        # pass, bf16 operands / f32 accumulation, hoisted off the serial path.
        src = x_ref[...] if li == 0 else act_ref[...]
        gi_ref[...] = (
            jnp.dot(src.astype(jnp.bfloat16), wih_ref[...],
                    preferred_element_type=jnp.float32)
            + bih_ref[...])

        whh = whh_ref[...]              # (H, 3H) bf16, resident across steps
        bhh = bhh_ref[...]
        gamma = g_ref[...]
        beta = b_ref[...]
        pre_out = pre_refs[li] if emit_pre else None

        def step(t, carry, whh=whh, bhh=bhh, gamma=gamma, beta=beta,
                 is_last=is_last, pre_out=pre_out):
            h, acc = carry
            row = pl.multiple_of(t * Bp, Bp)
            gi = gi_ref[pl.ds(row, Bp), :]                          # (Bp, 3H)
            gh = jnp.dot(h.astype(jnp.bfloat16), whh,
                         preferred_element_type=jnp.float32) + bhh
            # PyTorch GRU gate order (r, z, n); n uses r * (Whn h + bhn).
            r = jax.nn.sigmoid(gi[:, 0:H] + gh[:, 0:H])
            z = jax.nn.sigmoid(gi[:, H:2 * H] + gh[:, H:2 * H])
            n = jnp.tanh(gi[:, 2 * H:3 * H] + r * gh[:, 2 * H:3 * H])
            h_new = (1.0 - z) * n + z * h
            if pre_out is not None:                 # raw GRU output (pre-LN)
                pre_out[pl.ds(row, Bp), :] = h_new
            # Fused LayerNorm(eps=1e-5) + ReLU; var = E[h^2] - E[h]^2 keeps
            # the two cross-lane reductions independent (no serial XLU chain).
            mu = jnp.mean(h_new, axis=-1, keepdims=True)
            m2 = jnp.mean(h_new * h_new, axis=-1, keepdims=True)
            var = m2 - mu * mu
            y = (h_new - mu) * jax.lax.rsqrt(var + 1e-5) * gamma + beta
            y = jnp.maximum(y, 0.0)
            if not is_last:
                act_ref[pl.ds(row, Bp), :] = y      # next layer's input (VMEM)
            else:
                if emit_final:
                    final_ref[pl.ds(row, Bp), :] = y
                if emit_mean:
                    acc = acc + y
            return h_new, acc

        h0 = jnp.zeros((Bp, H), jnp.float32)
        acc0 = jnp.zeros((Bp, H), jnp.float32)
        unroll = S if S <= 8 else 4                 # fixed unroll factor
        _, acc = jax.lax.fori_loop(0, S, step, (h0, acc0), unroll=unroll)

        if is_last and emit_mean:
            mean_ref[...] = acc * (1.0 / S)


def gru_ln_stack(x_tm, layer_weights, *, seq_len, batch_p,
                 emit_pre=False, emit_mean=False, emit_final=False):
    """Single-kernel fused GRU+LN+ReLU stack; time-major padded input."""
    rows = x_tm.shape[0]
    assert rows == seq_len * batch_p
    hidden = layer_weights[0]["whh"].shape[0]
    n_layers = len(layer_weights)

    operands = [x_tm]
    for blk in layer_weights:
        operands += [blk["wih"], blk["bih"], blk["whh"], blk["bhh"],
                     blk["ln_g"], blk["ln_b"]]

    out_shapes = []
    if emit_pre:
        out_shapes += [jax.ShapeDtypeStruct((rows, hidden), jnp.float32)
                       for _ in range(n_layers)]
    if emit_mean:
        out_shapes.append(jax.ShapeDtypeStruct((batch_p, hidden), jnp.float32))
    if emit_final:
        out_shapes.append(jax.ShapeDtypeStruct((rows, hidden), jnp.float32))
    assert out_shapes, "kernel needs at least one output"

    scratch_shapes = [pltpu.VMEM((rows, 3 * hidden), jnp.float32)]
    if n_layers > 1:
        scratch_shapes.append(pltpu.VMEM((rows, hidden), jnp.float32))

    # Explicit scoped-VMEM budget (v5e default is only 16 MiB).
    in_bytes = sum(int(a.size) * a.dtype.itemsize for a in operands)
    out_bytes = sum(math.prod(s.shape) * 4 for s in out_shapes)
    scr_bytes = rows * 3 * hidden * 4 + (rows * hidden * 4 if n_layers > 1 else 0)
    total = in_bytes + out_bytes + scr_bytes
    vmem_limit = int(min(64 * 1024 * 1024, max(16 * 1024 * 1024, 2 * total)))

    kernel = functools.partial(
        _gru_stack_kernel, seq_len=seq_len, batch_p=batch_p, hidden=hidden,
        n_layers=n_layers, emit_pre=emit_pre, emit_mean=emit_mean,
        emit_final=emit_final)

    outs = pl.pallas_call(
        kernel,
        out_shape=tuple(out_shapes),
        scratch_shapes=scratch_shapes,
        compiler_params=pltpu.CompilerParams(vmem_limit_bytes=vmem_limit),
    )(*operands)

    if not isinstance(outs, (tuple, list)):
        outs = (outs,)
    idx = 0
    pre_list = []
    if emit_pre:
        pre_list = list(outs[idx:idx + n_layers]); idx += n_layers
    mean = None
    if emit_mean:
        mean = outs[idx]; idx += 1
    final = None
    if emit_final:
        final = outs[idx]; idx += 1
    return pre_list, mean, final


# ---------------------------------------------------------------------------
# Host-side glue (tiny, folded into the jit)
# ---------------------------------------------------------------------------
def _fold_layer0_weights(wp, bp, wts, bts, wl, bl, wih0, bih0, f_pad):
    """Fold p/ts embeddings + shared Linear + layer-0 input proj into one W,b.

    ((p@Wp+bp)+(ts@Wts+bts)) @ Wl + bl) @ Wih0 + bih0
      == concat(p,ts) @ ((concat(Wp;Wts)@Wl)@Wih0) + (((bp+bts)@Wl+bl)@Wih0+bih0)
    (exact: no nonlinearity between those Linears in the reference forward).
    """
    w_comb = jnp.concatenate([wp, wts], axis=0) @ wl          # (F, H)
    b_comb = (bp + bts) @ wl + bl                             # (1, H)
    wih_eff = w_comb @ wih0                                   # (F, 3H)
    bih_eff = b_comb @ wih0 + bih0                            # (1, 3H)
    f = wih_eff.shape[0]
    if f_pad > f:                                             # lane-align K
        wih_eff = jnp.pad(wih_eff, ((0, f_pad - f), (0, 0)))
    return wih_eff, bih_eff


def _to_time_major_padded(p, ts, batch_p, f_pad):
    """(B,S,F0),(B,S,F1) -> (S*Bp, Fpad) bf16 time-major, batch/feature padded."""
    B, S = p.shape[0], p.shape[1]
    x = jnp.concatenate([p, ts], axis=-1).astype(jnp.float32)  # (B, S, F)
    F = x.shape[-1]
    if batch_p > B or f_pad > F:
        x = jnp.pad(x, ((0, batch_p - B), (0, 0), (0, f_pad - F)))
    x = jnp.transpose(x, (1, 0, 2)).reshape(S * batch_p, f_pad)
    return x.astype(jnp.bfloat16)


def _prep_stack_weights(blocks, wih0_eff, bih0_eff):
    """Per-layer weights: bf16 MXU matrices, f32 biases / LayerNorm params."""
    prepped = []
    for li, blk in enumerate(blocks):
        wih = wih0_eff if li == 0 else blk["wih"]
        bih = bih0_eff if li == 0 else blk["bih"]
        prepped.append(dict(
            wih=wih.astype(jnp.bfloat16),
            bih=bih.astype(jnp.float32),
            whh=blk["whh"].astype(jnp.bfloat16),
            bhh=blk["bhh"].astype(jnp.float32),
            ln_g=blk["ln_g"].astype(jnp.float32),
            ln_b=blk["ln_b"].astype(jnp.float32)))
    return prepped


# ---------------------------------------------------------------------------
# Parameter init (deterministic, PyTorch-like uniform fan-in init)
# ---------------------------------------------------------------------------
def _linear_params(key, fan_in, fan_out):
    kw, kb = jax.random.split(key)
    bound = 1.0 / jnp.sqrt(float(fan_in))
    w = jax.random.uniform(kw, (fan_in, fan_out), jnp.float32, -bound, bound)
    b = jax.random.uniform(kb, (1, fan_out), jnp.float32, -bound, bound)
    return w, b


def _gru_params(key, in_dim, hidden):
    k1, k2, k3, k4 = jax.random.split(key, 4)
    bound = 1.0 / jnp.sqrt(float(hidden))
    wih = jax.random.uniform(k1, (in_dim, 3 * hidden), jnp.float32, -bound, bound)
    whh = jax.random.uniform(k2, (hidden, 3 * hidden), jnp.float32, -bound, bound)
    bih = jax.random.uniform(k3, (1, 3 * hidden), jnp.float32, -bound, bound)
    bhh = jax.random.uniform(k4, (1, 3 * hidden), jnp.float32, -bound, bound)
    return dict(wih=wih, whh=whh, bih=bih, bhh=bhh)


def init_params(key, n_input, n_embedding, n_hidden, layers):
    keys = jax.random.split(key, 8 + layers[0] + layers[1])
    ki = iter(keys)
    p = {}
    p["en_p_w"], p["en_p_b"] = _linear_params(next(ki), n_input[0], n_embedding)
    p["en_ts_w"], p["en_ts_b"] = _linear_params(next(ki), n_input[1], n_embedding)
    p["en_lin_w"], p["en_lin_b"] = _linear_params(next(ki), n_embedding, n_hidden)
    p["de_p_w"], p["de_p_b"] = _linear_params(next(ki), n_input[0], n_embedding)
    p["de_ts_w"], p["de_ts_b"] = _linear_params(next(ki), n_input[1], n_embedding)
    p["de_lin_w"], p["de_lin_b"] = _linear_params(next(ki), n_embedding, n_hidden)
    p["encoder"] = []
    for _ in range(layers[0]):
        blk = _gru_params(next(ki), n_hidden, n_hidden)
        blk["ln_g"] = jnp.ones((1, n_hidden), jnp.float32)
        blk["ln_b"] = jnp.zeros((1, n_hidden), jnp.float32)
        p["encoder"].append(blk)
    p["decoder"] = []
    for _ in range(layers[1]):
        blk = _gru_params(next(ki), n_hidden, n_hidden)
        blk["ln_g"] = jnp.ones((1, n_hidden), jnp.float32)
        blk["ln_b"] = jnp.zeros((1, n_hidden), jnp.float32)
        p["decoder"].append(blk)
    return p


# ---------------------------------------------------------------------------
# Full forward pass (mirrors En_DeModel_3.forward)
# ---------------------------------------------------------------------------
def en_de_model_3_forward(params, en_p, en_ts, de_p, de_ts, mask, *,
                          n_input, len_seq, n_hidden, compute_encoder=False):
    del mask  # mask is unused by the reference forward
    S = len_seq
    f_pad = _round_up(n_input[0] + n_input[1], 128)

    # ---------------- encoder stream: dead compute in the reference --------
    # (en_x is never consumed); skipped by default per perf review.
    if compute_encoder and params["encoder"]:
        B_en = en_p.shape[0]
        Bp_en = max(8, _round_up(B_en, 8))
        x_en = _to_time_major_padded(en_p, en_ts, Bp_en, f_pad)
        wih_eff, bih_eff = _fold_layer0_weights(
            params["en_p_w"], params["en_p_b"], params["en_ts_w"],
            params["en_ts_b"], params["en_lin_w"], params["en_lin_b"],
            params["encoder"][0]["wih"], params["encoder"][0]["bih"], f_pad)
        en_weights = _prep_stack_weights(params["encoder"], wih_eff, bih_eff)
        gru_ln_stack(x_en, en_weights, seq_len=S, batch_p=Bp_en,
                     emit_final=True)
        # TODO(synk): on v7x this dead stream could instead run concurrently
        # on the second TensorCore (pl.core_map); skipping it is strictly
        # faster and output-identical.

    # ---------------- decoder stream ----------------------------------------
    B = de_p.shape[0]
    Bp = max(8, _round_up(B, 8))
    x = _to_time_major_padded(de_p, de_ts, Bp, f_pad)
    wih_eff, bih_eff = _fold_layer0_weights(
        params["de_p_w"], params["de_p_b"], params["de_ts_w"],
        params["de_ts_b"], params["de_lin_w"], params["de_lin_b"],
        params["decoder"][0]["wih"], params["decoder"][0]["bih"], f_pad)
    de_weights = _prep_stack_weights(params["decoder"], wih_eff, bih_eff)

    pre_list, mean, _ = gru_ln_stack(
        x, de_weights, seq_len=S, batch_p=Bp, emit_pre=True, emit_mean=True)

    # hidden_list entries are the raw GRU outputs (pre-LN), batch-first.
    # TODO(synk): could be emitted batch-major directly from the kernel to
    # drop this tiny per-layer transpose; kept host-side for lowering safety.
    hidden_list = [
        jnp.transpose(y.reshape(S, Bp, n_hidden), (1, 0, 2))[:B]
        for y in pre_list]
    out_put = mean[:B]
    return out_put, hidden_list


# ---------------------------------------------------------------------------
# Demo
# ---------------------------------------------------------------------------
if __name__ == "__main__":
    # Small-but-consistent config (module defaults scaled down: n_hidden=128).
    n_input = [77, 4]
    layer = [3, 2]
    n_embedding = 128
    n_hidden = 128
    len_seq = 5
    batch = 2

    key = jax.random.PRNGKey(0)
    k_param, k_en_p, k_en_ts, k_de_p, k_de_ts = jax.random.split(key, 5)

    params = init_params(k_param, n_input, n_embedding, n_hidden, layer)

    en_p = jax.random.normal(k_en_p, (batch, len_seq, n_input[0]), jnp.float32)
    en_ts = jax.random.normal(k_en_ts, (batch, len_seq, n_input[1]), jnp.float32)
    de_p = jax.random.normal(k_de_p, (batch, len_seq, n_input[0]), jnp.float32)
    de_ts = jax.random.normal(k_de_ts, (batch, len_seq, n_input[1]), jnp.float32)
    mask = jnp.ones((batch, len_seq), jnp.float32)  # unused by forward

    fwd = jax.jit(functools.partial(
        en_de_model_3_forward,
        n_input=n_input, len_seq=len_seq, n_hidden=n_hidden,
        compute_encoder=False))

    out_put, hidden_list = fwd(params, en_p, en_ts, de_p, de_ts, mask)

    jax.block_until_ready(out_put)
    for h in hidden_list:
        jax.block_until_ready(h)

    assert out_put.shape == (batch, n_hidden)
    assert len(hidden_list) == layer[1]
    assert all(h.shape == (batch, len_seq, n_hidden) for h in hidden_list)
    assert bool(jnp.all(jnp.isfinite(out_put)))
    assert all(bool(jnp.all(jnp.isfinite(h))) for h in hidden_list)
    print("KERNEL_OK")
</pallas_src>

<mosaic_0001>
module attributes {stable_mosaic.version = 11 : i64} {
  func.func @_gru_stack_kernel(%arg0: memref<40x128xbf16, #tpu.memory_space<vmem>>, %arg1: memref<128x384xbf16, #tpu.memory_space<vmem>>, %arg2: memref<1x384xf32, #tpu.memory_space<vmem>>, %arg3: memref<128x384xbf16, #tpu.memory_space<vmem>>, %arg4: memref<1x384xf32, #tpu.memory_space<vmem>>, %arg5: memref<1x128xf32, #tpu.memory_space<vmem>>, %arg6: memref<1x128xf32, #tpu.memory_space<vmem>>, %arg7: memref<128x384xbf16, #tpu.memory_space<vmem>>, %arg8: memref<1x384xf32, #tpu.memory_space<vmem>>, %arg9: memref<128x384xbf16, #tpu.memory_space<vmem>>, %arg10: memref<1x384xf32, #tpu.memory_space<vmem>>, %arg11: memref<1x128xf32, #tpu.memory_space<vmem>>, %arg12: memref<1x128xf32, #tpu.memory_space<vmem>>, %arg13: memref<40x128xf32, #tpu.memory_space<vmem>>, %arg14: memref<40x128xf32, #tpu.memory_space<vmem>>, %arg15: memref<8x128xf32, #tpu.memory_space<vmem>>, %arg16: memref<40x384xf32, #tpu.memory_space<vmem>>, %arg17: memref<40x128xf32, #tpu.memory_space<vmem>>) attributes {dimension_semantics = [], scalar_prefetch = 0 : i64, scratch_operands = 2 : i64, tpu.core_type = #tpu.core_type<tc>} {
    %c0 = arith.constant 0 : index
    %c0_0 = arith.constant 0 : index
    %0 = vector.load %arg0[%c0, %c0_0] : memref<40x128xbf16, #tpu.memory_space<vmem>>, vector<40x128xbf16>
    %c0_1 = arith.constant 0 : index
    %c0_2 = arith.constant 0 : index
    %1 = vector.load %arg1[%c0_1, %c0_2] : memref<128x384xbf16, #tpu.memory_space<vmem>>, vector<128x384xbf16>
    %cst = arith.constant dense<0.000000e+00> : vector<40x384xf32>
    %2 = tpu.matmul %0, %1, %cst {dimension_numbers = #tpu.dot_dimension_numbers<[1], [0], [0], [1], [0, 0, 1, 1], [], []>} : vector<40x128xbf16>, vector<128x384xbf16>, vector<40x384xf32> -> vector<40x384xf32>
    %c0_3 = arith.constant 0 : index
    %c0_4 = arith.constant 0 : index
    %3 = vector.load %arg2[%c0_3, %c0_4] : memref<1x384xf32, #tpu.memory_space<vmem>>, vector<1x384xf32>
    %4 = vector.broadcast %3 : vector<1x384xf32> to vector<40x384xf32>
    %5 = arith.addf %2, %4 : vector<40x384xf32>
    %c0_5 = arith.constant 0 : index
    %c0_6 = arith.constant 0 : index
    %6 = vector.load %arg16[%c0_5, %c0_6] : memref<40x384xf32, #tpu.memory_space<vmem>>, vector<40x384xf32>
    tpu.vector_store %arg16[%c0_5, %c0_6], %5 {strides = array<i32>} : memref<40x384xf32, #tpu.memory_space<vmem>>, vector<40x384xf32>,
    %c0_7 = arith.constant 0 : index
    %c0_8 = arith.constant 0 : index
    %7 = vector.load %arg3[%c0_7, %c0_8] : memref<128x384xbf16, #tpu.memory_space<vmem>>, vector<128x384xbf16>
    %c0_9 = arith.constant 0 : index
    %c0_10 = arith.constant 0 : index
    %8 = vector.load %arg4[%c0_9, %c0_10] : memref<1x384xf32, #tpu.memory_space<vmem>>, vector<1x384xf32>
    %c0_11 = arith.constant 0 : index
    %c0_12 = arith.constant 0 : index
    %9 = vector.load %arg5[%c0_11, %c0_12] : memref<1x128xf32, #tpu.memory_space<vmem>>, vector<1x128xf32>
    %c0_13 = arith.constant 0 : index
    %c0_14 = arith.constant 0 : index
    %10 = vector.load %arg6[%c0_13, %c0_14] : memref<1x128xf32, #tpu.memory_space<vmem>>, vector<1x128xf32>
    %cst_15 = arith.constant 0.000000e+00 : f32
    %11 = vector.broadcast %cst_15 : f32 to vector<8x128xf32>
    %c0_i32 = arith.constant 0 : i32
    %c8_i32 = arith.constant 8 : i32
    %12 = arith.muli %c0_i32, %c8_i32 : i32
    %13 = tpu.assume_multiple %12, 8 : i32
    %14 = arith.index_cast %13 : i32 to index
    %c0_16 = arith.constant 0 : index
    %15 = vector.load %arg16[%14, %c0_16] : memref<40x384xf32, #tpu.memory_space<vmem>>, vector<8x384xf32>
    %16 = arith.truncf %11 : vector<8x128xf32> to vector<8x128xbf16>
    %cst_17 = arith.constant dense<0.000000e+00> : vector<8x384xf32>
    %17 = tpu.matmul %16, %7, %cst_17 {dimension_numbers = #tpu.dot_dimension_numbers<[1], [0], [0], [1], [0, 0, 1, 1], [], []>} : vector<8x128xbf16>, vector<128x384xbf16>, vector<8x384xf32> -> vector<8x384xf32>
    %18 = vector.broadcast %8 : vector<1x384xf32> to vector<8x384xf32>
    %19 = arith.addf %17, %18 : vector<8x384xf32>
    %20 = vector.extract_strided_slice %15 {offsets = [0, 0], sizes = [8, 128], strides = [1, 1]} : vector<8x384xf32> to vector<8x128xf32>
    %21 = vector.extract_strided_slice %19 {offsets = [0, 0], sizes = [8, 128], strides = [1, 1]} : vector<8x384xf32> to vector<8x128xf32>
    %22 = arith.addf %20, %21 : vector<8x128xf32>
    %23 = arith.negf %22 : vector<8x128xf32>
    %24 = math.exp %23 : vector<8x128xf32>
    %cst_18 = arith.constant 1.000000e+00 : f32
    %25 = vector.broadcast %cst_18 : f32 to vector<8x128xf32>
    %26 = arith.addf %25, %24 : vector<8x128xf32>
    %27 = arith.divf %25, %26 : vector<8x128xf32>
    %28 = vector.extract_strided_slice %15 {offsets = [0, 128], sizes = [8, 128], strides = [1, 1]} : vector<8x384xf32> to vector<8x128xf32>
    %29 = vector.extract_strided_slice %19 {offsets = [0, 128], sizes = [8, 128], strides = [1, 1]} : vector<8x384xf32> to vector<8x128xf32>
    %30 = arith.addf %28, %29 : vector<8x128xf32>
    %31 = arith.negf %30 : vector<8x128xf32>
    %32 = math.exp %31 : vector<8x128xf32>
    %cst_19 = arith.constant 1.000000e+00 : f32
    %33 = vector.broadcast %cst_19 : f32 to vector<8x128xf32>
    %34 = arith.addf %33, %32 : vector<8x128xf32>
    %35 = arith.divf %33, %34 : vector<8x128xf32>
    %36 = vector.extract_strided_slice %15 {offsets = [0, 256], sizes = [8, 128], strides = [1, 1]} : vector<8x384xf32> to vector<8x128xf32>
    %37 = vector.extract_strided_slice %19 {offsets = [0, 256], sizes = [8, 128], strides = [1, 1]} : vector<8x384xf32> to vector<8x128xf32>
    %38 = arith.mulf %27, %37 : vector<8x128xf32>
    %39 = arith.addf %36, %38 : vector<8x128xf32>
    %40 = math.tanh %39 : vector<8x128xf32>
    %cst_20 = arith.constant 1.000000e+00 : f32
    %41 = vector.broadcast %cst_20 : f32 to vector<8x128xf32>
    %42 = arith.subf %41, %35 : vector<8x128xf32>
    %43 = arith.mulf %42, %40 : vector<8x128xf32>
    %44 = arith.mulf %35, %11 : vector<8x128xf32>
    %45 = arith.addf %43, %44 : vector<8x128xf32>
    %46 = arith.index_cast %13 : i32 to index
    %c0_21 = arith.constant 0 : index
    %47 = vector.load %arg13[%46, %c0_21] : memref<40x128xf32, #tpu.memory_space<vmem>>, vector<8x128xf32>
    tpu.vector_store %arg13[%46, %c0_21], %45 {strides = array<i32>} : memref<40x128xf32, #tpu.memory_space<vmem>>, vector<8x128xf32>,
    %cst_22 = arith.constant dense<0.000000e+00> : vector<8xf32>
    %48 = vector.multi_reduction <add>, %45, %cst_22 [1] : vector<8x128xf32> to vector<8xf32>
    %49 = vector.shape_cast %48 : vector<8xf32> to vector<8x1xf32>
    %cst_23 = arith.constant 1.280000e+02 : f32
    %50 = vector.broadcast %cst_23 : f32 to vector<8x1xf32>
    %51 = arith.divf %49, %50 : vector<8x1xf32>
    %52 = arith.mulf %45, %45 : vector<8x128xf32>
    %cst_24 = arith.constant dense<0.000000e+00> : vector<8xf32>
    %53 = vector.multi_reduction <add>, %52, %cst_24 [1] : vector<8x128xf32> to vector<8xf32>
    %54 = vector.shape_cast %53 : vector<8xf32> to vector<8x1xf32>
    %cst_25 = arith.constant 1.280000e+02 : f32
    %55 = vector.broadcast %cst_25 : f32 to vector<8x1xf32>
    %56 = arith.divf %54, %55 : vector<8x1xf32>
    %57 = arith.mulf %51, %51 : vector<8x1xf32>
    %58 = arith.subf %56, %57 : vector<8x1xf32>
    %59 = vector.broadcast %51 : vector<8x1xf32> to vector<8x128xf32>
    %60 = arith.subf %45, %59 : vector<8x128xf32>
    %cst_26 = arith.constant 9.99999974E-6 : f32
    %61 = vector.broadcast %cst_26 : f32 to vector<8x1xf32>
    %62 = arith.addf %58, %61 : vector<8x1xf32>
    %63 = math.rsqrt %62 : vector<8x1xf32>
    %64 = vector.broadcast %63 : vector<8x1xf32> to vector<8x128xf32>
    %65 = arith.mulf %60, %64 : vector<8x128xf32>
    %66 = vector.broadcast %9 : vector<1x128xf32> to vector<8x128xf32>
    %67 = arith.mulf %65, %66 : vector<8x128xf32>
    %68 = vector.broadcast %10 : vector<1x128xf32> to vector<8x128xf32>
    %69 = arith.addf %67, %68 : vector<8x128xf32>
    %cst_27 = arith.constant 0.000000e+00 : f32
    %70 = vector.broadcast %cst_27 : f32 to vector<8x128xf32>
    %71 = arith.maximumf %69, %70 : vector<8x128xf32>
    %72 = arith.index_cast %13 : i32 to index
    %c0_28 = arith.constant 0 : index
    %73 = vector.load %arg17[%72, %c0_28] : memref<40x128xf32, #tpu.memory_space<vmem>>, vector<8x128xf32>
    tpu.vector_store %arg17[%72, %c0_28], %71 {strides = array<i32>} : memref<40x128xf32, #tpu.memory_space<vmem>>, vector<8x128xf32>,
    %c1_i32 = arith.constant 1 : i32
    %c8_i32_29 = arith.constant 8 : i32
    %74 = arith.muli %c1_i32, %c8_i32_29 : i32
    %75 = tpu.assume_multiple %74, 8 : i32
    %76 = arith.index_cast %75 : i32 to index
    %c0_30 = arith.constant 0 : index
    %77 = vector.load %arg16[%76, %c0_30] : memref<40x384xf32, #tpu.memory_space<vmem>>, vector<8x384xf32>
    %78 = arith.truncf %45 : vector<8x128xf32> to vector<8x128xbf16>
    %cst_31 = arith.constant dense<0.000000e+00> : vector<8x384xf32>
    %79 = tpu.matmul %78, %7, %cst_31 {dimension_numbers = #tpu.dot_dimension_numbers<[1], [0], [0], [1], [0, 0, 1, 1], [], []>} : vector<8x128xbf16>, vector<128x384xbf16>, vector<8x384xf32> -> vector<8x384xf32>
    %80 = vector.broadcast %8 : vector<1x384xf32> to vector<8x384xf32>
    %81 = arith.addf %79, %80 : vector<8x384xf32>
    %82 = vector.extract_strided_slice %77 {offsets = [0, 0], sizes = [8, 128], strides = [1, 1]} : vector<8x384xf32> to vector<8x128xf32>
    %83 = vector.extract_strided_slice %81 {offsets = [0, 0], sizes = [8, 128], strides = [1, 1]} : vector<8x384xf32> to vector<8x128xf32>
    %84 = arith.addf %82, %83 : vector<8x128xf32>
    %85 = arith.negf %84 : vector<8x128xf32>
    %86 = math.exp %85 : vector<8x128xf32>
    %cst_32 = arith.constant 1.000000e+00 : f32
    %87 = vector.broadcast %cst_32 : f32 to vector<8x128xf32>
    %88 = arith.addf %87, %86 : vector<8x128xf32>
    %89 = arith.divf %87, %88 : vector<8x128xf32>
    %90 = vector.extract_strided_slice %77 {offsets = [0, 128], sizes = [8, 128], strides = [1, 1]} : vector<8x384xf32> to vector<8x128xf32>
    %91 = vector.extract_strided_slice %81 {offsets = [0, 128], sizes = [8, 128], strides = [1, 1]} : vector<8x384xf32> to vector<8x128xf32>
    %92 = arith.addf %90, %91 : vector<8x128xf32>
    %93 = arith.negf %92 : vector<8x128xf32>
    %94 = math.exp %93 : vector<8x128xf32>
    %cst_33 = arith.constant 1.000000e+00 : f32
    %95 = vector.broadcast %cst_33 : f32 to vector<8x128xf32>
    %96 = arith.addf %95, %94 : vector<8x128xf32>
    %97 = arith.divf %95, %96 : vector<8x128xf32>
    %98 = vector.extract_strided_slice %77 {offsets = [0, 256], sizes = [8, 128], strides = [1, 1]} : vector<8x384xf32> to vector<8x128xf32>
    %99 = vector.extract_strided_slice %81 {offsets = [0, 256], sizes = [8, 128], strides = [1, 1]} : vector<8x384xf32> to vector<8x128xf32>
    %100 = arith.mulf %89, %99 : vector<8x128xf32>
    %101 = arith.addf %98, %100 : vector<8x128xf32>
    %102 = math.tanh %101 : vector<8x128xf32>
    %cst_34 = arith.constant 1.000000e+00 : f32
    %103 = vector.broadcast %cst_34 : f32 to vector<8x128xf32>
    %104 = arith.subf %103, %97 : vector<8x128xf32>
    %105 = arith.mulf %104, %102 : vector<8x128xf32>
    %106 = arith.mulf %97, %45 : vector<8x128xf32>
    %107 = arith.addf %105, %106 : vector<8x128xf32>
    %108 = arith.index_cast %75 : i32 to index
    %c0_35 = arith.constant 0 : index
    %109 = vector.load %arg13[%108, %c0_35] : memref<40x128xf32, #tpu.memory_space<vmem>>, vector<8x128xf32>
    tpu.vector_store %arg13[%108, %c0_35], %107 {strides = array<i32>} : memref<40x128xf32, #tpu.memory_space<vmem>>, vector<8x128xf32>,
    %cst_36 = arith.constant dense<0.000000e+00> : vector<8xf32>
    %110 = vector.multi_reduction <add>, %107, %cst_36 [1] : vector<8x128xf32> to vector<8xf32>
    %111 = vector.shape_cast %110 : vector<8xf32> to vector<8x1xf32>
    %cst_37 = arith.constant 1.280000e+02 : f32
    %112 = vector.broadcast %cst_37 : f32 to vector<8x1xf32>
    %113 = arith.divf %111, %112 : vector<8x1xf32>
    %114 = arith.mulf %107, %107 : vector<8x128xf32>
    %cst_38 = arith.constant dense<0.000000e+00> : vector<8xf32>
    %115 = vector.multi_reduction <add>, %114, %cst_38 [1] : vector<8x128xf32> to vector<8xf32>
    %116 = vector.shape_cast %115 : vector<8xf32> to vector<8x1xf32>
    %cst_39 = arith.constant 1.280000e+02 : f32
    %117 = vector.broadcast %cst_39 : f32 to vector<8x1xf32>
    %118 = arith.divf %116, %117 : vector<8x1xf32>
    %119 = arith.mulf %113, %113 : vector<8x1xf32>
    %120 = arith.subf %118, %119 : vector<8x1xf32>
    %121 = vector.broadcast %113 : vector<8x1xf32> to vector<8x128xf32>
    %122 = arith.subf %107, %121 : vector<8x128xf32>
    %cst_40 = arith.constant 9.99999974E-6 : f32
    %123 = vector.broadcast %cst_40 : f32 to vector<8x1xf32>
    %124 = arith.addf %120, %123 : vector<8x1xf32>
    %125 = math.rsqrt %124 : vector<8x1xf32>
    %126 = vector.broadcast %125 : vector<8x1xf32> to vector<8x128xf32>
    %127 = arith.mulf %122, %126 : vector<8x128xf32>
    %128 = vector.broadcast %9 : vector<1x128xf32> to vector<8x128xf32>
    %129 = arith.mulf %127, %128 : vector<8x128xf32>
    %130 = vector.broadcast %10 : vector<1x128xf32> to vector<8x128xf32>
    %131 = arith.addf %129, %130 : vector<8x128xf32>
    %cst_41 = arith.constant 0.000000e+00 : f32
    %132 = vector.broadcast %cst_41 : f32 to vector<8x128xf32>
    %133 = arith.maximumf %131, %132 : vector<8x128xf32>
    %134 = arith.index_cast %75 : i32 to index
    %c0_42 = arith.constant 0 : index
    %135 = vector.load %arg17[%134, %c0_42] : memref<40x128xf32, #tpu.memory_space<vmem>>, vector<8x128xf32>
    tpu.vector_store %arg17[%134, %c0_42], %133 {strides = array<i32>} : memref<40x128xf32, #tpu.memory_space<vmem>>, vector<8x128xf32>,
    %c2_i32 = arith.constant 2 : i32
    %c8_i32_43 = arith.constant 8 : i32
    %136 = arith.muli %c2_i32, %c8_i32_43 : i32
    %137 = tpu.assume_multiple %136, 8 : i32
    %138 = arith.index_cast %137 : i32 to index
    %c0_44 = arith.constant 0 : index
    %139 = vector.load %arg16[%138, %c0_44] : memref<40x384xf32, #tpu.memory_space<vmem>>, vector<8x384xf32>
    %140 = arith.truncf %107 : vector<8x128xf32> to vector<8x128xbf16>
    %cst_45 = arith.constant dense<0.000000e+00> : vector<8x384xf32>
    %141 = tpu.matmul %140, %7, %cst_45 {dimension_numbers = #tpu.dot_dimension_numbers<[1], [0], [0], [1], [0, 0, 1, 1], [], []>} : vector<8x128xbf16>, vector<128x384xbf16>, vector<8x384xf32> -> vector<8x384xf32>
    %142 = vector.broadcast %8 : vector<1x384xf32> to vector<8x384xf32>
    %143 = arith.addf %141, %142 : vector<8x384xf32>
    %144 = vector.extract_strided_slice %139 {offsets = [0, 0], sizes = [8, 128], strides = [1, 1]} : vector<8x384xf32> to vector<8x128xf32>
    %145 = vector.extract_strided_slice %143 {offsets = [0, 0], sizes = [8, 128], strides = [1, 1]} : vector<8x384xf32> to vector<8x128xf32>
    %146 = arith.addf %144, %145 : vector<8x128xf32>
    %147 = arith.negf %146 : vector<8x128xf32>
    %148 = math.exp %147 : vector<8x128xf32>
    %cst_46 = arith.constant 1.000000e+00 : f32
    %149 = vector.broadcast %cst_46 : f32 to vector<8x128xf32>
    %150 = arith.addf %149, %148 : vector<8x128xf32>
    %151 = arith.divf %149, %150 : vector<8x128xf32>
    %152 = vector.extract_strided_slice %139 {offsets = [0, 128], sizes = [8, 128], strides = [1, 1]} : vector<8x384xf32> to vector<8x128xf32>
    %153 = vector.extract_strided_slice %143 {offsets = [0, 128], sizes = [8, 128], strides = [1, 1]} : vector<8x384xf32> to vector<8x128xf32>
    %154 = arith.addf %152, %153 : vector<8x128xf32>
    %155 = arith.negf %154 : vector<8x128xf32>
    %156 = math.exp %155 : vector<8x128xf32>
    %cst_47 = arith.constant 1.000000e+00 : f32
    %157 = vector.broadcast %cst_47 : f32 to vector<8x128xf32>
    %158 = arith.addf %157, %156 : vector<8x128xf32>
    %159 = arith.divf %157, %158 : vector<8x128xf32>
    %160 = vector.extract_strided_slice %139 {offsets = [0, 256], sizes = [8, 128], strides = [1, 1]} : vector<8x384xf32> to vector<8x128xf32>
    %161 = vector.extract_strided_slice %143 {offsets = [0, 256], sizes = [8, 128], strides = [1, 1]} : vector<8x384xf32> to vector<8x128xf32>
    %162 = arith.mulf %151, %161 : vector<8x128xf32>
    %163 = arith.addf %160, %162 : vector<8x128xf32>
    %164 = math.tanh %163 : vector<8x128xf32>
    %cst_48 = arith.constant 1.000000e+00 : f32
    %165 = vector.broadcast %cst_48 : f32 to vector<8x128xf32>
    %166 = arith.subf %165, %159 : vector<8x128xf32>
    %167 = arith.mulf %166, %164 : vector<8x128xf32>
    %168 = arith.mulf %159, %107 : vector<8x128xf32>
    %169 = arith.addf %167, %168 : vector<8x128xf32>
    %170 = arith.index_cast %137 : i32 to index
    %c0_49 = arith.constant 0 : index
    %171 = vector.load %arg13[%170, %c0_49] : memref<40x128xf32, #tpu.memory_space<vmem>>, vector<8x128xf32>
    tpu.vector_store %arg13[%170, %c0_49], %169 {strides = array<i32>} : memref<40x128xf32, #tpu.memory_space<vmem>>, vector<8x128xf32>,
    %cst_50 = arith.constant dense<0.000000e+00> : vector<8xf32>
    %172 = vector.multi_reduction <add>, %169, %cst_50 [1] : vector<8x128xf32> to vector<8xf32>
    %173 = vector.shape_cast %172 : vector<8xf32> to vector<8x1xf32>
    %cst_51 = arith.constant 1.280000e+02 : f32
    %174 = vector.broadcast %cst_51 : f32 to vector<8x1xf32>
    %175 = arith.divf %173, %174 : vector<8x1xf32>
    %176 = arith.mulf %169, %169 : vector<8x128xf32>
    %cst_52 = arith.constant dense<0.000000e+00> : vector<8xf32>
    %177 = vector.multi_reduction <add>, %176, %cst_52 [1] : vector<8x128xf32> to vector<8xf32>
    %178 = vector.shape_cast %177 : vector<8xf32> to vector<8x1xf32>
    %cst_53 = arith.constant 1.280000e+02 : f32
    %179 = vector.broadcast %cst_53 : f32 to vector<8x1xf32>
    %180 = arith.divf %178, %179 : vector<8x1xf32>
    %181 = arith.mulf %175, %175 : vector<8x1xf32>
    %182 = arith.subf %180, %181 : vector<8x1xf32>
    %183 = vector.broadcast %175 : vector<8x1xf32> to vector<8x128xf32>
    %184 = arith.subf %169, %183 : vector<8x128xf32>
    %cst_54 = arith.constant 9.99999974E-6 : f32
    %185 = vector.broadcast %cst_54 : f32 to vector<8x1xf32>
    %186 = arith.addf %182, %185 : vector<8x1xf32>
    %187 = math.rsqrt %186 : vector<8x1xf32>
    %188 = vector.broadcast %187 : vector<8x1xf32> to vector<8x128xf32>
    %189 = arith.mulf %184, %188 : vector<8x128xf32>
    %190 = vector.broadcast %9 : vector<1x128xf32> to vector<8x128xf32>
    %191 = arith.mulf %189, %190 : vector<8x128xf32>
    %192 = vector.broadcast %10 : vector<1x128xf32> to vector<8x128xf32>
    %193 = arith.addf %191, %192 : vector<8x128xf32>
    %cst_55 = arith.constant 0.000000e+00 : f32
    %194 = vector.broadcast %cst_55 : f32 to vector<8x128xf32>
    %195 = arith.maximumf %193, %194 : vector<8x128xf32>
    %196 = arith.index_cast %137 : i32 to index
    %c0_56 = arith.constant 0 : index
    %197 = vector.load %arg17[%196, %c0_56] : memref<40x128xf32, #tpu.memory_space<vmem>>, vector<8x128xf32>
    tpu.vector_store %arg17[%196, %c0_56], %195 {strides = array<i32>} : memref<40x128xf32, #tpu.memory_space<vmem>>, vector<8x128xf32>,
    %c3_i32 = arith.constant 3 : i32
    %c8_i32_57 = arith.constant 8 : i32
    %198 = arith.muli %c3_i32, %c8_i32_57 : i32
    %199 = tpu.assume_multiple %198, 8 : i32
    %200 = arith.index_cast %199 : i32 to index
    %c0_58 = arith.constant 0 : index
    %201 = vector.load %arg16[%200, %c0_58] : memref<40x384xf32, #tpu.memory_space<vmem>>, vector<8x384xf32>
    %202 = arith.truncf %169 : vector<8x128xf32> to vector<8x128xbf16>
    %cst_59 = arith.constant dense<0.000000e+00> : vector<8x384xf32>
    %203 = tpu.matmul %202, %7, %cst_59 {dimension_numbers = #tpu.dot_dimension_numbers<[1], [0], [0], [1], [0, 0, 1, 1], [], []>} : vector<8x128xbf16>, vector<128x384xbf16>, vector<8x384xf32> -> vector<8x384xf32>
    %204 = vector.broadcast %8 : vector<1x384xf32> to vector<8x384xf32>
    %205 = arith.addf %203, %204 : vector<8x384xf32>
    %206 = vector.extract_strided_slice %201 {offsets = [0, 0], sizes = [8, 128], strides = [1, 1]} : vector<8x384xf32> to vector<8x128xf32>
    %207 = vector.extract_strided_slice %205 {offsets = [0, 0], sizes = [8, 128], strides = [1, 1]} : vector<8x384xf32> to vector<8x128xf32>
    %208 = arith.addf %206, %207 : vector<8x128xf32>
    %209 = arith.negf %208 : vector<8x128xf32>
    %210 = math.exp %209 : vector<8x128xf32>
    %cst_60 = arith.constant 1.000000e+00 : f32
    %211 = vector.broadcast %cst_60 : f32 to vector<8x128xf32>
    %212 = arith.addf %211, %210 : vector<8x128xf32>
    %213 = arith.divf %211, %212 : vector<8x128xf32>
    %214 = vector.extract_strided_slice %201 {offsets = [0, 128], sizes = [8, 128], strides = [1, 1]} : vector<8x384xf32> to vector<8x128xf32>
    %215 = vector.extract_strided_slice %205 {offsets = [0, 128], sizes = [8, 128], strides = [1, 1]} : vector<8x384xf32> to vector<8x128xf32>
    %216 = arith.addf %214, %215 : vector<8x128xf32>
    %217 = arith.negf %216 : vector<8x128xf32>
    %218 = math.exp %217 : vector<8x128xf32>
    %cst_61 = arith.constant 1.000000e+00 : f32
    %219 = vector.broadcast %cst_61 : f32 to vector<8x128xf32>
    %220 = arith.addf %219, %218 : vector<8x128xf32>
    %221 = arith.divf %219, %220 : vector<8x128xf32>
    %222 = vector.extract_strided_slice %201 {offsets = [0, 256], sizes = [8, 128], strides = [1, 1]} : vector<8x384xf32> to vector<8x128xf32>
    %223 = vector.extract_strided_slice %205 {offsets = [0, 256], sizes = [8, 128], strides = [1, 1]} : vector<8x384xf32> to vector<8x128xf32>
    %224 = arith.mulf %213, %223 : vector<8x128xf32>
    %225 = arith.addf %222, %224 : vector<8x128xf32>
    %226 = math.tanh %225 : vector<8x128xf32>
    %cst_62 = arith.constant 1.000000e+00 : f32
    %227 = vector.broadcast %cst_62 : f32 to vector<8x128xf32>
    %228 = arith.subf %227, %221 : vector<8x128xf32>
    %229 = arith.mulf %228, %226 : vector<8x128xf32>
    %230 = arith.mulf %221, %169 : vector<8x128xf32>
    %231 = arith.addf %229, %230 : vector<8x128xf32>
    %232 = arith.index_cast %199 : i32 to index
    %c0_63 = arith.constant 0 : index
    %233 = vector.load %arg13[%232, %c0_63] : memref<40x128xf32, #tpu.memory_space<vmem>>, vector<8x128xf32>
    tpu.vector_store %arg13[%232, %c0_63], %231 {strides = array<i32>} : memref<40x128xf32, #tpu.memory_space<vmem>>, vector<8x128xf32>,
    %cst_64 = arith.constant dense<0.000000e+00> : vector<8xf32>
    %234 = vector.multi_reduction <add>, %231, %cst_64 [1] : vector<8x128xf32> to vector<8xf32>
    %235 = vector.shape_cast %234 : vector<8xf32> to vector<8x1xf32>
    %cst_65 = arith.constant 1.280000e+02 : f32
    %236 = vector.broadcast %cst_65 : f32 to vector<8x1xf32>
    %237 = arith.divf %235, %236 : vector<8x1xf32>
    %238 = arith.mulf %231, %231 : vector<8x128xf32>
    %cst_66 = arith.constant dense<0.000000e+00> : vector<8xf32>
    %239 = vector.multi_reduction <add>, %238, %cst_66 [1] : vector<8x128xf32> to vector<8xf32>
    %240 = vector.shape_cast %239 : vector<8xf32> to vector<8x1xf32>
    %cst_67 = arith.constant 1.280000e+02 : f32
    %241 = vector.broadcast %cst_67 : f32 to vector<8x1xf32>
    %242 = arith.divf %240, %241 : vector<8x1xf32>
    %243 = arith.mulf %237, %237 : vector<8x1xf32>
    %244 = arith.subf %242, %243 : vector<8x1xf32>
    %245 = vector.broadcast %237 : vector<8x1xf32> to vector<8x128xf32>
    %246 = arith.subf %231, %245 : vector<8x128xf32>
    %cst_68 = arith.constant 9.99999974E-6 : f32
    %247 = vector.broadcast %cst_68 : f32 to vector<8x1xf32>
    %248 = arith.addf %244, %247 : vector<8x1xf32>
    %249 = math.rsqrt %248 : vector<8x1xf32>
    %250 = vector.broadcast %249 : vector<8x1xf32> to vector<8x128xf32>
    %251 = arith.mulf %246, %250 : vector<8x128xf32>
    %252 = vector.broadcast %9 : vector<1x128xf32> to vector<8x128xf32>
    %253 = arith.mulf %251, %252 : vector<8x128xf32>
    %254 = vector.broadcast %10 : vector<1x128xf32> to vector<8x128xf32>
    %255 = arith.addf %253, %254 : vector<8x128xf32>
    %cst_69 = arith.constant 0.000000e+00 : f32
    %256 = vector.broadcast %cst_69 : f32 to vector<8x128xf32>
    %257 = arith.maximumf %255, %256 : vector<8x128xf32>
    %258 = arith.index_cast %199 : i32 to index
    %c0_70 = arith.constant 0 : index
    %259 = vector.load %arg17[%258, %c0_70] : memref<40x128xf32, #tpu.memory_space<vmem>>, vector<8x128xf32>
    tpu.vector_store %arg17[%258, %c0_70], %257 {strides = array<i32>} : memref<40x128xf32, #tpu.memory_space<vmem>>, vector<8x128xf32>,
    %c4_i32 = arith.constant 4 : i32
    %c8_i32_71 = arith.constant 8 : i32
    %260 = arith.muli %c4_i32, %c8_i32_71 : i32
    %261 = tpu.assume_multiple %260, 8 : i32
    %262 = arith.index_cast %261 : i32 to index
    %c0_72 = arith.constant 0 : index
    %263 = vector.load %arg16[%262, %c0_72] : memref<40x384xf32, #tpu.memory_space<vmem>>, vector<8x384xf32>
    %264 = arith.truncf %231 : vector<8x128xf32> to vector<8x128xbf16>
    %cst_73 = arith.constant dense<0.000000e+00> : vector<8x384xf32>
    %265 = tpu.matmul %264, %7, %cst_73 {dimension_numbers = #tpu.dot_dimension_numbers<[1], [0], [0], [1], [0, 0, 1, 1], [], []>} : vector<8x128xbf16>, vector<128x384xbf16>, vector<8x384xf32> -> vector<8x384xf32>
    %266 = vector.broadcast %8 : vector<1x384xf32> to vector<8x384xf32>
    %267 = arith.addf %265, %266 : vector<8x384xf32>
    %268 = vector.extract_strided_slice %263 {offsets = [0, 0], sizes = [8, 128], strides = [1, 1]} : vector<8x384xf32> to vector<8x128xf32>
    %269 = vector.extract_strided_slice %267 {offsets = [0, 0], sizes = [8, 128], strides = [1, 1]} : vector<8x384xf32> to vector<8x128xf32>
    %270 = arith.addf %268, %269 : vector<8x128xf32>
    %271 = arith.negf %270 : vector<8x128xf32>
    %272 = math.exp %271 : vector<8x128xf32>
    %cst_74 = arith.constant 1.000000e+00 : f32
    %273 = vector.broadcast %cst_74 : f32 to vector<8x128xf32>
    %274 = arith.addf %273, %272 : vector<8x128xf32>
    %275 = arith.divf %273, %274 : vector<8x128xf32>
    %276 = vector.extract_strided_slice %263 {offsets = [0, 128], sizes = [8, 128], strides = [1, 1]} : vector<8x384xf32> to vector<8x128xf32>
    %277 = vector.extract_strided_slice %267 {offsets = [0, 128], sizes = [8, 128], strides = [1, 1]} : vector<8x384xf32> to vector<8x128xf32>
    %278 = arith.addf %276, %277 : vector<8x128xf32>
    %279 = arith.negf %278 : vector<8x128xf32>
    %280 = math.exp %279 : vector<8x128xf32>
    %cst_75 = arith.constant 1.000000e+00 : f32
    %281 = vector.broadcast %cst_75 : f32 to vector<8x128xf32>
    %282 = arith.addf %281, %280 : vector<8x128xf32>
    %283 = arith.divf %281, %282 : vector<8x128xf32>
    %284 = vector.extract_strided_slice %263 {offsets = [0, 256], sizes = [8, 128], strides = [1, 1]} : vector<8x384xf32> to vector<8x128xf32>
    %285 = vector.extract_strided_slice %267 {offsets = [0, 256], sizes = [8, 128], strides = [1, 1]} : vector<8x384xf32> to vector<8x128xf32>
    %286 = arith.mulf %275, %285 : vector<8x128xf32>
    %287 = arith.addf %284, %286 : vector<8x128xf32>
    %288 = math.tanh %287 : vector<8x128xf32>
    %cst_76 = arith.constant 1.000000e+00 : f32
    %289 = vector.broadcast %cst_76 : f32 to vector<8x128xf32>
    %290 = arith.subf %289, %283 : vector<8x128xf32>
    %291 = arith.mulf %290, %288 : vector<8x128xf32>
    %292 = arith.mulf %283, %231 : vector<8x128xf32>
    %293 = arith.addf %291, %292 : vector<8x128xf32>
    %294 = arith.index_cast %261 : i32 to index
    %c0_77 = arith.constant 0 : index
    %295 = vector.load %arg13[%294, %c0_77] : memref<40x128xf32, #tpu.memory_space<vmem>>, vector<8x128xf32>
    tpu.vector_store %arg13[%294, %c0_77], %293 {strides = array<i32>} : memref<40x128xf32, #tpu.memory_space<vmem>>, vector<8x128xf32>,
    %cst_78 = arith.constant dense<0.000000e+00> : vector<8xf32>
    %296 = vector.multi_reduction <add>, %293, %cst_78 [1] : vector<8x128xf32> to vector<8xf32>
    %297 = vector.shape_cast %296 : vector<8xf32> to vector<8x1xf32>
    %cst_79 = arith.constant 1.280000e+02 : f32
    %298 = vector.broadcast %cst_79 : f32 to vector<8x1xf32>
    %299 = arith.divf %297, %298 : vector<8x1xf32>
    %300 = arith.mulf %293, %293 : vector<8x128xf32>
    %cst_80 = arith.constant dense<0.000000e+00> : vector<8xf32>
    %301 = vector.multi_reduction <add>, %300, %cst_80 [1] : vector<8x128xf32> to vector<8xf32>
    %302 = vector.shape_cast %301 : vector<8xf32> to vector<8x1xf32>
    %cst_81 = arith.constant 1.280000e+02 : f32
    %303 = vector.broadcast %cst_81 : f32 to vector<8x1xf32>
    %304 = arith.divf %302, %303 : vector<8x1xf32>
    %305 = arith.mulf %299, %299 : vector<8x1xf32>
    %306 = arith.subf %304, %305 : vector<8x1xf32>
    %307 = vector.broadcast %299 : vector<8x1xf32> to vector<8x128xf32>
    %308 = arith.subf %293, %307 : vector<8x128xf32>
    %cst_82 = arith.constant 9.99999974E-6 : f32
    %309 = vector.broadcast %cst_82 : f32 to vector<8x1xf32>
    %310 = arith.addf %306, %309 : vector<8x1xf32>
    %311 = math.rsqrt %310 : vector<8x1xf32>
    %312 = vector.broadcast %311 : vector<8x1xf32> to vector<8x128xf32>
    %313 = arith.mulf %308, %312 : vector<8x128xf32>
    %314 = vector.broadcast %9 : vector<1x128xf32> to vector<8x128xf32>
    %315 = arith.mulf %313, %314 : vector<8x128xf32>
    %316 = vector.broadcast %10 : vector<1x128xf32> to vector<8x128xf32>
    %317 = arith.addf %315, %316 : vector<8x128xf32>
    %cst_83 = arith.constant 0.000000e+00 : f32
    %318 = vector.broadcast %cst_83 : f32 to vector<8x128xf32>
    %319 = arith.maximumf %317, %318 : vector<8x128xf32>
    %320 = arith.index_cast %261 : i32 to index
    %c0_84 = arith.constant 0 : index
    %321 = vector.load %arg17[%320, %c0_84] : memref<40x128xf32, #tpu.memory_space<vmem>>, vector<8x128xf32>
    tpu.vector_store %arg17[%320, %c0_84], %319 {strides = array<i32>} : memref<40x128xf32, #tpu.memory_space<vmem>>, vector<8x128xf32>,
    %c5_i32 = arith.constant 5 : i32
    %c0_85 = arith.constant 0 : index
    %c0_86 = arith.constant 0 : index
    %322 = vector.load %arg17[%c0_85, %c0_86] : memref<40x128xf32, #tpu.memory_space<vmem>>, vector<40x128xf32>
    %323 = arith.truncf %322 : vector<40x128xf32> to vector<40x128xbf16>
    %c0_87 = arith.constant 0 : index
    %c0_88 = arith.constant 0 : index
    %324 = vector.load %arg7[%c0_87, %c0_88] : memref<128x384xbf16, #tpu.memory_space<vmem>>, vector<128x384xbf16>
    %cst_89 = arith.constant dense<0.000000e+00> : vector<40x384xf32>
    %325 = tpu.matmul %323, %324, %cst_89 {dimension_numbers = #tpu.dot_dimension_numbers<[1], [0], [0], [1], [0, 0, 1, 1], [], []>} : vector<40x128xbf16>, vector<128x384xbf16>, vector<40x384xf32> -> vector<40x384xf32>
    %c0_90 = arith.constant 0 : index
    %c0_91 = arith.constant 0 : index
    %326 = vector.load %arg8[%c0_90, %c0_91] : memref<1x384xf32, #tpu.memory_space<vmem>>, vector<1x384xf32>
    %327 = vector.broadcast %326 : vector<1x384xf32> to vector<40x384xf32>
    %328 = arith.addf %325, %327 : vector<40x384xf32>
    %c0_92 = arith.constant 0 : index
    %c0_93 = arith.constant 0 : index
    %329 = vector.load %arg16[%c0_92, %c0_93] : memref<40x384xf32, #tpu.memory_space<vmem>>, vector<40x384xf32>
    tpu.vector_store %arg16[%c0_92, %c0_93], %328 {strides = array<i32>} : memref<40x384xf32, #tpu.memory_space<vmem>>, vector<40x384xf32>,
    %c0_94 = arith.constant 0 : index
    %c0_95 = arith.constant 0 : index
    %330 = vector.load %arg9[%c0_94, %c0_95] : memref<128x384xbf16, #tpu.memory_space<vmem>>, vector<128x384xbf16>
    %c0_96 = arith.constant 0 : index
    %c0_97 = arith.constant 0 : index
    %331 = vector.load %arg10[%c0_96, %c0_97] : memref<1x384xf32, #tpu.memory_space<vmem>>, vector<1x384xf32>
    %c0_98 = arith.constant 0 : index
    %c0_99 = arith.constant 0 : index
    %332 = vector.load %arg11[%c0_98, %c0_99] : memref<1x128xf32, #tpu.memory_space<vmem>>, vector<1x128xf32>
    %c0_100 = arith.constant 0 : index
    %c0_101 = arith.constant 0 : index
    %333 = vector.load %arg12[%c0_100, %c0_101] : memref<1x128xf32, #tpu.memory_space<vmem>>, vector<1x128xf32>
    %cst_102 = arith.constant 0.000000e+00 : f32
    %334 = vector.broadcast %cst_102 : f32 to vector<8x128xf32>
    %cst_103 = arith.constant 0.000000e+00 : f32
    %335 = vector.broadcast %cst_103 : f32 to vector<8x128xf32>
    %c0_i32_104 = arith.constant 0 : i32
    %c8_i32_105 = arith.constant 8 : i32
    %336 = arith.muli %c0_i32_104, %c8_i32_105 : i32
    %337 = tpu.assume_multiple %336, 8 : i32
    %338 = arith.index_cast %337 : i32 to index
    %c0_106 = arith.constant 0 : index
    %339 = vector.load %arg16[%338, %c0_106] : memref<40x384xf32, #tpu.memory_space<vmem>>, vector<8x384xf32>
    %340 = arith.truncf %334 : vector<8x128xf32> to vector<8x128xbf16>
    %cst_107 = arith.constant dense<0.000000e+00> : vector<8x384xf32>
    %341 = tpu.matmul %340, %330, %cst_107 {dimension_numbers = #tpu.dot_dimension_numbers<[1], [0], [0], [1], [0, 0, 1, 1], [], []>} : vector<8x128xbf16>, vector<128x384xbf16>, vector<8x384xf32> -> vector<8x384xf32>
    %342 = vector.broadcast %331 : vector<1x384xf32> to vector<8x384xf32>
    %343 = arith.addf %341, %342 : vector<8x384xf32>
    %344 = vector.extract_strided_slice %339 {offsets = [0, 0], sizes = [8, 128], strides = [1, 1]} : vector<8x384xf32> to vector<8x128xf32>
    %345 = vector.extract_strided_slice %343 {offsets = [0, 0], sizes = [8, 128], strides = [1, 1]} : vector<8x384xf32> to vector<8x128xf32>
    %346 = arith.addf %344, %345 : vector<8x128xf32>
    %347 = arith.negf %346 : vector<8x128xf32>
    %348 = math.exp %347 : vector<8x128xf32>
    %cst_108 = arith.constant 1.000000e+00 : f32
    %349 = vector.broadcast %cst_108 : f32 to vector<8x128xf32>
    %350 = arith.addf %349, %348 : vector<8x128xf32>
    %351 = arith.divf %349, %350 : vector<8x128xf32>
    %352 = vector.extract_strided_slice %339 {offsets = [0, 128], sizes = [8, 128], strides = [1, 1]} : vector<8x384xf32> to vector<8x128xf32>
    %353 = vector.extract_strided_slice %343 {offsets = [0, 128], sizes = [8, 128], strides = [1, 1]} : vector<8x384xf32> to vector<8x128xf32>
    %354 = arith.addf %352, %353 : vector<8x128xf32>
    %355 = arith.negf %354 : vector<8x128xf32>
    %356 = math.exp %355 : vector<8x128xf32>
    %cst_109 = arith.constant 1.000000e+00 : f32
    %357 = vector.broadcast %cst_109 : f32 to vector<8x128xf32>
    %358 = arith.addf %357, %356 : vector<8x128xf32>
    %359 = arith.divf %357, %358 : vector<8x128xf32>
    %360 = vector.extract_strided_slice %339 {offsets = [0, 256], sizes = [8, 128], strides = [1, 1]} : vector<8x384xf32> to vector<8x128xf32>
    %361 = vector.extract_strided_slice %343 {offsets = [0, 256], sizes = [8, 128], strides = [1, 1]} : vector<8x384xf32> to vector<8x128xf32>
    %362 = arith.mulf %351, %361 : vector<8x128xf32>
    %363 = arith.addf %360, %362 : vector<8x128xf32>
    %364 = math.tanh %363 : vector<8x128xf32>
    %cst_110 = arith.constant 1.000000e+00 : f32
    %365 = vector.broadcast %cst_110 : f32 to vector<8x128xf32>
    %366 = arith.subf %365, %359 : vector<8x128xf32>
    %367 = arith.mulf %366, %364 : vector<8x128xf32>
    %368 = arith.mulf %359, %334 : vector<8x128xf32>
    %369 = arith.addf %367, %368 : vector<8x128xf32>
    %370 = arith.index_cast %337 : i32 to index
    %c0_111 = arith.constant 0 : index
    %371 = vector.load %arg14[%370, %c0_111] : memref<40x128xf32, #tpu.memory_space<vmem>>, vector<8x128xf32>
    tpu.vector_store %arg14[%370, %c0_111], %369 {strides = array<i32>} : memref<40x128xf32, #tpu.memory_space<vmem>>, vector<8x128xf32>,
    %cst_112 = arith.constant dense<0.000000e+00> : vector<8xf32>
    %372 = vector.multi_reduction <add>, %369, %cst_112 [1] : vector<8x128xf32> to vector<8xf32>
    %373 = vector.shape_cast %372 : vector<8xf32> to vector<8x1xf32>
    %cst_113 = arith.constant 1.280000e+02 : f32
    %374 = vector.broadcast %cst_113 : f32 to vector<8x1xf32>
    %375 = arith.divf %373, %374 : vector<8x1xf32>
    %376 = arith.mulf %369, %369 : vector<8x128xf32>
    %cst_114 = arith.constant dense<0.000000e+00> : vector<8xf32>
    %377 = vector.multi_reduction <add>, %376, %cst_114 [1] : vector<8x128xf32> to vector<8xf32>
    %378 = vector.shape_cast %377 : vector<8xf32> to vector<8x1xf32>
    %cst_115 = arith.constant 1.280000e+02 : f32
    %379 = vector.broadcast %cst_115 : f32 to vector<8x1xf32>
    %380 = arith.divf %378, %379 : vector<8x1xf32>
    %381 = arith.mulf %375, %375 : vector<8x1xf32>
    %382 = arith.subf %380, %381 : vector<8x1xf32>
    %383 = vector.broadcast %375 : vector<8x1xf32> to vector<8x128xf32>
    %384 = arith.subf %369, %383 : vector<8x128xf32>
    %cst_116 = arith.constant 9.99999974E-6 : f32
    %385 = vector.broadcast %cst_116 : f32 to vector<8x1xf32>
    %386 = arith.addf %382, %385 : vector<8x1xf32>
    %387 = math.rsqrt %386 : vector<8x1xf32>
    %388 = vector.broadcast %387 : vector<8x1xf32> to vector<8x128xf32>
    %389 = arith.mulf %384, %388 : vector<8x128xf32>
    %390 = vector.broadcast %332 : vector<1x128xf32> to vector<8x128xf32>
    %391 = arith.mulf %389, %390 : vector<8x128xf32>
    %392 = vector.broadcast %333 : vector<1x128xf32> to vector<8x128xf32>
    %393 = arith.addf %391, %392 : vector<8x128xf32>
    %cst_117 = arith.constant 0.000000e+00 : f32
    %394 = vector.broadcast %cst_117 : f32 to vector<8x128xf32>
    %395 = arith.maximumf %393, %394 : vector<8x128xf32>
    %396 = arith.addf %335, %395 : vector<8x128xf32>
    %c1_i32_118 = arith.constant 1 : i32
    %c8_i32_119 = arith.constant 8 : i32
    %397 = arith.muli %c1_i32_118, %c8_i32_119 : i32
    %398 = tpu.assume_multiple %397, 8 : i32
    %399 = arith.index_cast %398 : i32 to index
    %c0_120 = arith.constant 0 : index
    %400 = vector.load %arg16[%399, %c0_120] : memref<40x384xf32, #tpu.memory_space<vmem>>, vector<8x384xf32>
    %401 = arith.truncf %369 : vector<8x128xf32> to vector<8x128xbf16>
    %cst_121 = arith.constant dense<0.000000e+00> : vector<8x384xf32>
    %402 = tpu.matmul %401, %330, %cst_121 {dimension_numbers = #tpu.dot_dimension_numbers<[1], [0], [0], [1], [0, 0, 1, 1], [], []>} : vector<8x128xbf16>, vector<128x384xbf16>, vector<8x384xf32> -> vector<8x384xf32>
    %403 = vector.broadcast %331 : vector<1x384xf32> to vector<8x384xf32>
    %404 = arith.addf %402, %403 : vector<8x384xf32>
    %405 = vector.extract_strided_slice %400 {offsets = [0, 0], sizes = [8, 128], strides = [1, 1]} : vector<8x384xf32> to vector<8x128xf32>
    %406 = vector.extract_strided_slice %404 {offsets = [0, 0], sizes = [8, 128], strides = [1, 1]} : vector<8x384xf32> to vector<8x128xf32>
    %407 = arith.addf %405, %406 : vector<8x128xf32>
    %408 = arith.negf %407 : vector<8x128xf32>
    %409 = math.exp %408 : vector<8x128xf32>
    %cst_122 = arith.constant 1.000000e+00 : f32
    %410 = vector.broadcast %cst_122 : f32 to vector<8x128xf32>
    %411 = arith.addf %410, %409 : vector<8x128xf32>
    %412 = arith.divf %410, %411 : vector<8x128xf32>
    %413 = vector.extract_strided_slice %400 {offsets = [0, 128], sizes = [8, 128], strides = [1, 1]} : vector<8x384xf32> to vector<8x128xf32>
    %414 = vector.extract_strided_slice %404 {offsets = [0, 128], sizes = [8, 128], strides = [1, 1]} : vector<8x384xf32> to vector<8x128xf32>
    %415 = arith.addf %413, %414 : vector<8x128xf32>
    %416 = arith.negf %415 : vector<8x128xf32>
    %417 = math.exp %416 : vector<8x128xf32>
    %cst_123 = arith.constant 1.000000e+00 : f32
    %418 = vector.broadcast %cst_123 : f32 to vector<8x128xf32>
    %419 = arith.addf %418, %417 : vector<8x128xf32>
    %420 = arith.divf %418, %419 : vector<8x128xf32>
    %421 = vector.extract_strided_slice %400 {offsets = [0, 256], sizes = [8, 128], strides = [1, 1]} : vector<8x384xf32> to vector<8x128xf32>
    %422 = vector.extract_strided_slice %404 {offsets = [0, 256], sizes = [8, 128], strides = [1, 1]} : vector<8x384xf32> to vector<8x128xf32>
    %423 = arith.mulf %412, %422 : vector<8x128xf32>
    %424 = arith.addf %421, %423 : vector<8x128xf32>
    %425 = math.tanh %424 : vector<8x128xf32>
    %cst_124 = arith.constant 1.000000e+00 : f32
    %426 = vector.broadcast %cst_124 : f32 to vector<8x128xf32>
    %427 = arith.subf %426, %420 : vector<8x128xf32>
    %428 = arith.mulf %427, %425 : vector<8x128xf32>
    %429 = arith.mulf %420, %369 : vector<8x128xf32>
    %430 = arith.addf %428, %429 : vector<8x128xf32>
    %431 = arith.index_cast %398 : i32 to index
    %c0_125 = arith.constant 0 : index
    %432 = vector.load %arg14[%431, %c0_125] : memref<40x128xf32, #tpu.memory_space<vmem>>, vector<8x128xf32>
    tpu.vector_store %arg14[%431, %c0_125], %430 {strides = array<i32>} : memref<40x128xf32, #tpu.memory_space<vmem>>, vector<8x128xf32>,
    %cst_126 = arith.constant dense<0.000000e+00> : vector<8xf32>
    %433 = vector.multi_reduction <add>, %430, %cst_126 [1] : vector<8x128xf32> to vector<8xf32>
    %434 = vector.shape_cast %433 : vector<8xf32> to vector<8x1xf32>
    %cst_127 = arith.constant 1.280000e+02 : f32
    %435 = vector.broadcast %cst_127 : f32 to vector<8x1xf32>
    %436 = arith.divf %434, %435 : vector<8x1xf32>
    %437 = arith.mulf %430, %430 : vector<8x128xf32>
    %cst_128 = arith.constant dense<0.000000e+00> : vector<8xf32>
    %438 = vector.multi_reduction <add>, %437, %cst_128 [1] : vector<8x128xf32> to vector<8xf32>
    %439 = vector.shape_cast %438 : vector<8xf32> to vector<8x1xf32>
    %cst_129 = arith.constant 1.280000e+02 : f32
    %440 = vector.broadcast %cst_129 : f32 to vector<8x1xf32>
    %441 = arith.divf %439, %440 : vector<8x1xf32>
    %442 = arith.mulf %436, %436 : vector<8x1xf32>
    %443 = arith.subf %441, %442 : vector<8x1xf32>
    %444 = vector.broadcast %436 : vector<8x1xf32> to vector<8x128xf32>
    %445 = arith.subf %430, %444 : vector<8x128xf32>
    %cst_130 = arith.constant 9.99999974E-6 : f32
    %446 = vector.broadcast %cst_130 : f32 to vector<8x1xf32>
    %447 = arith.addf %443, %446 : vector<8x1xf32>
    %448 = math.rsqrt %447 : vector<8x1xf32>
    %449 = vector.broadcast %448 : vector<8x1xf32> to vector<8x128xf32>
    %450 = arith.mulf %445, %449 : vector<8x128xf32>
    %451 = vector.broadcast %332 : vector<1x128xf32> to vector<8x128xf32>
    %452 = arith.mulf %450, %451 : vector<8x128xf32>
    %453 = vector.broadcast %333 : vector<1x128xf32> to vector<8x128xf32>
    %454 = arith.addf %452, %453 : vector<8x128xf32>
    %cst_131 = arith.constant 0.000000e+00 : f32
    %455 = vector.broadcast %cst_131 : f32 to vector<8x128xf32>
    %456 = arith.maximumf %454, %455 : vector<8x128xf32>
    %457 = arith.addf %396, %456 : vector<8x128xf32>
    %c2_i32_132 = arith.constant 2 : i32
    %c8_i32_133 = arith.constant 8 : i32
    %458 = arith.muli %c2_i32_132, %c8_i32_133 : i32
    %459 = tpu.assume_multiple %458, 8 : i32
    %460 = arith.index_cast %459 : i32 to index
    %c0_134 = arith.constant 0 : index
    %461 = vector.load %arg16[%460, %c0_134] : memref<40x384xf32, #tpu.memory_space<vmem>>, vector<8x384xf32>
    %462 = arith.truncf %430 : vector<8x128xf32> to vector<8x128xbf16>
    %cst_135 = arith.constant dense<0.000000e+00> : vector<8x384xf32>
    %463 = tpu.matmul %462, %330, %cst_135 {dimension_numbers = #tpu.dot_dimension_numbers<[1], [0], [0], [1], [0, 0, 1, 1], [], []>} : vector<8x128xbf16>, vector<128x384xbf16>, vector<8x384xf32> -> vector<8x384xf32>
    %464 = vector.broadcast %331 : vector<1x384xf32> to vector<8x384xf32>
    %465 = arith.addf %463, %464 : vector<8x384xf32>
    %466 = vector.extract_strided_slice %461 {offsets = [0, 0], sizes = [8, 128], strides = [1, 1]} : vector<8x384xf32> to vector<8x128xf32>
    %467 = vector.extract_strided_slice %465 {offsets = [0, 0], sizes = [8, 128], strides = [1, 1]} : vector<8x384xf32> to vector<8x128xf32>
    %468 = arith.addf %466, %467 : vector<8x128xf32>
    %469 = arith.negf %468 : vector<8x128xf32>
    %470 = math.exp %469 : vector<8x128xf32>
    %cst_136 = arith.constant 1.000000e+00 : f32
    %471 = vector.broadcast %cst_136 : f32 to vector<8x128xf32>
    %472 = arith.addf %471, %470 : vector<8x128xf32>
    %473 = arith.divf %471, %472 : vector<8x128xf32>
    %474 = vector.extract_strided_slice %461 {offsets = [0, 128], sizes = [8, 128], strides = [1, 1]} : vector<8x384xf32> to vector<8x128xf32>
    %475 = vector.extract_strided_slice %465 {offsets = [0, 128], sizes = [8, 128], strides = [1, 1]} : vector<8x384xf32> to vector<8x128xf32>
    %476 = arith.addf %474, %475 : vector<8x128xf32>
    %477 = arith.negf %476 : vector<8x128xf32>
    %478 = math.exp %477 : vector<8x128xf32>
    %cst_137 = arith.constant 1.000000e+00 : f32
    %479 = vector.broadcast %cst_137 : f32 to vector<8x128xf32>
    %480 = arith.addf %479, %478 : vector<8x128xf32>
    %481 = arith.divf %479, %480 : vector<8x128xf32>
    %482 = vector.extract_strided_slice %461 {offsets = [0, 256], sizes = [8, 128], strides = [1, 1]} : vector<8x384xf32> to vector<8x128xf32>
    %483 = vector.extract_strided_slice %465 {offsets = [0, 256], sizes = [8, 128], strides = [1, 1]} : vector<8x384xf32> to vector<8x128xf32>
    %484 = arith.mulf %473, %483 : vector<8x128xf32>
    %485 = arith.addf %482, %484 : vector<8x128xf32>
    %486 = math.tanh %485 : vector<8x128xf32>
    %cst_138 = arith.constant 1.000000e+00 : f32
    %487 = vector.broadcast %cst_138 : f32 to vector<8x128xf32>
    %488 = arith.subf %487, %481 : vector<8x128xf32>
    %489 = arith.mulf %488, %486 : vector<8x128xf32>
    %490 = arith.mulf %481, %430 : vector<8x128xf32>
    %491 = arith.addf %489, %490 : vector<8x128xf32>
    %492 = arith.index_cast %459 : i32 to index
    %c0_139 = arith.constant 0 : index
    %493 = vector.load %arg14[%492, %c0_139] : memref<40x128xf32, #tpu.memory_space<vmem>>, vector<8x128xf32>
    tpu.vector_store %arg14[%492, %c0_139], %491 {strides = array<i32>} : memref<40x128xf32, #tpu.memory_space<vmem>>, vector<8x128xf32>,
    %cst_140 = arith.constant dense<0.000000e+00> : vector<8xf32>
    %494 = vector.multi_reduction <add>, %491, %cst_140 [1] : vector<8x128xf32> to vector<8xf32>
    %495 = vector.shape_cast %494 : vector<8xf32> to vector<8x1xf32>
    %cst_141 = arith.constant 1.280000e+02 : f32
    %496 = vector.broadcast %cst_141 : f32 to vector<8x1xf32>
    %497 = arith.divf %495, %496 : vector<8x1xf32>
    %498 = arith.mulf %491, %491 : vector<8x128xf32>
    %cst_142 = arith.constant dense<0.000000e+00> : vector<8xf32>
    %499 = vector.multi_reduction <add>, %498, %cst_142 [1] : vector<8x128xf32> to vector<8xf32>
    %500 = vector.shape_cast %499 : vector<8xf32> to vector<8x1xf32>
    %cst_143 = arith.constant 1.280000e+02 : f32
    %501 = vector.broadcast %cst_143 : f32 to vector<8x1xf32>
    %502 = arith.divf %500, %501 : vector<8x1xf32>
    %503 = arith.mulf %497, %497 : vector<8x1xf32>
    %504 = arith.subf %502, %503 : vector<8x1xf32>
    %505 = vector.broadcast %497 : vector<8x1xf32> to vector<8x128xf32>
    %506 = arith.subf %491, %505 : vector<8x128xf32>
    %cst_144 = arith.constant 9.99999974E-6 : f32
    %507 = vector.broadcast %cst_144 : f32 to vector<8x1xf32>
    %508 = arith.addf %504, %507 : vector<8x1xf32>
    %509 = math.rsqrt %508 : vector<8x1xf32>
    %510 = vector.broadcast %509 : vector<8x1xf32> to vector<8x128xf32>
    %511 = arith.mulf %506, %510 : vector<8x128xf32>
    %512 = vector.broadcast %332 : vector<1x128xf32> to vector<8x128xf32>
    %513 = arith.mulf %511, %512 : vector<8x128xf32>
    %514 = vector.broadcast %333 : vector<1x128xf32> to vector<8x128xf32>
    %515 = arith.addf %513, %514 : vector<8x128xf32>
    %cst_145 = arith.constant 0.000000e+00 : f32
    %516 = vector.broadcast %cst_145 : f32 to vector<8x128xf32>
    %517 = arith.maximumf %515, %516 : vector<8x128xf32>
    %518 = arith.addf %457, %517 : vector<8x128xf32>
    %c3_i32_146 = arith.constant 3 : i32
    %c8_i32_147 = arith.constant 8 : i32
    %519 = arith.muli %c3_i32_146, %c8_i32_147 : i32
    %520 = tpu.assume_multiple %519, 8 : i32
    %521 = arith.index_cast %520 : i32 to index
    %c0_148 = arith.constant 0 : index
    %522 = vector.load %arg16[%521, %c0_148] : memref<40x384xf32, #tpu.memory_space<vmem>>, vector<8x384xf32>
    %523 = arith.truncf %491 : vector<8x128xf32> to vector<8x128xbf16>
    %cst_149 = arith.constant dense<0.000000e+00> : vector<8x384xf32>
    %524 = tpu.matmul %523, %330, %cst_149 {dimension_numbers = #tpu.dot_dimension_numbers<[1], [0], [0], [1], [0, 0, 1, 1], [], []>} : vector<8x128xbf16>, vector<128x384xbf16>, vector<8x384xf32> -> vector<8x384xf32>
    %525 = vector.broadcast %331 : vector<1x384xf32> to vector<8x384xf32>
    %526 = arith.addf %524, %525 : vector<8x384xf32>
    %527 = vector.extract_strided_slice %522 {offsets = [0, 0], sizes = [8, 128], strides = [1, 1]} : vector<8x384xf32> to vector<8x128xf32>
    %528 = vector.extract_strided_slice %526 {offsets = [0, 0], sizes = [8, 128], strides = [1, 1]} : vector<8x384xf32> to vector<8x128xf32>
    %529 = arith.addf %527, %528 : vector<8x128xf32>
    %530 = arith.negf %529 : vector<8x128xf32>
    %531 = math.exp %530 : vector<8x128xf32>
    %cst_150 = arith.constant 1.000000e+00 : f32
    %532 = vector.broadcast %cst_150 : f32 to vector<8x128xf32>
    %533 = arith.addf %532, %531 : vector<8x128xf32>
    %534 = arith.divf %532, %533 : vector<8x128xf32>
    %535 = vector.extract_strided_slice %522 {offsets = [0, 128], sizes = [8, 128], strides = [1, 1]} : vector<8x384xf32> to vector<8x128xf32>
    %536 = vector.extract_strided_slice %526 {offsets = [0, 128], sizes = [8, 128], strides = [1, 1]} : vector<8x384xf32> to vector<8x128xf32>
    %537 = arith.addf %535, %536 : vector<8x128xf32>
    %538 = arith.negf %537 : vector<8x128xf32>
    %539 = math.exp %538 : vector<8x128xf32>
    %cst_151 = arith.constant 1.000000e+00 : f32
    %540 = vector.broadcast %cst_151 : f32 to vector<8x128xf32>
    %541 = arith.addf %540, %539 : vector<8x128xf32>
    %542 = arith.divf %540, %541 : vector<8x128xf32>
    %543 = vector.extract_strided_slice %522 {offsets = [0, 256], sizes = [8, 128], strides = [1, 1]} : vector<8x384xf32> to vector<8x128xf32>
    %544 = vector.extract_strided_slice %526 {offsets = [0, 256], sizes = [8, 128], strides = [1, 1]} : vector<8x384xf32> to vector<8x128xf32>
    %545 = arith.mulf %534, %544 : vector<8x128xf32>
    %546 = arith.addf %543, %545 : vector<8x128xf32>
    %547 = math.tanh %546 : vector<8x128xf32>
    %cst_152 = arith.constant 1.000000e+00 : f32
    %548 = vector.broadcast %cst_152 : f32 to vector<8x128xf32>
    %549 = arith.subf %548, %542 : vector<8x128xf32>
    %550 = arith.mulf %549, %547 : vector<8x128xf32>
    %551 = arith.mulf %542, %491 : vector<8x128xf32>
    %552 = arith.addf %550, %551 : vector<8x128xf32>
    %553 = arith.index_cast %520 : i32 to index
    %c0_153 = arith.constant 0 : index
    %554 = vector.load %arg14[%553, %c0_153] : memref<40x128xf32, #tpu.memory_space<vmem>>, vector<8x128xf32>
    tpu.vector_store %arg14[%553, %c0_153], %552 {strides = array<i32>} : memref<40x128xf32, #tpu.memory_space<vmem>>, vector<8x128xf32>,
    %cst_154 = arith.constant dense<0.000000e+00> : vector<8xf32>
    %555 = vector.multi_reduction <add>, %552, %cst_154 [1] : vector<8x128xf32> to vector<8xf32>
    %556 = vector.shape_cast %555 : vector<8xf32> to vector<8x1xf32>
    %cst_155 = arith.constant 1.280000e+02 : f32
    %557 = vector.broadcast %cst_155 : f32 to vector<8x1xf32>
    %558 = arith.divf %556, %557 : vector<8x1xf32>
    %559 = arith.mulf %552, %552 : vector<8x128xf32>
    %cst_156 = arith.constant dense<0.000000e+00> : vector<8xf32>
    %560 = vector.multi_reduction <add>, %559, %cst_156 [1] : vector<8x128xf32> to vector<8xf32>
    %561 = vector.shape_cast %560 : vector<8xf32> to vector<8x1xf32>
    %cst_157 = arith.constant 1.280000e+02 : f32
    %562 = vector.broadcast %cst_157 : f32 to vector<8x1xf32>
    %563 = arith.divf %561, %562 : vector<8x1xf32>
    %564 = arith.mulf %558, %558 : vector<8x1xf32>
    %565 = arith.subf %563, %564 : vector<8x1xf32>
    %566 = vector.broadcast %558 : vector<8x1xf32> to vector<8x128xf32>
    %567 = arith.subf %552, %566 : vector<8x128xf32>
    %cst_158 = arith.constant 9.99999974E-6 : f32
    %568 = vector.broadcast %cst_158 : f32 to vector<8x1xf32>
    %569 = arith.addf %565, %568 : vector<8x1xf32>
    %570 = math.rsqrt %569 : vector<8x1xf32>
    %571 = vector.broadcast %570 : vector<8x1xf32> to vector<8x128xf32>
    %572 = arith.mulf %567, %571 : vector<8x128xf32>
    %573 = vector.broadcast %332 : vector<1x128xf32> to vector<8x128xf32>
    %574 = arith.mulf %572, %573 : vector<8x128xf32>
    %575 = vector.broadcast %333 : vector<1x128xf32> to vector<8x128xf32>
    %576 = arith.addf %574, %575 : vector<8x128xf32>
    %cst_159 = arith.constant 0.000000e+00 : f32
    %577 = vector.broadcast %cst_159 : f32 to vector<8x128xf32>
    %578 = arith.maximumf %576, %577 : vector<8x128xf32>
    %579 = arith.addf %518, %578 : vector<8x128xf32>
    %c4_i32_160 = arith.constant 4 : i32
    %c8_i32_161 = arith.constant 8 : i32
    %580 = arith.muli %c4_i32_160, %c8_i32_161 : i32
    %581 = tpu.assume_multiple %580, 8 : i32
    %582 = arith.index_cast %581 : i32 to index
    %c0_162 = arith.constant 0 : index
    %583 = vector.load %arg16[%582, %c0_162] : memref<40x384xf32, #tpu.memory_space<vmem>>, vector<8x384xf32>
    %584 = arith.truncf %552 : vector<8x128xf32> to vector<8x128xbf16>
    %cst_163 = arith.constant dense<0.000000e+00> : vector<8x384xf32>
    %585 = tpu.matmul %584, %330, %cst_163 {dimension_numbers = #tpu.dot_dimension_numbers<[1], [0], [0], [1], [0, 0, 1, 1], [], []>} : vector<8x128xbf16>, vector<128x384xbf16>, vector<8x384xf32> -> vector<8x384xf32>
    %586 = vector.broadcast %331 : vector<1x384xf32> to vector<8x384xf32>
    %587 = arith.addf %585, %586 : vector<8x384xf32>
    %588 = vector.extract_strided_slice %583 {offsets = [0, 0], sizes = [8, 128], strides = [1, 1]} : vector<8x384xf32> to vector<8x128xf32>
    %589 = vector.extract_strided_slice %587 {offsets = [0, 0], sizes = [8, 128], strides = [1, 1]} : vector<8x384xf32> to vector<8x128xf32>
    %590 = arith.addf %588, %589 : vector<8x128xf32>
    %591 = arith.negf %590 : vector<8x128xf32>
    %592 = math.exp %591 : vector<8x128xf32>
    %cst_164 = arith.constant 1.000000e+00 : f32
    %593 = vector.broadcast %cst_164 : f32 to vector<8x128xf32>
    %594 = arith.addf %593, %592 : vector<8x128xf32>
    %595 = arith.divf %593, %594 : vector<8x128xf32>
    %596 = vector.extract_strided_slice %583 {offsets = [0, 128], sizes = [8, 128], strides = [1, 1]} : vector<8x384xf32> to vector<8x128xf32>
    %597 = vector.extract_strided_slice %587 {offsets = [0, 128], sizes = [8, 128], strides = [1, 1]} : vector<8x384xf32> to vector<8x128xf32>
    %598 = arith.addf %596, %597 : vector<8x128xf32>
    %599 = arith.negf %598 : vector<8x128xf32>
    %600 = math.exp %599 : vector<8x128xf32>
    %cst_165 = arith.constant 1.000000e+00 : f32
    %601 = vector.broadcast %cst_165 : f32 to vector<8x128xf32>
    %602 = arith.addf %601, %600 : vector<8x128xf32>
    %603 = arith.divf %601, %602 : vector<8x128xf32>
    %604 = vector.extract_strided_slice %583 {offsets = [0, 256], sizes = [8, 128], strides = [1, 1]} : vector<8x384xf32> to vector<8x128xf32>
    %605 = vector.extract_strided_slice %587 {offsets = [0, 256], sizes = [8, 128], strides = [1, 1]} : vector<8x384xf32> to vector<8x128xf32>
    %606 = arith.mulf %595, %605 : vector<8x128xf32>
    %607 = arith.addf %604, %606 : vector<8x128xf32>
    %608 = math.tanh %607 : vector<8x128xf32>
    %cst_166 = arith.constant 1.000000e+00 : f32
    %609 = vector.broadcast %cst_166 : f32 to vector<8x128xf32>
    %610 = arith.subf %609, %603 : vector<8x128xf32>
    %611 = arith.mulf %610, %608 : vector<8x128xf32>
    %612 = arith.mulf %603, %552 : vector<8x128xf32>
    %613 = arith.addf %611, %612 : vector<8x128xf32>
    %614 = arith.index_cast %581 : i32 to index
    %c0_167 = arith.constant 0 : index
    %615 = vector.load %arg14[%614, %c0_167] : memref<40x128xf32, #tpu.memory_space<vmem>>, vector<8x128xf32>
    tpu.vector_store %arg14[%614, %c0_167], %613 {strides = array<i32>} : memref<40x128xf32, #tpu.memory_space<vmem>>, vector<8x128xf32>,
    %cst_168 = arith.constant dense<0.000000e+00> : vector<8xf32>
    %616 = vector.multi_reduction <add>, %613, %cst_168 [1] : vector<8x128xf32> to vector<8xf32>
    %617 = vector.shape_cast %616 : vector<8xf32> to vector<8x1xf32>
    %cst_169 = arith.constant 1.280000e+02 : f32
    %618 = vector.broadcast %cst_169 : f32 to vector<8x1xf32>
    %619 = arith.divf %617, %618 : vector<8x1xf32>
    %620 = arith.mulf %613, %613 : vector<8x128xf32>
    %cst_170 = arith.constant dense<0.000000e+00> : vector<8xf32>
    %621 = vector.multi_reduction <add>, %620, %cst_170 [1] : vector<8x128xf32> to vector<8xf32>
    %622 = vector.shape_cast %621 : vector<8xf32> to vector<8x1xf32>
    %cst_171 = arith.constant 1.280000e+02 : f32
    %623 = vector.broadcast %cst_171 : f32 to vector<8x1xf32>
    %624 = arith.divf %622, %623 : vector<8x1xf32>
    %625 = arith.mulf %619, %619 : vector<8x1xf32>
    %626 = arith.subf %624, %625 : vector<8x1xf32>
    %627 = vector.broadcast %619 : vector<8x1xf32> to vector<8x128xf32>
    %628 = arith.subf %613, %627 : vector<8x128xf32>
    %cst_172 = arith.constant 9.99999974E-6 : f32
    %629 = vector.broadcast %cst_172 : f32 to vector<8x1xf32>
    %630 = arith.addf %626, %629 : vector<8x1xf32>
    %631 = math.rsqrt %630 : vector<8x1xf32>
    %632 = vector.broadcast %631 : vector<8x1xf32> to vector<8x128xf32>
    %633 = arith.mulf %628, %632 : vector<8x128xf32>
    %634 = vector.broadcast %332 : vector<1x128xf32> to vector<8x128xf32>
    %635 = arith.mulf %633, %634 : vector<8x128xf32>
    %636 = vector.broadcast %333 : vector<1x128xf32> to vector<8x128xf32>
    %637 = arith.addf %635, %636 : vector<8x128xf32>
    %cst_173 = arith.constant 0.000000e+00 : f32
    %638 = vector.broadcast %cst_173 : f32 to vector<8x128xf32>
    %639 = arith.maximumf %637, %638 : vector<8x128xf32>
    %640 = arith.addf %579, %639 : vector<8x128xf32>
    %c5_i32_174 = arith.constant 5 : i32
    %cst_175 = arith.constant 2.000000e-01 : f32
    %641 = vector.broadcast %cst_175 : f32 to vector<8x128xf32>
    %642 = arith.mulf %640, %641 : vector<8x128xf32>
    %c0_176 = arith.constant 0 : index
    %c0_177 = arith.constant 0 : index
    %643 = vector.load %arg15[%c0_176, %c0_177] : memref<8x128xf32, #tpu.memory_space<vmem>>, vector<8x128xf32>
    tpu.vector_store %arg15[%c0_176, %c0_177], %642 {strides = array<i32>} : memref<8x128xf32, #tpu.memory_space<vmem>>, vector<8x128xf32>,
    return
  }
}

</mosaic_0001>

<llo_original>
// kernel: en_de_model_3_forward.1
$region0: #{en_de_model_3_forward.1}
  #allocation0 [shape = 'u32[]', space=smem, size = 0x4, offset = 0x4, fixed_abs, tag = 'smem constant byte address 0x4 - core index']
  #allocation1 [shape = 'u32[144,128]{1,0:T(1,128)}', space=vmem, size = 0x12000, scoped, tag = 'internal scratch']
  #allocation2 [shape = 'f32[40,384]{1,0:T(8,128)}', space=vmem, size = 0xf000, scoped, tag = 'scratch operand']
  #allocation3 [shape = 'f32[40,128]{1,0:T(8,128)}', space=vmem, size = 0x5000, scoped, tag = 'scratch operand']
  %s0 = inlined_call_operand.vmem [shape: bf16[40,128], index: 0, kind: input, shape index: {}]
  %s1 = inlined_call_operand.vmem [shape: bf16[128,384], index: 1, kind: input, shape index: {}]
  %s2 = inlined_call_operand.vmem [shape: f32[1,384], index: 2, kind: input, shape index: {}]
  %s3 = inlined_call_operand.vmem [shape: bf16[128,384], index: 3, kind: input, shape index: {}]
  %s4 = inlined_call_operand.vmem [shape: f32[1,384], index: 4, kind: input, shape index: {}]
  %s5 = inlined_call_operand.vmem [shape: f32[1,128], index: 5, kind: input, shape index: {}]
  %s6 = inlined_call_operand.vmem [shape: f32[1,128], index: 6, kind: input, shape index: {}]
  %s7 = inlined_call_operand.vmem [shape: bf16[128,384], index: 7, kind: input, shape index: {}]
  %s8 = inlined_call_operand.vmem [shape: f32[1,384], index: 8, kind: input, shape index: {}]
  %s9 = inlined_call_operand.vmem [shape: bf16[128,384], index: 9, kind: input, shape index: {}]
  %s10 = inlined_call_operand.vmem [shape: f32[1,384], index: 10, kind: input, shape index: {}]
  %s11 = inlined_call_operand.vmem [shape: f32[1,128], index: 11, kind: input, shape index: {}]
  %s12 = inlined_call_operand.vmem [shape: f32[1,128], index: 12, kind: input, shape index: {}]
  %s13 = inlined_call_operand.vmem [shape: f32[40,128], index: 13, kind: output, shape index: {0}]
  %s14 = inlined_call_operand.vmem [shape: f32[40,128], index: 14, kind: output, shape index: {1}]
  %s15 = inlined_call_operand.vmem [shape: f32[8,128], index: 15, kind: output, shape index: {2}]
  %16 = xla_tuple %s13, %s14, %s15
  %s17 = sld [smem:[#allocation0]]
  $region78: #{en_de_model_3_forward.1} parent=0
    _
  %s19 = ssub.s32 1, %s17
  %s20 = scalar_select 0, %s19, %s17
  // Predicated region
  $region2: #{en_de_model_3_forward.1} parent=0 // pred_check
    _
  $region3: #{en_de_model_3_forward.1} parent=0 // pred_check_branch
    %22 = sbr.rel (0) target = $region5
  $region4: #{en_de_model_3_forward.1} parent=0 // pred_region
    _
  $region5: #{en_de_model_3_forward.1} parent=0 // pred_fallthru
    _
  // Predicated region
  $region6: #{en_de_model_3_forward.1} parent=0 // pred_check
    _
  $region7: #{en_de_model_3_forward.1} parent=0 // pred_check_branch
    %24 = sbr.rel (0) target = $region9
  $region8: #{en_de_model_3_forward.1} parent=0 // pred_region
    _
  $region9: #{en_de_model_3_forward.1} parent=0 // pred_fallthru
    _
  // Predicated region
  $region10: #{en_de_model_3_forward.1} parent=0 // pred_check
    _
  $region11: #{en_de_model_3_forward.1} parent=0 // pred_check_branch
    %26 = sbr.rel (0) target = $region13
  $region12: #{en_de_model_3_forward.1} parent=0 // pred_region
    _
  $region13: #{en_de_model_3_forward.1} parent=0 // pred_fallthru
    _
  // Predicated region
  $region14: #{en_de_model_3_forward.1} parent=0 // pred_check
    _
  $region15: #{en_de_model_3_forward.1} parent=0 // pred_check_branch
    %28 = sbr.rel (0) target = $region17
  $region16: #{en_de_model_3_forward.1} parent=0 // pred_region
    _
  $region17: #{en_de_model_3_forward.1} parent=0 // pred_fallthru
    _
  // Predicated region
  $region18: #{en_de_model_3_forward.1} parent=0 // pred_check
    _
  $region19: #{en_de_model_3_forward.1} parent=0 // pred_check_branch
    %30 = sbr.rel (0) target = $region21
  $region20: #{en_de_model_3_forward.1} parent=0 // pred_region
    _
  $region21: #{en_de_model_3_forward.1} parent=0 // pred_fallthru
    _
  // Predicated region
  $region22: #{en_de_model_3_forward.1} parent=0 // pred_check
    _
  $region23: #{en_de_model_3_forward.1} parent=0 // pred_check_branch
    %32 = sbr.rel (0) target = $region25
  $region24: #{en_de_model_3_forward.1} parent=0 // pred_region
    _
  $region25: #{en_de_model_3_forward.1} parent=0 // pred_fallthru
    _
  // Predicated region
  $region26: #{en_de_model_3_forward.1} parent=0 // pred_check
    _
  $region27: #{en_de_model_3_forward.1} parent=0 // pred_check_branch
    %34 = sbr.rel (0) target = $region29
  $region28: #{en_de_model_3_forward.1} parent=0 // pred_region
    _
  $region29: #{en_de_model_3_forward.1} parent=0 // pred_fallthru
    _
  // Predicated region
  $region30: #{en_de_model_3_forward.1} parent=0 // pred_check
    _
  $region31: #{en_de_model_3_forward.1} parent=0 // pred_check_branch
    %36 = sbr.rel (0) target = $region33
  $region32: #{en_de_model_3_forward.1} parent=0 // pred_region
    _
  $region33: #{en_de_model_3_forward.1} parent=0 // pred_fallthru
    _
  // Predicated region
  $region34: #{en_de_model_3_forward.1} parent=0 // pred_check
    _
  $region35: #{en_de_model_3_forward.1} parent=0 // pred_check_branch
    %38 = sbr.rel (0) target = $region37
  $region36: #{en_de_model_3_forward.1} parent=0 // pred_region
    _
  $region37: #{en_de_model_3_forward.1} parent=0 // pred_fallthru
    _
  // Predicated region
  $region38: #{en_de_model_3_forward.1} parent=0 // pred_check
    _
  $region39: #{en_de_model_3_forward.1} parent=0 // pred_check_branch
    %40 = sbr.rel (0) target = $region41
  $region40: #{en_de_model_3_forward.1} parent=0 // pred_region
    _
  $region41: #{en_de_model_3_forward.1} parent=0 // pred_fallthru
    _
  // Predicated region
  $region42: #{en_de_model_3_forward.1} parent=0 // pred_check
    _
  $region43: #{en_de_model_3_forward.1} parent=0 // pred_check_branch
    %42 = sbr.rel (0) target = $region45
  $region44: #{en_de_model_3_forward.1} parent=0 // pred_region
    _
  $region45: #{en_de_model_3_forward.1} parent=0 // pred_fallthru
    _
  // Predicated region
  $region46: #{en_de_model_3_forward.1} parent=0 // pred_check
    _
  $region47: #{en_de_model_3_forward.1} parent=0 // pred_check_branch
    %44 = sbr.rel (0) target = $region49
  $region48: #{en_de_model_3_forward.1} parent=0 // pred_region
    _
  $region49: #{en_de_model_3_forward.1} parent=0 // pred_fallthru
    _
  // Predicated region
  $region50: #{en_de_model_3_forward.1} parent=0 // pred_check
    _
  $region51: #{en_de_model_3_forward.1} parent=0 // pred_check_branch
    %46 = sbr.rel (0) target = $region53
  $region52: #{en_de_model_3_forward.1} parent=0 // pred_region
    _
  $region53: #{en_de_model_3_forward.1} parent=0 // pred_fallthru
    _
  %v48 = vld [vmem:[%s0] sm:$0xf]
  %v49 = vld [vmem:[%s0 + $0x4] sm:$0xf]
  %v50 = vld [vmem:[%s0 + $0x8] sm:$0xf]
  %v51 = vld [vmem:[%s0 + $0xc] sm:$0xf]
  %v52 = vld [vmem:[%s0 + $0x10] sm:$0xf]
  %v53 = vld [vmem:[%s1] sm:$0xff]
  %v54 = vld [vmem:[%s1 + $0x8] sm:$0xf]
  %v55 = vld [vmem:[%s1 + $0xc] sm:$0xff]
  %v56 = vld [vmem:[%s1 + $0x14] sm:$0xf]
  %v57 = vld [vmem:[%s1 + $0x18] sm:$0xff]
  %v58 = vld [vmem:[%s1 + $0x20] sm:$0xf]
  %v59 = vld [vmem:[%s1 + $0x24] sm:$0xff]
  %v60 = vld [vmem:[%s1 + $0x2c] sm:$0xf]
  %v61 = vld [vmem:[%s1 + $0x30] sm:$0xff]
  %v62 = vld [vmem:[%s1 + $0x38] sm:$0xf]
  %v63 = vld [vmem:[%s1 + $0x3c] sm:$0xff]
  %v64 = vld [vmem:[%s1 + $0x44] sm:$0xf]
  %v65 = vld [vmem:[%s1 + $0x48] sm:$0xff]
  %v66 = vld [vmem:[%s1 + $0x50] sm:$0xf]
  %v67 = vld [vmem:[%s1 + $0x54] sm:$0xff]
  %v68 = vld [vmem:[%s1 + $0x5c] sm:$0xf]
  %v69 = vld [vmem:[%s1 + $0x60] sm:$0xff]
  %v70 = vld [vmem:[%s1 + $0x68] sm:$0xf]
  %v71 = vld [vmem:[%s1 + $0x6c] sm:$0xff]
  %v72 = vld [vmem:[%s1 + $0x74] sm:$0xf]
  %v73 = vld [vmem:[%s1 + $0x78] sm:$0xff]
  %v74 = vld [vmem:[%s1 + $0x80] sm:$0xf]
  %v75 = vld [vmem:[%s1 + $0x84] sm:$0xff]
  %v76 = vld [vmem:[%s1 + $0x8c] sm:$0xf]
  %v77 = vld [vmem:[%s1 + $0x90] sm:$0xff]
  %v78 = vld [vmem:[%s1 + $0x98] sm:$0xf]
  %v79 = vld [vmem:[%s1 + $0x9c] sm:$0xff]
  %v80 = vld [vmem:[%s1 + $0xa4] sm:$0xf]
  %v81 = vld [vmem:[%s1 + $0xa8] sm:$0xff]
  %v82 = vld [vmem:[%s1 + $0xb0] sm:$0xf]
  %v83 = vld [vmem:[%s1 + $0xb4] sm:$0xff]
  %v84 = vld [vmem:[%s1 + $0xbc] sm:$0xf]
  %v85 = vld [vmem:[%s2] sm:$0x7]
  %v87 = vlaneseq
  %v88 = vshrl.u32 %v87, 7
  %v89 = vsub.s32 0, %v88
  %v90 = vrot.slane %v85, %v89
  %v91 = vlaneseq
  %v92 = vshrl.u32 %v91, 7
  %v93 = vsub.s32 1, %v92
  %v94 = vrot.slane %v85, %v93
  %v95 = vlaneseq
  %v96 = vshrl.u32 %v95, 7
  %v97 = vsub.s32 2, %v96
  %v98 = vrot.slane %v85, %v97
  %v107 = vunpack.c.l.b16 %v48
  %v108 = vunpack.c.l.b16 %v49
  %v109 = vunpack.c.l.b16 %v50
  %v110 = vunpack.c.l.b16 %v51
  %v111 = vunpack.c.l.b16 %v52
  %v112 = vpack.c.b16 %v108, %v107
  %v113 = vpack.c.b16 %v110, %v109
  %v114 = vpack.c.b16 %v111, %v111
  %v150 = vunpack.c.l.b16 %v53
  %v151 = vunpack.c.h.b16 %v53
  %v152 = vunpack.c.l.b16 %v54
  %v153 = vunpack.c.l.b16 %v55
  %v154 = vunpack.c.h.b16 %v55
  %v155 = vunpack.c.l.b16 %v56
  %v156 = vunpack.c.l.b16 %v57
  %v157 = vunpack.c.h.b16 %v57
  %v158 = vunpack.c.l.b16 %v58
  %v159 = vunpack.c.l.b16 %v59
  %v160 = vunpack.c.h.b16 %v59
  %v161 = vunpack.c.l.b16 %v60
  %v162 = vunpack.c.l.b16 %v61
  %v163 = vunpack.c.h.b16 %v61
  %v164 = vunpack.c.l.b16 %v62
  %v165 = vunpack.c.l.b16 %v63
  %v166 = vunpack.c.h.b16 %v63
  %v167 = vunpack.c.l.b16 %v64
  %v168 = vunpack.c.l.b16 %v65
  %v169 = vunpack.c.h.b16 %v65
  %v170 = vunpack.c.l.b16 %v66
  %v171 = vunpack.c.l.b16 %v67
  %v172 = vunpack.c.h.b16 %v67
  %v173 = vunpack.c.l.b16 %v68
  %v174 = vunpack.c.l.b16 %v69
  %v175 = vunpack.c.h.b16 %v69
  %v176 = vunpack.c.l.b16 %v70
  %v177 = vunpack.c.l.b16 %v71
  %v178 = vunpack.c.h.b16 %v71
  %v179 = vunpack.c.l.b16 %v72
  %v180 = vunpack.c.l.b16 %v73
  %v181 = vunpack.c.h.b16 %v73
  %v182 = vunpack.c.l.b16 %v74
  %v183 = vunpack.c.l.b16 %v75
  %v184 = vunpack.c.h.b16 %v75
  %v185 = vunpack.c.l.b16 %v76
  %v186 = vunpack.c.l.b16 %v77
  %v187 = vunpack.c.h.b16 %v77
  %v188 = vunpack.c.l.b16 %v78
  %v189 = vunpack.c.l.b16 %v79
  %v190 = vunpack.c.h.b16 %v79
  %v191 = vunpack.c.l.b16 %v80
  %v192 = vunpack.c.l.b16 %v81
  %v193 = vunpack.c.h.b16 %v81
  %v194 = vunpack.c.l.b16 %v82
  %v195 = vunpack.c.l.b16 %v83
  %v196 = vunpack.c.h.b16 %v83
  %v197 = vunpack.c.l.b16 %v84
  %v198 = vpack.c.b16 %v153, %v150
  %v199 = vpack.c.b16 %v154, %v151
  %v200 = vpack.c.b16 %v155, %v152
  %v201 = vpack.c.b16 %v159, %v156
  %v202 = vpack.c.b16 %v160, %v157
  %v203 = vpack.c.b16 %v161, %v158
  %v204 = vpack.c.b16 %v165, %v162
  %v205 = vpack.c.b16 %v166, %v163
  %v206 = vpack.c.b16 %v167, %v164
  %v207 = vpack.c.b16 %v171, %v168
  %v208 = vpack.c.b16 %v172, %v169
  %v209 = vpack.c.b16 %v173, %v170
  %v210 = vpack.c.b16 %v177, %v174
  %v211 = vpack.c.b16 %v178, %v175
  %v212 = vpack.c.b16 %v179, %v176
  %v213 = vpack.c.b16 %v183, %v180
  %v214 = vpack.c.b16 %v184, %v181
  %v215 = vpack.c.b16 %v185, %v182
  %v216 = vpack.c.b16 %v189, %v186
  %v217 = vpack.c.b16 %v190, %v187
  %v218 = vpack.c.b16 %v191, %v188
  %v219 = vpack.c.b16 %v195, %v192
  %v220 = vpack.c.b16 %v196, %v193
  %v221 = vpack.c.b16 %v197, %v194
  %246 = vmatprep.subr.bf16.mxu0 %v220
  %247 = vmatpush1.bf16.msra.mxu0 %v219
  %248 = vmatprep.subr.bf16.mxu0 %v217
  %249 = vmatpush1.bf16.msra.mxu0 %v216
  %250 = vmatprep.subr.bf16.mxu0 %v214
  %251 = vmatpush1.bf16.msra.mxu0 %v213
  %252 = vmatprep.subr.bf16.mxu0 %v211
  %253 = vmatpush1.bf16.msra.mxu0 %v210
  %254 = vmatprep.subr.bf16.mxu0 %v208
  %255 = vmatpush1.bf16.msra.mxu0 %v207
  %256 = vmatprep.subr.bf16.mxu0 %v205
  %257 = vmatpush1.bf16.msra.mxu0 %v204
  %258 = vmatprep.subr.bf16.mxu0 %v202
  %259 = vmatpush1.bf16.msra.mxu0 %v201
  %260 = vmatprep.subr.bf16.mxu0 %v199
  %261 = vmatpush1.bf16.msra.mxu0 %v198
  %262 = vmatprep.subr.bf16.mxu0 0
  %263 = vmatpush2.bf16.msra.mxu0 0
  %264 = vmatprep.subr.bf16.mxu0 0
  %265 = vmatpush2.bf16.msra.mxu0 0
  %266 = vmatprep.subr.bf16.mxu0 0
  %267 = vmatpush2.bf16.msra.mxu0 0
  %268 = vmatprep.subr.bf16.mxu0 0
  %269 = vmatpush2.bf16.msra.mxu0 0
  %270 = vmatprep.subr.bf16.mxu0 0
  %271 = vmatpush2.bf16.msra.mxu0 0
  %272 = vmatprep.subr.bf16.mxu0 0
  %273 = vmatpush2.bf16.msra.mxu0 0
  %274 = vmatprep.subr.bf16.mxu0 0
  %275 = vmatpush2.bf16.msra.mxu0 0
  %276 = vmatprep.subr.bf16.mxu0 0
  %277 = vmatpush2.bf16.msra.mxu0 0
  %278 = vmatprep.mubr.bf16.mxu0 0
  %279 = vmatmul.mubr.bf16.gmra.mxu0 %v112
  %v280 = vpop.f32.mrf.mxu0
  %v281 = vadd.f32 %v90, %v280
  %v282 = vpop.f32.mrf.mxu0
  %v283 = vadd.f32 %v94, %v282
  %v284 = vpop.f32.mrf.mxu0
  %v285 = vadd.f32 %v90, %v284
  %v286 = vpop.f32.mrf.mxu0
  %v287 = vadd.f32 %v94, %v286
  %288 = vmatprep.mubr.bf16.mxu0 0
  %289 = vmatmul.mubr.bf16.gmra.mxu0 %v113
  %v290 = vpop.f32.mrf.mxu0
  %v291 = vadd.f32 %v90, %v290
  %v292 = vpop.f32.mrf.mxu0
  %v293 = vadd.f32 %v94, %v292
  %v294 = vpop.f32.mrf.mxu0
  %v295 = vadd.f32 %v90, %v294
  %v296 = vpop.f32.mrf.mxu0
  %v297 = vadd.f32 %v94, %v296
  %298 = vmatprep.mubr.bf16.mxu0 0
  %299 = vmatmul.mubr.bf16.gmra.mxu0 %v114
  %v300 = vpop.f32.mrf.mxu0
  %v301 = vadd.f32 %v90, %v300
  %v302 = vpop.f32.mrf.mxu0
  %v303 = vadd.f32 %v94, %v302
  %v304 = vpop.f32.mrf.mxu0
  %v305 = vpop.f32.mrf.mxu0
  %306 = vdwg.mxu0
  %307 = vmatprep.subr.bf16.mxu0 0
  %308 = vmatpush1.bf16.msra.mxu0 %v221
  %309 = vmatprep.subr.bf16.mxu0 0
  %310 = vmatpush1.bf16.msra.mxu0 %v218
  %311 = vmatprep.subr.bf16.mxu0 0
  %312 = vmatpush1.bf16.msra.mxu0 %v215
  %313 = vmatprep.subr.bf16.mxu0 0
  %314 = vmatpush1.bf16.msra.mxu0 %v212
  %315 = vmatprep.subr.bf16.mxu0 0
  %316 = vmatpush1.bf16.msra.mxu0 %v209
  %317 = vmatprep.subr.bf16.mxu0 0
  %318 = vmatpush1.bf16.msra.mxu0 %v206
  %319 = vmatprep.subr.bf16.mxu0 0
  %320 = vmatpush1.bf16.msra.mxu0 %v203
  %321 = vmatprep.subr.bf16.mxu0 0
  %322 = vmatpush1.bf16.msra.mxu0 %v200
  %323 = vmatprep.subr.bf16.mxu0 0
  %324 = vmatpush2.bf16.msra.mxu0 0
  %325 = vmatprep.subr.bf16.mxu0 0
  %326 = vmatpush2.bf16.msra.mxu0 0
  %327 = vmatprep.subr.bf16.mxu0 0
  %328 = vmatpush2.bf16.msra.mxu0 0
  %329 = vmatprep.subr.bf16.mxu0 0
  %330 = vmatpush2.bf16.msra.mxu0 0
  %331 = vmatprep.subr.bf16.mxu0 0
  %332 = vmatpush2.bf16.msra.mxu0 0
  %333 = vmatprep.subr.bf16.mxu0 0
  %334 = vmatpush2.bf16.msra.mxu0 0
  %335 = vmatprep.subr.bf16.mxu0 0
  %336 = vmatpush2.bf16.msra.mxu0 0
  %337 = vmatprep.subr.bf16.mxu0 0
  %338 = vmatpush2.bf16.msra.mxu0 0
  %339 = vmatprep.mubr.bf16.mxu0 0
  %340 = vmatmul.mubr.bf16.gmra.mxu0 %v112
  %v341 = vpop.f32.mrf.mxu0
  %v342 = vadd.f32 %v98, %v341
  %v343 = vpop.f32.mrf.mxu0
  %v344 = vpop.f32.mrf.mxu0
  %v345 = vadd.f32 %v98, %v344
  %v346 = vpop.f32.mrf.mxu0
  %347 = vmatprep.mubr.bf16.mxu0 0
  %348 = vmatmul.mubr.bf16.gmra.mxu0 %v113
  %v349 = vpop.f32.mrf.mxu0
  %v350 = vadd.f32 %v98, %v349
  %v351 = vpop.f32.mrf.mxu0
  %v352 = vpop.f32.mrf.mxu0
  %v353 = vadd.f32 %v98, %v352
  %v354 = vpop.f32.mrf.mxu0
  %355 = vmatprep.mubr.bf16.mxu0 0
  %356 = vmatmul.mubr.bf16.gmra.mxu0 %v114
  %v357 = vpop.f32.mrf.mxu0
  %v358 = vadd.f32 %v98, %v357
  %v359 = vpop.f32.mrf.mxu0
  %v360 = vpop.f32.mrf.mxu0
  %v361 = vpop.f32.mrf.mxu0
  %362 = vdwg.mxu0
  %363 = vst [vmem:[#allocation2] sm:$0xff] %v281
  %364 = vst [vmem:[#allocation2 + $0x8] sm:$0xff] %v283
  %365 = vst [vmem:[#allocation2 + $0x10] sm:$0xff] %v342
  %366 = vst [vmem:[#allocation2 + $0x18] sm:$0xff] %v285
  %367 = vst [vmem:[#allocation2 + $0x20] sm:$0xff] %v287
  %368 = vst [vmem:[#allocation2 + $0x28] sm:$0xff] %v345
  %369 = vst [vmem:[#allocation2 + $0x30] sm:$0xff] %v291
  %370 = vst [vmem:[#allocation2 + $0x38] sm:$0xff] %v293
  %371 = vst [vmem:[#allocation2 + $0x40] sm:$0xff] %v350
  %372 = vst [vmem:[#allocation2 + $0x48] sm:$0xff] %v295
  %373 = vst [vmem:[#allocation2 + $0x50] sm:$0xff] %v297
  %374 = vst [vmem:[#allocation2 + $0x58] sm:$0xff] %v353
  %375 = vst [vmem:[#allocation2 + $0x60] sm:$0xff] %v301
  %376 = vst [vmem:[#allocation2 + $0x68] sm:$0xff] %v303
  %377 = vst [vmem:[#allocation2 + $0x70] sm:$0xff] %v358
  %v378 = vld [vmem:[%s3] sm:$0xff]
  %v379 = vld [vmem:[%s3 + $0x8] sm:$0xf]
  %v380 = vld [vmem:[%s3 + $0xc] sm:$0xff]
  %v381 = vld [vmem:[%s3 + $0x14] sm:$0xf]
  %v382 = vld [vmem:[%s3 + $0x18] sm:$0xff]
  %v383 = vld [vmem:[%s3 + $0x20] sm:$0xf]
  %v384 = vld [vmem:[%s3 + $0x24] sm:$0xff]
  %v385 = vld [vmem:[%s3 + $0x2c] sm:$0xf]
  %v386 = vld [vmem:[%s3 + $0x30] sm:$0xff]
  %v387 = vld [vmem:[%s3 + $0x38] sm:$0xf]
  %v388 = vld [vmem:[%s3 + $0x3c] sm:$0xff]
  %v389 = vld [vmem:[%s3 + $0x44] sm:$0xf]
  %v390 = vld [vmem:[%s3 + $0x48] sm:$0xff]
  %v391 = vld [vmem:[%s3 + $0x50] sm:$0xf]
  %v392 = vld [vmem:[%s3 + $0x54] sm:$0xff]
  %v393 = vld [vmem:[%s3 + $0x5c] sm:$0xf]
  %v394 = vld [vmem:[%s3 + $0x60] sm:$0xff]
  %v395 = vld [vmem:[%s3 + $0x68] sm:$0xf]
  %v396 = vld [vmem:[%s3 + $0x6c] sm:$0xff]
  %v397 = vld [vmem:[%s3 + $0x74] sm:$0xf]
  %v398 = vld [vmem:[%s3 + $0x78] sm:$0xff]
  %v399 = vld [vmem:[%s3 + $0x80] sm:$0xf]
  %v400 = vld [vmem:[%s3 + $0x84] sm:$0xff]
  %v401 = vld [vmem:[%s3 + $0x8c] sm:$0xf]
  %v402 = vld [vmem:[%s3 + $0x90] sm:$0xff]
  %v403 = vld [vmem:[%s3 + $0x98] sm:$0xf]
  %v404 = vld [vmem:[%s3 + $0x9c] sm:$0xff]
  %v405 = vld [vmem:[%s3 + $0xa4] sm:$0xf]
  %v406 = vld [vmem:[%s3 + $0xa8] sm:$0xff]
  %v407 = vld [vmem:[%s3 + $0xb0] sm:$0xf]
  %v408 = vld [vmem:[%s3 + $0xb4] sm:$0xff]
  %v409 = vld [vmem:[%s3 + $0xbc] sm:$0xf]
  %v410 = vld [vmem:[%s4] sm:$0x7]
  %v411 = vld [vmem:[%s5] sm:$0x1]
  %v412 = vld [vmem:[%s6] sm:$0x1]
  %s413 = smul.u32 0, 3
  %s414 = smul.addr %s413, 8
  %s415 = scalar_lea.vmem [#allocation2], %s414
  %v416 = vld [vmem:[%s415] sm:$0xff]
  %v417 = vld [vmem:[%s415 + $0x8] sm:$0xff]
  %v418 = vld [vmem:[%s415 + $0x10] sm:$0xff]
  %v420 = vlaneseq
  %v421 = vshrl.u32 %v420, 7
  %v422 = vsub.s32 0, %v421
  %v423 = vrot.slane %v410, %v422
  %v424 = vlaneseq
  %v425 = vshrl.u32 %v424, 7
  %v426 = vsub.s32 1, %v425
  %v427 = vrot.slane %v410, %v426
  %v428 = vlaneseq
  %v429 = vshrl.u32 %v428, 7
  %v430 = vsub.s32 2, %v429
  %v431 = vrot.slane %v410, %v430
  %v467 = vunpack.c.l.b16 %v378
  %v468 = vunpack.c.h.b16 %v378
  %v469 = vunpack.c.l.b16 %v379
  %v470 = vunpack.c.l.b16 %v380
  %v471 = vunpack.c.h.b16 %v380
  %v472 = vunpack.c.l.b16 %v381
  %v473 = vunpack.c.l.b16 %v382
  %v474 = vunpack.c.h.b16 %v382
  %v475 = vunpack.c.l.b16 %v383
  %v476 = vunpack.c.l.b16 %v384
  %v477 = vunpack.c.h.b16 %v384
  %v478 = vunpack.c.l.b16 %v385
  %v479 = vunpack.c.l.b16 %v386
  %v480 = vunpack.c.h.b16 %v386
  %v481 = vunpack.c.l.b16 %v387
  %v482 = vunpack.c.l.b16 %v388
  %v483 = vunpack.c.h.b16 %v388
  %v484 = vunpack.c.l.b16 %v389
  %v485 = vunpack.c.l.b16 %v390
  %v486 = vunpack.c.h.b16 %v390
  %v487 = vunpack.c.l.b16 %v391
  %v488 = vunpack.c.l.b16 %v392
  %v489 = vunpack.c.h.b16 %v392
  %v490 = vunpack.c.l.b16 %v393
  %v491 = vunpack.c.l.b16 %v394
  %v492 = vunpack.c.h.b16 %v394
  %v493 = vunpack.c.l.b16 %v395
  %v494 = vunpack.c.l.b16 %v396
  %v495 = vunpack.c.h.b16 %v396
  %v496 = vunpack.c.l.b16 %v397
  %v497 = vunpack.c.l.b16 %v398
  %v498 = vunpack.c.h.b16 %v398
  %v499 = vunpack.c.l.b16 %v399
  %v500 = vunpack.c.l.b16 %v400
  %v501 = vunpack.c.h.b16 %v400
  %v502 = vunpack.c.l.b16 %v401
  %v503 = vunpack.c.l.b16 %v402
  %v504 = vunpack.c.h.b16 %v402
  %v505 = vunpack.c.l.b16 %v403
  %v506 = vunpack.c.l.b16 %v404
  %v507 = vunpack.c.h.b16 %v404
  %v508 = vunpack.c.l.b16 %v405
  %v509 = vunpack.c.l.b16 %v406
  %v510 = vunpack.c.h.b16 %v406
  %v511 = vunpack.c.l.b16 %v407
  %v512 = vunpack.c.l.b16 %v408
  %v513 = vunpack.c.h.b16 %v408
  %v514 = vunpack.c.l.b16 %v409
  %v515 = vpack.c.b16 %v470, %v467
  %v516 = vpack.c.b16 %v471, %v468
  %v517 = vpack.c.b16 %v472, %v469
  %v518 = vpack.c.b16 %v476, %v473
  %v519 = vpack.c.b16 %v477, %v474
  %v520 = vpack.c.b16 %v478, %v475
  %v521 = vpack.c.b16 %v482, %v479
  %v522 = vpack.c.b16 %v483, %v480
  %v523 = vpack.c.b16 %v484, %v481
  %v524 = vpack.c.b16 %v488, %v485
  %v525 = vpack.c.b16 %v489, %v486
  %v526 = vpack.c.b16 %v490, %v487
  %v527 = vpack.c.b16 %v494, %v491
  %v528 = vpack.c.b16 %v495, %v492
  %v529 = vpack.c.b16 %v496, %v493
  %v530 = vpack.c.b16 %v500, %v497
  %v531 = vpack.c.b16 %v501, %v498
  %v532 = vpack.c.b16 %v502, %v499
  %v533 = vpack.c.b16 %v506, %v503
  %v534 = vpack.c.b16 %v507, %v504
  %v535 = vpack.c.b16 %v508, %v505
  %v536 = vpack.c.b16 %v512, %v509
  %v537 = vpack.c.b16 %v513, %v510
  %v538 = vpack.c.b16 %v514, %v511
  %563 = vmatprep.subr.bf16.mxu0 %v537
  %564 = vmatpush1.bf16.msra.mxu0 %v536
  %565 = vmatprep.subr.bf16.mxu0 %v534
  %566 = vmatpush1.bf16.msra.mxu0 %v533
  %567 = vmatprep.subr.bf16.mxu0 %v531
  %568 = vmatpush1.bf16.msra.mxu0 %v530
  %569 = vmatprep.subr.bf16.mxu0 %v528
  %570 = vmatpush1.bf16.msra.mxu0 %v527
  %571 = vmatprep.subr.bf16.mxu0 %v525
  %572 = vmatpush1.bf16.msra.mxu0 %v524
  %573 = vmatprep.subr.bf16.mxu0 %v522
  %574 = vmatpush1.bf16.msra.mxu0 %v521
  %575 = vmatprep.subr.bf16.mxu0 %v519
  %576 = vmatpush1.bf16.msra.mxu0 %v518
  %577 = vmatprep.subr.bf16.mxu0 %v516
  %578 = vmatpush1.bf16.msra.mxu0 %v515
  %579 = vmatprep.subr.bf16.mxu0 0
  %580 = vmatpush2.bf16.msra.mxu0 0
  %581 = vmatprep.subr.bf16.mxu0 0
  %582 = vmatpush2.bf16.msra.mxu0 0
  %583 = vmatprep.subr.bf16.mxu0 0
  %584 = vmatpush2.bf16.msra.mxu0 0
  %585 = vmatprep.subr.bf16.mxu0 0
  %586 = vmatpush2.bf16.msra.mxu0 0
  %587 = vmatprep.subr.bf16.mxu0 0
  %588 = vmatpush2.bf16.msra.mxu0 0
  %589 = vmatprep.subr.bf16.mxu0 0
  %590 = vmatpush2.bf16.msra.mxu0 0
  %591 = vmatprep.subr.bf16.mxu0 0
  %592 = vmatpush2.bf16.msra.mxu0 0
  %593 = vmatprep.subr.bf16.mxu0 0
  %594 = vmatpush2.bf16.msra.mxu0 0
  %595 = vmatprep.mubr.bf16.mxu0 0
  %596 = vmatmul.mubr.bf16.gmra.mxu0 0
  %v597 = vpop.f32.mrf.mxu0
  %v598 = vadd.f32 %v423, %v597
  %v599 = vpop.f32.mrf.mxu0
  %v600 = vadd.f32 %v427, %v599
  %v601 = vpop.f32.mrf.mxu0
  %v602 = vpop.f32.mrf.mxu0
  %603 = vdwg.mxu0
  %604 = vmatprep.subr.bf16.mxu0 0
  %605 = vmatpush1.bf16.msra.mxu0 %v538
  %606 = vmatprep.subr.bf16.mxu0 0
  %607 = vmatpush1.bf16.msra.mxu0 %v535
  %608 = vmatprep.subr.bf16.mxu0 0
  %609 = vmatpush1.bf16.msra.mxu0 %v532
  %610 = vmatprep.subr.bf16.mxu0 0
  %611 = vmatpush1.bf16.msra.mxu0 %v529
  %612 = vmatprep.subr.bf16.mxu0 0
  %613 = vmatpush1.bf16.msra.mxu0 %v526
  %614 = vmatprep.subr.bf16.mxu0 0
  %615 = vmatpush1.bf16.msra.mxu0 %v523
  %616 = vmatprep.subr.bf16.mxu0 0
  %617 = vmatpush1.bf16.msra.mxu0 %v520
  %618 = vmatprep.subr.bf16.mxu0 0
  %619 = vmatpush1.bf16.msra.mxu0 %v517
  %620 = vmatprep.subr.bf16.mxu0 0
  %621 = vmatpush2.bf16.msra.mxu0 0
  %622 = vmatprep.subr.bf16.mxu0 0
  %623 = vmatpush2.bf16.msra.mxu0 0
  %624 = vmatprep.subr.bf16.mxu0 0
  %625 = vmatpush2.bf16.msra.mxu0 0
  %626 = vmatprep.subr.bf16.mxu0 0
  %627 = vmatpush2.bf16.msra.mxu0 0
  %628 = vmatprep.subr.bf16.mxu0 0
  %629 = vmatpush2.bf16.msra.mxu0 0
  %630 = vmatprep.subr.bf16.mxu0 0
  %631 = vmatpush2.bf16.msra.mxu0 0
  %632 = vmatprep.subr.bf16.mxu0 0
  %633 = vmatpush2.bf16.msra.mxu0 0
  %634 = vmatprep.subr.bf16.mxu0 0
  %635 = vmatpush2.bf16.msra.mxu0 0
  %636 = vmatprep.mubr.bf16.mxu0 0
  %637 = vmatmul.mubr.bf16.gmra.mxu0 0
  %v638 = vpop.f32.mrf.mxu0
  %v639 = vadd.f32 %v431, %v638
  %v640 = vpop.f32.mrf.mxu0
  %v641 = vpop.f32.mrf.mxu0
  %v642 = vpop.f32.mrf.mxu0
  %643 = vdwg.mxu0
  %v644 = vadd.f32 %v416, %v598
  %v645 = vxor.u32 %v644, 2147483648
  %v646 = vmul.f32 %v645, 1.442695
  %v647 = vpow.pop %v646
  %v648 = vadd.f32 %v647, 1.0
  %v649 = vrcp.pop %v648
  %v650 = vmul.f32 1.0, %v649
  %v651 = vadd.f32 %v417, %v600
  %v652 = vxor.u32 %v651, 2147483648
  %v653 = vmul.f32 %v652, 1.442695
  %v654 = vpow.pop %v653
  %v655 = vadd.f32 %v654, 1.0
  %v656 = vrcp.pop %v655
  %v657 = vmul.f32 1.0, %v656
  %v658 = vmul.f32 %v650, %v639
  %v659 = vadd.f32 %v418, %v658
  %v660 = vtanh.pop %v659
  %v661 = vsub.f32 1.0, %v657
  %v662 = vmul.f32 %v661, %v660
  %v663 = vmul.f32 %v657, 0.0
  %v664 = vadd.f32 %v662, %v663
  %665 = vst [vmem:[%s13] sm:$0xff] %v664
  %666 = vadd.xlane.f32.xlu0 %v664
  %v667 = vpop.xlane.xlu0 %666
  %v668 = vrcp.pop 128.0
  %v669 = vmul.f32 %v667, %v668
  %v670 = vmul.f32 %v664, %v664
  %671 = vadd.xlane.f32.xlu0 %v670
  %v672 = vpop.xlane.xlu0 %671
  %v673 = vmul.f32 %v672, %v668
  %v674 = vmul.f32 %v669, %v669
  %v675 = vsub.f32 %v673, %v674
  %v676 = vsub.f32 %v664, %v669
  %v677 = vadd.f32 %v675, 1e-05
  %v678 = vrsqrt.pop %v677
  %v679 = vmul.f32 %v676, %v678
  %v681 = vlaneseq
  %v682 = vshrl.u32 %v681, 7
  %v683 = vsub.s32 0, %v682
  %v684 = vrot.slane %v411, %v683
  %v686 = vmul.f32 %v679, %v684
  %v688 = vlaneseq
  %v689 = vshrl.u32 %v688, 7
  %v690 = vsub.s32 0, %v689
  %v691 = vrot.slane %v412, %v690
  %v693 = vadd.f32 %v686, %v691
  %v694 = vmax.f32 %v693, 0.0
  %695 = vst [vmem:[#allocation3] sm:$0xff] %v694
  %s696 = smul.u32 1, 3
  %s697 = smul.addr %s696, 8
  %s698 = scalar_lea.vmem [#allocation2], %s697
  %v699 = vld [vmem:[%s698] sm:$0xff]
  %v700 = vld [vmem:[%s698 + $0x8] sm:$0xff]
  %v701 = vld [vmem:[%s698 + $0x10] sm:$0xff]
  %v702 = vpack.c.bf16 %v664, %v664
  %703 = vmatprep.subr.bf16.mxu0 %v537
  %704 = vmatpush1.bf16.msra.mxu0 %v536
  %705 = vmatprep.subr.bf16.mxu0 %v534
  %706 = vmatpush1.bf16.msra.mxu0 %v533
  %707 = vmatprep.subr.bf16.mxu0 %v531
  %708 = vmatpush1.bf16.msra.mxu0 %v530
  %709 = vmatprep.subr.bf16.mxu0 %v528
  %710 = vmatpush1.bf16.msra.mxu0 %v527
  %711 = vmatprep.subr.bf16.mxu0 %v525
  %712 = vmatpush1.bf16.msra.mxu0 %v524
  %713 = vmatprep.subr.bf16.mxu0 %v522
  %714 = vmatpush1.bf16.msra.mxu0 %v521
  %715 = vmatprep.subr.bf16.mxu0 %v519
  %716 = vmatpush1.bf16.msra.mxu0 %v518
  %717 = vmatprep.subr.bf16.mxu0 %v516
  %718 = vmatpush1.bf16.msra.mxu0 %v515
  %719 = vmatprep.subr.bf16.mxu0 0
  %720 = vmatpush2.bf16.msra.mxu0 0
  %721 = vmatprep.subr.bf16.mxu0 0
  %722 = vmatpush2.bf16.msra.mxu0 0
  %723 = vmatprep.subr.bf16.mxu0 0
  %724 = vmatpush2.bf16.msra.mxu0 0
  %725 = vmatprep.subr.bf16.mxu0 0
  %726 = vmatpush2.bf16.msra.mxu0 0
  %727 = vmatprep.subr.bf16.mxu0 0
  %728 = vmatpush2.bf16.msra.mxu0 0
  %729 = vmatprep.subr.bf16.mxu0 0
  %730 = vmatpush2.bf16.msra.mxu0 0
  %731 = vmatprep.subr.bf16.mxu0 0
  %732 = vmatpush2.bf16.msra.mxu0 0
  %733 = vmatprep.subr.bf16.mxu0 0
  %734 = vmatpush2.bf16.msra.mxu0 0
  %735 = vmatprep.mubr.bf16.mxu0 0
  %736 = vmatmul.mubr.bf16.gmra.mxu0 %v702
  %v737 = vpop.f32.mrf.mxu0
  %v738 = vadd.f32 %v423, %v737
  %v739 = vpop.f32.mrf.mxu0
  %v740 = vadd.f32 %v427, %v739
  %v741 = vpop.f32.mrf.mxu0
  %v742 = vpop.f32.mrf.mxu0
  %743 = vdwg.mxu0
  %744 = vmatprep.subr.bf16.mxu0 0
  %745 = vmatpush1.bf16.msra.mxu0 %v538
  %746 = vmatprep.subr.bf16.mxu0 0
  %747 = vmatpush1.bf16.msra.mxu0 %v535
  %748 = vmatprep.subr.bf16.mxu0 0
  %749 = vmatpush1.bf16.msra.mxu0 %v532
  %750 = vmatprep.subr.bf16.mxu0 0
  %751 = vmatpush1.bf16.msra.mxu0 %v529
  %752 = vmatprep.subr.bf16.mxu0 0
  %753 = vmatpush1.bf16.msra.mxu0 %v526
  %754 = vmatprep.subr.bf16.mxu0 0
  %755 = vmatpush1.bf16.msra.mxu0 %v523
  %756 = vmatprep.subr.bf16.mxu0 0
  %757 = vmatpush1.bf16.msra.mxu0 %v520
  %758 = vmatprep.subr.bf16.mxu0 0
  %759 = vmatpush1.bf16.msra.mxu0 %v517
  %760 = vmatprep.subr.bf16.mxu0 0
  %761 = vmatpush2.bf16.msra.mxu0 0
  %762 = vmatprep.subr.bf16.mxu0 0
  %763 = vmatpush2.bf16.msra.mxu0 0
  %764 = vmatprep.subr.bf16.mxu0 0
  %765 = vmatpush2.bf16.msra.mxu0 0
  %766 = vmatprep.subr.bf16.mxu0 0
  %767 = vmatpush2.bf16.msra.mxu0 0
  %768 = vmatprep.subr.bf16.mxu0 0
  %769 = vmatpush2.bf16.msra.mxu0 0
  %770 = vmatprep.subr.bf16.mxu0 0
  %771 = vmatpush2.bf16.msra.mxu0 0
  %772 = vmatprep.subr.bf16.mxu0 0
  %773 = vmatpush2.bf16.msra.mxu0 0
  %774 = vmatprep.subr.bf16.mxu0 0
  %775 = vmatpush2.bf16.msra.mxu0 0
  %776 = vmatprep.mubr.bf16.mxu0 0
  %777 = vmatmul.mubr.bf16.gmra.mxu0 %v702
  %v778 = vpop.f32.mrf.mxu0
  %v779 = vadd.f32 %v431, %v778
  %v780 = vpop.f32.mrf.mxu0
  %v781 = vpop.f32.mrf.mxu0
  %v782 = vpop.f32.mrf.mxu0
  %783 = vdwg.mxu0
  %v784 = vadd.f32 %v699, %v738
  %v785 = vxor.u32 %v784, 2147483648
  %v786 = vmul.f32 %v785, 1.442695
  %v787 = vpow.pop %v786
  %v788 = vadd.f32 %v787, 1.0
  %v789 = vrcp.pop %v788
  %v790 = vmul.f32 1.0, %v789
  %v791 = vadd.f32 %v700, %v740
  %v792 = vxor.u32 %v791, 2147483648
  %v793 = vmul.f32 %v792, 1.442695
  %v794 = vpow.pop %v793
  %v795 = vadd.f32 %v794, 1.0
  %v796 = vrcp.pop %v795
  %v797 = vmul.f32 1.0, %v796
  %v798 = vmul.f32 %v790, %v779
  %v799 = vadd.f32 %v701, %v798
  %v800 = vtanh.pop %v799
  %v801 = vsub.f32 1.0, %v797
  %v802 = vmul.f32 %v801, %v800
  %v803 = vmul.f32 %v797, %v664
  %v804 = vadd.f32 %v802, %v803
  %s805 = scalar_lea.vmem %s13, 8
  %806 = vst [vmem:[%s805] sm:$0xff] %v804
  %807 = vadd.xlane.f32.xlu0 %v804
  %v808 = vpop.xlane.xlu0 %807
  %v809 = vmul.f32 %v808, %v668
  %v810 = vmul.f32 %v804, %v804
  %811 = vadd.xlane.f32.xlu0 %v810
  %v812 = vpop.xlane.xlu0 %811
  %v813 = vmul.f32 %v812, %v668
  %v814 = vmul.f32 %v809, %v809
  %v815 = vsub.f32 %v813, %v814
  %v816 = vsub.f32 %v804, %v809
  %v817 = vadd.f32 %v815, 1e-05
  %v818 = vrsqrt.pop %v817
  %v819 = vmul.f32 %v816, %v818
  %v820 = vmul.f32 %v819, %v684
  %v821 = vadd.f32 %v820, %v691
  %v822 = vmax.f32 %v821, 0.0
  %s823 = scalar_lea.vmem [#allocation3], 8
  %824 = vst [vmem:[%s823] sm:$0xff] %v822
  %s825 = smul.u32 2, 3
  %s826 = smul.addr %s825, 8
  %s827 = scalar_lea.vmem [#allocation2], %s826
  %v828 = vld [vmem:[%s827] sm:$0xff]
  %v829 = vld [vmem:[%s827 + $0x8] sm:$0xff]
  %v830 = vld [vmem:[%s827 + $0x10] sm:$0xff]
  %v831 = vpack.c.bf16 %v804, %v804
  %832 = vmatprep.subr.bf16.mxu0 %v537
  %833 = vmatpush1.bf16.msra.mxu0 %v536
  %834 = vmatprep.subr.bf16.mxu0 %v534
  %835 = vmatpush1.bf16.msra.mxu0 %v533
  %836 = vmatprep.subr.bf16.mxu0 %v531
  %837 = vmatpush1.bf16.msra.mxu0 %v530
  %838 = vmatprep.subr.bf16.mxu0 %v528
  %839 = vmatpush1.bf16.msra.mxu0 %v527
  %840 = vmatprep.subr.bf16.mxu0 %v525
  %841 = vmatpush1.bf16.msra.mxu0 %v524
  %842 = vmatprep.subr.bf16.mxu0 %v522
  %843 = vmatpush1.bf16.msra.mxu0 %v521
  %844 = vmatprep.subr.bf16.mxu0 %v519
  %845 = vmatpush1.bf16.msra.mxu0 %v518
  %846 = vmatprep.subr.bf16.mxu0 %v516
  %847 = vmatpush1.bf16.msra.mxu0 %v515
  %848 = vmatprep.subr.bf16.mxu0 0
  %849 = vmatpush2.bf16.msra.mxu0 0
  %850 = vmatprep.subr.bf16.mxu0 0
  %851 = vmatpush2.bf16.msra.mxu0 0
  %852 = vmatprep.subr.bf16.mxu0 0
  %853 = vmatpush2.bf16.msra.mxu0 0
  %854 = vmatprep.subr.bf16.mxu0 0
  %855 = vmatpush2.bf16.msra.mxu0 0
  %856 = vmatprep.subr.bf16.mxu0 0
  %857 = vmatpush2.bf16.msra.mxu0 0
  %858 = vmatprep.subr.bf16.mxu0 0
  %859 = vmatpush2.bf16.msra.mxu0 0
  %860 = vmatprep.subr.bf16.mxu0 0
  %861 = vmatpush2.bf16.msra.mxu0 0
  %862 = vmatprep.subr.bf16.mxu0 0
  %863 = vmatpush2.bf16.msra.mxu0 0
  %864 = vmatprep.mubr.bf16.mxu0 0
  %865 = vmatmul.mubr.bf16.gmra.mxu0 %v831
  %v866 = vpop.f32.mrf.mxu0
  %v867 = vadd.f32 %v423, %v866
  %v868 = vpop.f32.mrf.mxu0
  %v869 = vadd.f32 %v427, %v868
  %v870 = vpop.f32.mrf.mxu0
  %v871 = vpop.f32.mrf.mxu0
  %872 = vdwg.mxu0
  %873 = vmatprep.subr.bf16.mxu0 0
  %874 = vmatpush1.bf16.msra.mxu0 %v538
  %875 = vmatprep.subr.bf16.mxu0 0
  %876 = vmatpush1.bf16.msra.mxu0 %v535
  %877 = vmatprep.subr.bf16.mxu0 0
  %878 = vmatpush1.bf16.msra.mxu0 %v532
  %879 = vmatprep.subr.bf16.mxu0 0
  %880 = vmatpush1.bf16.msra.mxu0 %v529
  %881 = vmatprep.subr.bf16.mxu0 0
  %882 = vmatpush1.bf16.msra.mxu0 %v526
  %883 = vmatprep.subr.bf16.mxu0 0
  %884 = vmatpush1.bf16.msra.mxu0 %v523
  %885 = vmatprep.subr.bf16.mxu0 0
  %886 = vmatpush1.bf16.msra.mxu0 %v520
  %887 = vmatprep.subr.bf16.mxu0 0
  %888 = vmatpush1.bf16.msra.mxu0 %v517
  %889 = vmatprep.subr.bf16.mxu0 0
  %890 = vmatpush2.bf16.msra.mxu0 0
  %891 = vmatprep.subr.bf16.mxu0 0
  %892 = vmatpush2.bf16.msra.mxu0 0
  %893 = vmatprep.subr.bf16.mxu0 0
  %894 = vmatpush2.bf16.msra.mxu0 0
  %895 = vmatprep.subr.bf16.mxu0 0
  %896 = vmatpush2.bf16.msra.mxu0 0
  %897 = vmatprep.subr.bf16.mxu0 0
  %898 = vmatpush2.bf16.msra.mxu0 0
  %899 = vmatprep.subr.bf16.mxu0 0
  %900 = vmatpush2.bf16.msra.mxu0 0
  %901 = vmatprep.subr.bf16.mxu0 0
  %902 = vmatpush2.bf16.msra.mxu0 0
  %903 = vmatprep.subr.bf16.mxu0 0
  %904 = vmatpush2.bf16.msra.mxu0 0
  %905 = vmatprep.mubr.bf16.mxu0 0
  %906 = vmatmul.mubr.bf16.gmra.mxu0 %v831
  %v907 = vpop.f32.mrf.mxu0
  %v908 = vadd.f32 %v431, %v907
  %v909 = vpop.f32.mrf.mxu0
  %v910 = vpop.f32.mrf.mxu0
  %v911 = vpop.f32.mrf.mxu0
  %912 = vdwg.mxu0
  %v913 = vadd.f32 %v828, %v867
  %v914 = vxor.u32 %v913, 2147483648
  %v915 = vmul.f32 %v914, 1.442695
  %v916 = vpow.pop %v915
  %v917 = vadd.f32 %v916, 1.0
  %v918 = vrcp.pop %v917
  %v919 = vmul.f32 1.0, %v918
  %v920 = vadd.f32 %v829, %v869
  %v921 = vxor.u32 %v920, 2147483648
  %v922 = vmul.f32 %v921, 1.442695
  %v923 = vpow.pop %v922
  %v924 = vadd.f32 %v923, 1.0
  %v925 = vrcp.pop %v924
  %v926 = vmul.f32 1.0, %v925
  %v927 = vmul.f32 %v919, %v908
  %v928 = vadd.f32 %v830, %v927
  %v929 = vtanh.pop %v928
  %v930 = vsub.f32 1.0, %v926
  %v931 = vmul.f32 %v930, %v929
  %v932 = vmul.f32 %v926, %v804
  %v933 = vadd.f32 %v931, %v932
  %s934 = scalar_lea.vmem %s13, 16
  %935 = vst [vmem:[%s934] sm:$0xff] %v933
  %936 = vadd.xlane.f32.xlu0 %v933
  %v937 = vpop.xlane.xlu0 %936
  %v938 = vmul.f32 %v937, %v668
  %v939 = vmul.f32 %v933, %v933
  %940 = vadd.xlane.f32.xlu0 %v939
  %v941 = vpop.xlane.xlu0 %940
  %v942 = vmul.f32 %v941, %v668
  %v943 = vmul.f32 %v938, %v938
  %v944 = vsub.f32 %v942, %v943
  %v945 = vsub.f32 %v933, %v938
  %v946 = vadd.f32 %v944, 1e-05
  %v947 = vrsqrt.pop %v946
  %v948 = vmul.f32 %v945, %v947
  %v949 = vmul.f32 %v948, %v684
  %v950 = vadd.f32 %v949, %v691
  %v951 = vmax.f32 %v950, 0.0
  %s952 = scalar_lea.vmem [#allocation3], 16
  %953 = vst [vmem:[%s952] sm:$0xff] %v951
  %s954 = smul.u32 3, 3
  %s955 = smul.addr %s954, 8
  %s956 = scalar_lea.vmem [#allocation2], %s955
  %v957 = vld [vmem:[%s956] sm:$0xff]
  %v958 = vld [vmem:[%s956 + $0x8] sm:$0xff]
  %v959 = vld [vmem:[%s956 + $0x10] sm:$0xff]
  %v960 = vpack.c.bf16 %v933, %v933
  %961 = vmatprep.subr.bf16.mxu0 %v537
  %962 = vmatpush1.bf16.msra.mxu0 %v536
  %963 = vmatprep.subr.bf16.mxu0 %v534
  %964 = vmatpush1.bf16.msra.mxu0 %v533
  %965 = vmatprep.subr.bf16.mxu0 %v531
  %966 = vmatpush1.bf16.msra.mxu0 %v530
  %967 = vmatprep.subr.bf16.mxu0 %v528
  %968 = vmatpush1.bf16.msra.mxu0 %v527
  %969 = vmatprep.subr.bf16.mxu0 %v525
  %970 = vmatpush1.bf16.msra.mxu0 %v524
  %971 = vmatprep.subr.bf16.mxu0 %v522
  %972 = vmatpush1.bf16.msra.mxu0 %v521
  %973 = vmatprep.subr.bf16.mxu0 %v519
  %974 = vmatpush1.bf16.msra.mxu0 %v518
  %975 = vmatprep.subr.bf16.mxu0 %v516
  %976 = vmatpush1.bf16.msra.mxu0 %v515
  %977 = vmatprep.subr.bf16.mxu0 0
  %978 = vmatpush2.bf16.msra.mxu0 0
  %979 = vmatprep.subr.bf16.mxu0 0
  %980 = vmatpush2.bf16.msra.mxu0 0
  %981 = vmatprep.subr.bf16.mxu0 0
  %982 = vmatpush2.bf16.msra.mxu0 0
  %983 = vmatprep.subr.bf16.mxu0 0
  %984 = vmatpush2.bf16.msra.mxu0 0
  %985 = vmatprep.subr.bf16.mxu0 0
  %986 = vmatpush2.bf16.msra.mxu0 0
  %987 = vmatprep.subr.bf16.mxu0 0
  %988 = vmatpush2.bf16.msra.mxu0 0
  %989 = vmatprep.subr.bf16.mxu0 0
  %990 = vmatpush2.bf16.msra.mxu0 0
  %991 = vmatprep.subr.bf16.mxu0 0
  %992 = vmatpush2.bf16.msra.mxu0 0
  %993 = vmatprep.mubr.bf16.mxu0 0
  %994 = vmatmul.mubr.bf16.gmra.mxu0 %v960
  %v995 = vpop.f32.mrf.mxu0
  %v996 = vadd.f32 %v423, %v995
  %v997 = vpop.f32.mrf.mxu0
  %v998 = vadd.f32 %v427, %v997
  %v999 = vpop.f32.mrf.mxu0
  %v1000 = vpop.f32.mrf.mxu0
  %1001 = vdwg.mxu0
  %1002 = vmatprep.subr.bf16.mxu0 0
  %1003 = vmatpush1.bf16.msra.mxu0 %v538
  %1004 = vmatprep.subr.bf16.mxu0 0
  %1005 = vmatpush1.bf16.msra.mxu0 %v535
  %1006 = vmatprep.subr.bf16.mxu0 0
  %1007 = vmatpush1.bf16.msra.mxu0 %v532
  %1008 = vmatprep.subr.bf16.mxu0 0
  %1009 = vmatpush1.bf16.msra.mxu0 %v529
  %1010 = vmatprep.subr.bf16.mxu0 0
  %1011 = vmatpush1.bf16.msra.mxu0 %v526
  %1012 = vmatprep.subr.bf16.mxu0 0
  %1013 = vmatpush1.bf16.msra.mxu0 %v523
  %1014 = vmatprep.subr.bf16.mxu0 0
  %1015 = vmatpush1.bf16.msra.mxu0 %v520
  %1016 = vmatprep.subr.bf16.mxu0 0
  %1017 = vmatpush1.bf16.msra.mxu0 %v517
  %1018 = vmatprep.subr.bf16.mxu0 0
  %1019 = vmatpush2.bf16.msra.mxu0 0
  %1020 = vmatprep.subr.bf16.mxu0 0
  %1021 = vmatpush2.bf16.msra.mxu0 0
  %1022 = vmatprep.subr.bf16.mxu0 0
  %1023 = vmatpush2.bf16.msra.mxu0 0
  %1024 = vmatprep.subr.bf16.mxu0 0
  %1025 = vmatpush2.bf16.msra.mxu0 0
  %1026 = vmatprep.subr.bf16.mxu0 0
  %1027 = vmatpush2.bf16.msra.mxu0 0
  %1028 = vmatprep.subr.bf16.mxu0 0
  %1029 = vmatpush2.bf16.msra.mxu0 0
  %1030 = vmatprep.subr.bf16.mxu0 0
  %1031 = vmatpush2.bf16.msra.mxu0 0
  %1032 = vmatprep.subr.bf16.mxu0 0
  %1033 = vmatpush2.bf16.msra.mxu0 0
  %1034 = vmatprep.mubr.bf16.mxu0 0
  %1035 = vmatmul.mubr.bf16.gmra.mxu0 %v960
  %v1036 = vpop.f32.mrf.mxu0
  %v1037 = vadd.f32 %v431, %v1036
  %v1038 = vpop.f32.mrf.mxu0
  %v1039 = vpop.f32.mrf.mxu0
  %v1040 = vpop.f32.mrf.mxu0
  %1041 = vdwg.mxu0
  %v1042 = vadd.f32 %v957, %v996
  %v1043 = vxor.u32 %v1042, 2147483648
  %v1044 = vmul.f32 %v1043, 1.442695
  %v1045 = vpow.pop %v1044
  %v1046 = vadd.f32 %v1045, 1.0
  %v1047 = vrcp.pop %v1046
  %v1048 = vmul.f32 1.0, %v1047
  %v1049 = vadd.f32 %v958, %v998
  %v1050 = vxor.u32 %v1049, 2147483648
  %v1051 = vmul.f32 %v1050, 1.442695
  %v1052 = vpow.pop %v1051
  %v1053 = vadd.f32 %v1052, 1.0
  %v1054 = vrcp.pop %v1053
  %v1055 = vmul.f32 1.0, %v1054
  %v1056 = vmul.f32 %v1048, %v1037
  %v1057 = vadd.f32 %v959, %v1056
  %v1058 = vtanh.pop %v1057
  %v1059 = vsub.f32 1.0, %v1055
  %v1060 = vmul.f32 %v1059, %v1058
  %v1061 = vmul.f32 %v1055, %v933
  %v1062 = vadd.f32 %v1060, %v1061
  %s1063 = scalar_lea.vmem %s13, 24
  %1064 = vst [vmem:[%s1063] sm:$0xff] %v1062
  %1065 = vadd.xlane.f32.xlu0 %v1062
  %v1066 = vpop.xlane.xlu0 %1065
  %v1067 = vmul.f32 %v1066, %v668
  %v1068 = vmul.f32 %v1062, %v1062
  %1069 = vadd.xlane.f32.xlu0 %v1068
  %v1070 = vpop.xlane.xlu0 %1069
  %v1071 = vmul.f32 %v1070, %v668
  %v1072 = vmul.f32 %v1067, %v1067
  %v1073 = vsub.f32 %v1071, %v1072
  %v1074 = vsub.f32 %v1062, %v1067
  %v1075 = vadd.f32 %v1073, 1e-05
  %v1076 = vrsqrt.pop %v1075
  %v1077 = vmul.f32 %v1074, %v1076
  %v1078 = vmul.f32 %v1077, %v684
  %v1079 = vadd.f32 %v1078, %v691
  %v1080 = vmax.f32 %v1079, 0.0
  %s1081 = scalar_lea.vmem [#allocation3], 24
  %1082 = vst [vmem:[%s1081] sm:$0xff] %v1080
  %s1083 = smul.u32 4, 3
  %s1084 = smul.addr %s1083, 8
  %s1085 = scalar_lea.vmem [#allocation2], %s1084
  %v1086 = vld [vmem:[%s1085] sm:$0xff]
  %v1087 = vld [vmem:[%s1085 + $0x8] sm:$0xff]
  %v1088 = vld [vmem:[%s1085 + $0x10] sm:$0xff]
  %v1089 = vpack.c.bf16 %v1062, %v1062
  %1090 = vmatprep.subr.bf16.mxu0 %v537
  %1091 = vmatpush1.bf16.msra.mxu0 %v536
  %1092 = vmatprep.subr.bf16.mxu0 %v534
  %1093 = vmatpush1.bf16.msra.mxu0 %v533
  %1094 = vmatprep.subr.bf16.mxu0 %v531
  %1095 = vmatpush1.bf16.msra.mxu0 %v530
  %1096 = vmatprep.subr.bf16.mxu0 %v528
  %1097 = vmatpush1.bf16.msra.mxu0 %v527
  %1098 = vmatprep.subr.bf16.mxu0 %v525
  %1099 = vmatpush1.bf16.msra.mxu0 %v524
  %1100 = vmatprep.subr.bf16.mxu0 %v522
  %1101 = vmatpush1.bf16.msra.mxu0 %v521
  %1102 = vmatprep.subr.bf16.mxu0 %v519
  %1103 = vmatpush1.bf16.msra.mxu0 %v518
  %1104 = vmatprep.subr.bf16.mxu0 %v516
  %1105 = vmatpush1.bf16.msra.mxu0 %v515
  %1106 = vmatprep.subr.bf16.mxu0 0
  %1107 = vmatpush2.bf16.msra.mxu0 0
  %1108 = vmatprep.subr.bf16.mxu0 0
  %1109 = vmatpush2.bf16.msra.mxu0 0
  %1110 = vmatprep.subr.bf16.mxu0 0
  %1111 = vmatpush2.bf16.msra.mxu0 0
  %1112 = vmatprep.subr.bf16.mxu0 0
  %1113 = vmatpush2.bf16.msra.mxu0 0
  %1114 = vmatprep.subr.bf16.mxu0 0
  %1115 = vmatpush2.bf16.msra.mxu0 0
  %1116 = vmatprep.subr.bf16.mxu0 0
  %1117 = vmatpush2.bf16.msra.mxu0 0
  %1118 = vmatprep.subr.bf16.mxu0 0
  %1119 = vmatpush2.bf16.msra.mxu0 0
  %1120 = vmatprep.subr.bf16.mxu0 0
  %1121 = vmatpush2.bf16.msra.mxu0 0
  %1122 = vmatprep.mubr.bf16.mxu0 0
  %1123 = vmatmul.mubr.bf16.gmra.mxu0 %v1089
  %v1124 = vpop.f32.mrf.mxu0
  %v1125 = vadd.f32 %v423, %v1124
  %v1126 = vpop.f32.mrf.mxu0
  %v1127 = vadd.f32 %v427, %v1126
  %v1128 = vpop.f32.mrf.mxu0
  %v1129 = vpop.f32.mrf.mxu0
  %1130 = vdwg.mxu0
  %1131 = vmatprep.subr.bf16.mxu0 0
  %1132 = vmatpush1.bf16.msra.mxu0 %v538
  %1133 = vmatprep.subr.bf16.mxu0 0
  %1134 = vmatpush1.bf16.msra.mxu0 %v535
  %1135 = vmatprep.subr.bf16.mxu0 0
  %1136 = vmatpush1.bf16.msra.mxu0 %v532
  %1137 = vmatprep.subr.bf16.mxu0 0
  %1138 = vmatpush1.bf16.msra.mxu0 %v529
  %1139 = vmatprep.subr.bf16.mxu0 0
  %1140 = vmatpush1.bf16.msra.mxu0 %v526
  %1141 = vmatprep.subr.bf16.mxu0 0
  %1142 = vmatpush1.bf16.msra.mxu0 %v523
  %1143 = vmatprep.subr.bf16.mxu0 0
  %1144 = vmatpush1.bf16.msra.mxu0 %v520
  %1145 = vmatprep.subr.bf16.mxu0 0
  %1146 = vmatpush1.bf16.msra.mxu0 %v517
  %1147 = vmatprep.subr.bf16.mxu0 0
  %1148 = vmatpush2.bf16.msra.mxu0 0
  %1149 = vmatprep.subr.bf16.mxu0 0
  %1150 = vmatpush2.bf16.msra.mxu0 0
  %1151 = vmatprep.subr.bf16.mxu0 0
  %1152 = vmatpush2.bf16.msra.mxu0 0
  %1153 = vmatprep.subr.bf16.mxu0 0
  %1154 = vmatpush2.bf16.msra.mxu0 0
  %1155 = vmatprep.subr.bf16.mxu0 0
  %1156 = vmatpush2.bf16.msra.mxu0 0
  %1157 = vmatprep.subr.bf16.mxu0 0
  %1158 = vmatpush2.bf16.msra.mxu0 0
  %1159 = vmatprep.subr.bf16.mxu0 0
  %1160 = vmatpush2.bf16.msra.mxu0 0
  %1161 = vmatprep.subr.bf16.mxu0 0
  %1162 = vmatpush2.bf16.msra.mxu0 0
  %1163 = vmatprep.mubr.bf16.mxu0 0
  %1164 = vmatmul.mubr.bf16.gmra.mxu0 %v1089
  %v1165 = vpop.f32.mrf.mxu0
  %v1166 = vadd.f32 %v431, %v1165
  %v1167 = vpop.f32.mrf.mxu0
  %v1168 = vpop.f32.mrf.mxu0
  %v1169 = vpop.f32.mrf.mxu0
  %1170 = vdwg.mxu0
  %v1171 = vadd.f32 %v1086, %v1125
  %v1172 = vxor.u32 %v1171, 2147483648
  %v1173 = vmul.f32 %v1172, 1.442695
  %v1174 = vpow.pop %v1173
  %v1175 = vadd.f32 %v1174, 1.0
  %v1176 = vrcp.pop %v1175
  %v1177 = vmul.f32 1.0, %v1176
  %v1178 = vadd.f32 %v1087, %v1127
  %v1179 = vxor.u32 %v1178, 2147483648
  %v1180 = vmul.f32 %v1179, 1.442695
  %v1181 = vpow.pop %v1180
  %v1182 = vadd.f32 %v1181, 1.0
  %v1183 = vrcp.pop %v1182
  %v1184 = vmul.f32 1.0, %v1183
  %v1185 = vmul.f32 %v1177, %v1166
  %v1186 = vadd.f32 %v1088, %v1185
  %v1187 = vtanh.pop %v1186
  %v1188 = vsub.f32 1.0, %v1184
  %v1189 = vmul.f32 %v1188, %v1187
  %v1190 = vmul.f32 %v1184, %v1062
  %v1191 = vadd.f32 %v1189, %v1190
  %s1192 = scalar_lea.vmem %s13, 32
  %1193 = vst [vmem:[%s1192] sm:$0xff] %v1191
  %1194 = vadd.xlane.f32.xlu0 %v1191
  %v1195 = vpop.xlane.xlu0 %1194
  %v1196 = vmul.f32 %v1195, %v668
  %v1197 = vmul.f32 %v1191, %v1191
  %1198 = vadd.xlane.f32.xlu0 %v1197
  %v1199 = vpop.xlane.xlu0 %1198
  %v1200 = vmul.f32 %v1199, %v668
  %v1201 = vmul.f32 %v1196, %v1196
  %v1202 = vsub.f32 %v1200, %v1201
  %v1203 = vsub.f32 %v1191, %v1196
  %v1204 = vadd.f32 %v1202, 1e-05
  %v1205 = vrsqrt.pop %v1204
  %v1206 = vmul.f32 %v1203, %v1205
  %v1207 = vmul.f32 %v1206, %v684
  %v1208 = vadd.f32 %v1207, %v691
  %v1209 = vmax.f32 %v1208, 0.0
  %s1210 = scalar_lea.vmem [#allocation3], 32
  %1211 = vst [vmem:[%s1210] sm:$0xff] %v1209
  %v1212 = vld [vmem:[#allocation3] sm:$0xff]
  %v1213 = vld [vmem:[#allocation3 + $0x8] sm:$0xff]
  %v1214 = vld [vmem:[#allocation3 + $0x10] sm:$0xff]
  %v1215 = vld [vmem:[#allocation3 + $0x18] sm:$0xff]
  %v1216 = vld [vmem:[#allocation3 + $0x20] sm:$0xff]
  %v1217 = vpack.c.bf16 %v1213, %v1212
  %v1218 = vpack.c.bf16 %v1215, %v1214
  %v1219 = vpack.c.bf16 %v1216, %v1216
  %v1220 = vld [vmem:[%s7] sm:$0xff]
  %v1221 = vld [vmem:[%s7 + $0x8] sm:$0xf]
  %v1222 = vld [vmem:[%s7 + $0xc] sm:$0xff]
  %v1223 = vld [vmem:[%s7 + $0x14] sm:$0xf]
  %v1224 = vld [vmem:[%s7 + $0x18] sm:$0xff]
  %v1225 = vld [vmem:[%s7 + $0x20] sm:$0xf]
  %v1226 = vld [vmem:[%s7 + $0x24] sm:$0xff]
  %v1227 = vld [vmem:[%s7 + $0x2c] sm:$0xf]
  %v1228 = vld [vmem:[%s7 + $0x30] sm:$0xff]
  %v1229 = vld [vmem:[%s7 + $0x38] sm:$0xf]
  %v1230 = vld [vmem:[%s7 + $0x3c] sm:$0xff]
  %v1231 = vld [vmem:[%s7 + $0x44] sm:$0xf]
  %v1232 = vld [vmem:[%s7 + $0x48] sm:$0xff]
  %v1233 = vld [vmem:[%s7 + $0x50] sm:$0xf]
  %v1234 = vld [vmem:[%s7 + $0x54] sm:$0xff]
  %v1235 = vld [vmem:[%s7 + $0x5c] sm:$0xf]
  %v1236 = vld [vmem:[%s7 + $0x60] sm:$0xff]
  %v1237 = vld [vmem:[%s7 + $0x68] sm:$0xf]
  %v1238 = vld [vmem:[%s7 + $0x6c] sm:$0xff]
  %v1239 = vld [vmem:[%s7 + $0x74] sm:$0xf]
  %v1240 = vld [vmem:[%s7 + $0x78] sm:$0xff]
  %v1241 = vld [vmem:[%s7 + $0x80] sm:$0xf]
  %v1242 = vld [vmem:[%s7 + $0x84] sm:$0xff]
  %v1243 = vld [vmem:[%s7 + $0x8c] sm:$0xf]
  %v1244 = vld [vmem:[%s7 + $0x90] sm:$0xff]
  %v1245 = vld [vmem:[%s7 + $0x98] sm:$0xf]
  %v1246 = vld [vmem:[%s7 + $0x9c] sm:$0xff]
  %v1247 = vld [vmem:[%s7 + $0xa4] sm:$0xf]
  %v1248 = vld [vmem:[%s7 + $0xa8] sm:$0xff]
  %v1249 = vld [vmem:[%s7 + $0xb0] sm:$0xf]
  %v1250 = vld [vmem:[%s7 + $0xb4] sm:$0xff]
  %v1251 = vld [vmem:[%s7 + $0xbc] sm:$0xf]
  %v1252 = vld [vmem:[%s8] sm:$0x7]
  %v1254 = vlaneseq
  %v1255 = vshrl.u32 %v1254, 7
  %v1256 = vsub.s32 0, %v1255
  %v1257 = vrot.slane %v1252, %v1256
  %v1258 = vlaneseq
  %v1259 = vshrl.u32 %v1258, 7
  %v1260 = vsub.s32 1, %v1259
  %v1261 = vrot.slane %v1252, %v1260
  %v1262 = vlaneseq
  %v1263 = vshrl.u32 %v1262, 7
  %v1264 = vsub.s32 2, %v1263
  %v1265 = vrot.slane %v1252, %v1264
  %v1301 = vunpack.c.l.b16 %v1220
  %v1302 = vunpack.c.h.b16 %v1220
  %v1303 = vunpack.c.l.b16 %v1221
  %v1304 = vunpack.c.l.b16 %v1222
  %v1305 = vunpack.c.h.b16 %v1222
  %v1306 = vunpack.c.l.b16 %v1223
  %v1307 = vunpack.c.l.b16 %v1224
  %v1308 = vunpack.c.h.b16 %v1224
  %v1309 = vunpack.c.l.b16 %v1225
  %v1310 = vunpack.c.l.b16 %v1226
  %v1311 = vunpack.c.h.b16 %v1226
  %v1312 = vunpack.c.l.b16 %v1227
  %v1313 = vunpack.c.l.b16 %v1228
  %v1314 = vunpack.c.h.b16 %v1228
  %v1315 = vunpack.c.l.b16 %v1229
  %v1316 = vunpack.c.l.b16 %v1230
  %v1317 = vunpack.c.h.b16 %v1230
  %v1318 = vunpack.c.l.b16 %v1231
  %v1319 = vunpack.c.l.b16 %v1232
  %v1320 = vunpack.c.h.b16 %v1232
  %v1321 = vunpack.c.l.b16 %v1233
  %v1322 = vunpack.c.l.b16 %v1234
  %v1323 = vunpack.c.h.b16 %v1234
  %v1324 = vunpack.c.l.b16 %v1235
  %v1325 = vunpack.c.l.b16 %v1236
  %v1326 = vunpack.c.h.b16 %v1236
  %v1327 = vunpack.c.l.b16 %v1237
  %v1328 = vunpack.c.l.b16 %v1238
  %v1329 = vunpack.c.h.b16 %v1238
  %v1330 = vunpack.c.l.b16 %v1239
  %v1331 = vunpack.c.l.b16 %v1240
  %v1332 = vunpack.c.h.b16 %v1240
  %v1333 = vunpack.c.l.b16 %v1241
  %v1334 = vunpack.c.l.b16 %v1242
  %v1335 = vunpack.c.h.b16 %v1242
  %v1336 = vunpack.c.l.b16 %v1243
  %v1337 = vunpack.c.l.b16 %v1244
  %v1338 = vunpack.c.h.b16 %v1244
  %v1339 = vunpack.c.l.b16 %v1245
  %v1340 = vunpack.c.l.b16 %v1246
  %v1341 = vunpack.c.h.b16 %v1246
  %v1342 = vunpack.c.l.b16 %v1247
  %v1343 = vunpack.c.l.b16 %v1248
  %v1344 = vunpack.c.h.b16 %v1248
  %v1345 = vunpack.c.l.b16 %v1249
  %v1346 = vunpack.c.l.b16 %v1250
  %v1347 = vunpack.c.h.b16 %v1250
  %v1348 = vunpack.c.l.b16 %v1251
  %v1349 = vpack.c.b16 %v1304, %v1301
  %v1350 = vpack.c.b16 %v1305, %v1302
  %v1351 = vpack.c.b16 %v1306, %v1303
  %v1352 = vpack.c.b16 %v1310, %v1307
  %v1353 = vpack.c.b16 %v1311, %v1308
  %v1354 = vpack.c.b16 %v1312, %v1309
  %v1355 = vpack.c.b16 %v1316, %v1313
  %v1356 = vpack.c.b16 %v1317, %v1314
  %v1357 = vpack.c.b16 %v1318, %v1315
  %v1358 = vpack.c.b16 %v1322, %v1319
  %v1359 = vpack.c.b16 %v1323, %v1320
  %v1360 = vpack.c.b16 %v1324, %v1321
  %v1361 = vpack.c.b16 %v1328, %v1325
  %v1362 = vpack.c.b16 %v1329, %v1326
  %v1363 = vpack.c.b16 %v1330, %v1327
  %v1364 = vpack.c.b16 %v1334, %v1331
  %v1365 = vpack.c.b16 %v1335, %v1332
  %v1366 = vpack.c.b16 %v1336, %v1333
  %v1367 = vpack.c.b16 %v1340, %v1337
  %v1368 = vpack.c.b16 %v1341, %v1338
  %v1369 = vpack.c.b16 %v1342, %v1339
  %v1370 = vpack.c.b16 %v1346, %v1343
  %v1371 = vpack.c.b16 %v1347, %v1344
  %v1372 = vpack.c.b16 %v1348, %v1345
  %1397 = vmatprep.subr.bf16.mxu0 %v1371
  %1398 = vmatpush1.bf16.msra.mxu0 %v1370
  %1399 = vmatprep.subr.bf16.mxu0 %v1368
  %1400 = vmatpush1.bf16.msra.mxu0 %v1367
  %1401 = vmatprep.subr.bf16.mxu0 %v1365
  %1402 = vmatpush1.bf16.msra.mxu0 %v1364
  %1403 = vmatprep.subr.bf16.mxu0 %v1362
  %1404 = vmatpush1.bf16.msra.mxu0 %v1361
  %1405 = vmatprep.subr.bf16.mxu0 %v1359
  %1406 = vmatpush1.bf16.msra.mxu0 %v1358
  %1407 = vmatprep.subr.bf16.mxu0 %v1356
  %1408 = vmatpush1.bf16.msra.mxu0 %v1355
  %1409 = vmatprep.subr.bf16.mxu0 %v1353
  %1410 = vmatpush1.bf16.msra.mxu0 %v1352
  %1411 = vmatprep.subr.bf16.mxu0 %v1350
  %1412 = vmatpush1.bf16.msra.mxu0 %v1349
  %1413 = vmatprep.subr.bf16.mxu0 0
  %1414 = vmatpush2.bf16.msra.mxu0 0
  %1415 = vmatprep.subr.bf16.mxu0 0
  %1416 = vmatpush2.bf16.msra.mxu0 0
  %1417 = vmatprep.subr.bf16.mxu0 0
  %1418 = vmatpush2.bf16.msra.mxu0 0
  %1419 = vmatprep.subr.bf16.mxu0 0
  %1420 = vmatpush2.bf16.msra.mxu0 0
  %1421 = vmatprep.subr.bf16.mxu0 0
  %1422 = vmatpush2.bf16.msra.mxu0 0
  %1423 = vmatprep.subr.bf16.mxu0 0
  %1424 = vmatpush2.bf16.msra.mxu0 0
  %1425 = vmatprep.subr.bf16.mxu0 0
  %1426 = vmatpush2.bf16.msra.mxu0 0
  %1427 = vmatprep.subr.bf16.mxu0 0
  %1428 = vmatpush2.bf16.msra.mxu0 0
  %1429 = vmatprep.mubr.bf16.mxu0 0
  %1430 = vmatmul.mubr.bf16.gmra.mxu0 %v1217
  %v1431 = vpop.f32.mrf.mxu0
  %v1432 = vadd.f32 %v1257, %v1431
  %v1433 = vpop.f32.mrf.mxu0
  %v1434 = vadd.f32 %v1261, %v1433
  %v1435 = vpop.f32.mrf.mxu0
  %v1436 = vadd.f32 %v1257, %v1435
  %v1437 = vpop.f32.mrf.mxu0
  %v1438 = vadd.f32 %v1261, %v1437
  %1439 = vmatprep.mubr.bf16.mxu0 0
  %1440 = vmatmul.mubr.bf16.gmra.mxu0 %v1218
  %v1441 = vpop.f32.mrf.mxu0
  %v1442 = vadd.f32 %v1257, %v1441
  %v1443 = vpop.f32.mrf.mxu0
  %v1444 = vadd.f32 %v1261, %v1443
  %v1445 = vpop.f32.mrf.mxu0
  %v1446 = vadd.f32 %v1257, %v1445
  %v1447 = vpop.f32.mrf.mxu0
  %v1448 = vadd.f32 %v1261, %v1447
  %1449 = vmatprep.mubr.bf16.mxu0 0
  %1450 = vmatmul.mubr.bf16.gmra.mxu0 %v1219
  %v1451 = vpop.f32.mrf.mxu0
  %v1452 = vadd.f32 %v1257, %v1451
  %v1453 = vpop.f32.mrf.mxu0
  %v1454 = vadd.f32 %v1261, %v1453
  %v1455 = vpop.f32.mrf.mxu0
  %v1456 = vpop.f32.mrf.mxu0
  %1457 = vdwg.mxu0
  %1458 = vmatprep.subr.bf16.mxu0 0
  %1459 = vmatpush1.bf16.msra.mxu0 %v1372
  %1460 = vmatprep.subr.bf16.mxu0 0
  %1461 = vmatpush1.bf16.msra.mxu0 %v1369
  %1462 = vmatprep.subr.bf16.mxu0 0
  %1463 = vmatpush1.bf16.msra.mxu0 %v1366
  %1464 = vmatprep.subr.bf16.mxu0 0
  %1465 = vmatpush1.bf16.msra.mxu0 %v1363
  %1466 = vmatprep.subr.bf16.mxu0 0
  %1467 = vmatpush1.bf16.msra.mxu0 %v1360
  %1468 = vmatprep.subr.bf16.mxu0 0
  %1469 = vmatpush1.bf16.msra.mxu0 %v1357
  %1470 = vmatprep.subr.bf16.mxu0 0
  %1471 = vmatpush1.bf16.msra.mxu0 %v1354
  %1472 = vmatprep.subr.bf16.mxu0 0
  %1473 = vmatpush1.bf16.msra.mxu0 %v1351
  %1474 = vmatprep.subr.bf16.mxu0 0
  %1475 = vmatpush2.bf16.msra.mxu0 0
  %1476 = vmatprep.subr.bf16.mxu0 0
  %1477 = vmatpush2.bf16.msra.mxu0 0
  %1478 = vmatprep.subr.bf16.mxu0 0
  %1479 = vmatpush2.bf16.msra.mxu0 0
  %1480 = vmatprep.subr.bf16.mxu0 0
  %1481 = vmatpush2.bf16.msra.mxu0 0
  %1482 = vmatprep.subr.bf16.mxu0 0
  %1483 = vmatpush2.bf16.msra.mxu0 0
  %1484 = vmatprep.subr.bf16.mxu0 0
  %1485 = vmatpush2.bf16.msra.mxu0 0
  %1486 = vmatprep.subr.bf16.mxu0 0
  %1487 = vmatpush2.bf16.msra.mxu0 0
  %1488 = vmatprep.subr.bf16.mxu0 0
  %1489 = vmatpush2.bf16.msra.mxu0 0
  %1490 = vmatprep.mubr.bf16.mxu0 0
  %1491 = vmatmul.mubr.bf16.gmra.mxu0 %v1217
  %v1492 = vpop.f32.mrf.mxu0
  %v1493 = vadd.f32 %v1265, %v1492
  %v1494 = vpop.f32.mrf.mxu0
  %v1495 = vpop.f32.mrf.mxu0
  %v1496 = vadd.f32 %v1265, %v1495
  %v1497 = vpop.f32.mrf.mxu0
  %1498 = vmatprep.mubr.bf16.mxu0 0
  %1499 = vmatmul.mubr.bf16.gmra.mxu0 %v1218
  %v1500 = vpop.f32.mrf.mxu0
  %v1501 = vadd.f32 %v1265, %v1500
  %v1502 = vpop.f32.mrf.mxu0
  %v1503 = vpop.f32.mrf.mxu0
  %v1504 = vadd.f32 %v1265, %v1503
  %v1505 = vpop.f32.mrf.mxu0
  %1506 = vmatprep.mubr.bf16.mxu0 0
  %1507 = vmatmul.mubr.bf16.gmra.mxu0 %v1219
  %v1508 = vpop.f32.mrf.mxu0
  %v1509 = vadd.f32 %v1265, %v1508
  %v1510 = vpop.f32.mrf.mxu0
  %v1511 = vpop.f32.mrf.mxu0
  %v1512 = vpop.f32.mrf.mxu0
  %1513 = vdwg.mxu0
  %1514 = vst [vmem:[#allocation2] sm:$0xff] %v1432
  %1515 = vst [vmem:[#allocation2 + $0x8] sm:$0xff] %v1434
  %1516 = vst [vmem:[#allocation2 + $0x10] sm:$0xff] %v1493
  %1517 = vst [vmem:[#allocation2 + $0x18] sm:$0xff] %v1436
  %1518 = vst [vmem:[#allocation2 + $0x20] sm:$0xff] %v1438
  %1519 = vst [vmem:[#allocation2 + $0x28] sm:$0xff] %v1496
  %1520 = vst [vmem:[#allocation2 + $0x30] sm:$0xff] %v1442
  %1521 = vst [vmem:[#allocation2 + $0x38] sm:$0xff] %v1444
  %1522 = vst [vmem:[#allocation2 + $0x40] sm:$0xff] %v1501
  %1523 = vst [vmem:[#allocation2 + $0x48] sm:$0xff] %v1446
  %1524 = vst [vmem:[#allocation2 + $0x50] sm:$0xff] %v1448
  %1525 = vst [vmem:[#allocation2 + $0x58] sm:$0xff] %v1504
  %1526 = vst [vmem:[#allocation2 + $0x60] sm:$0xff] %v1452
  %1527 = vst [vmem:[#allocation2 + $0x68] sm:$0xff] %v1454
  %1528 = vst [vmem:[#allocation2 + $0x70] sm:$0xff] %v1509
  %v1529 = vld [vmem:[%s9] sm:$0xff]
  %v1530 = vld [vmem:[%s9 + $0x8] sm:$0xf]
  %v1531 = vld [vmem:[%s9 + $0xc] sm:$0xff]
  %v1532 = vld [vmem:[%s9 + $0x14] sm:$0xf]
  %v1533 = vld [vmem:[%s9 + $0x18] sm:$0xff]
  %v1534 = vld [vmem:[%s9 + $0x20] sm:$0xf]
  %v1535 = vld [vmem:[%s9 + $0x24] sm:$0xff]
  %v1536 = vld [vmem:[%s9 + $0x2c] sm:$0xf]
  %v1537 = vld [vmem:[%s9 + $0x30] sm:$0xff]
  %v1538 = vld [vmem:[%s9 + $0x38] sm:$0xf]
  %v1539 = vld [vmem:[%s9 + $0x3c] sm:$0xff]
  %v1540 = vld [vmem:[%s9 + $0x44] sm:$0xf]
  %v1541 = vld [vmem:[%s9 + $0x48] sm:$0xff]
  %v1542 = vld [vmem:[%s9 + $0x50] sm:$0xf]
  %v1543 = vld [vmem:[%s9 + $0x54] sm:$0xff]
  %v1544 = vld [vmem:[%s9 + $0x5c] sm:$0xf]
  %v1545 = vld [vmem:[%s9 + $0x60] sm:$0xff]
  %v1546 = vld [vmem:[%s9 + $0x68] sm:$0xf]
  %v1547 = vld [vmem:[%s9 + $0x6c] sm:$0xff]
  %v1548 = vld [vmem:[%s9 + $0x74] sm:$0xf]
  %v1549 = vld [vmem:[%s9 + $0x78] sm:$0xff]
  %v1550 = vld [vmem:[%s9 + $0x80] sm:$0xf]
  %v1551 = vld [vmem:[%s9 + $0x84] sm:$0xff]
  %v1552 = vld [vmem:[%s9 + $0x8c] sm:$0xf]
  %v1553 = vld [vmem:[%s9 + $0x90] sm:$0xff]
  %v1554 = vld [vmem:[%s9 + $0x98] sm:$0xf]
  %v1555 = vld [vmem:[%s9 + $0x9c] sm:$0xff]
  %v1556 = vld [vmem:[%s9 + $0xa4] sm:$0xf]
  %v1557 = vld [vmem:[%s9 + $0xa8] sm:$0xff]
  %v1558 = vld [vmem:[%s9 + $0xb0] sm:$0xf]
  %v1559 = vld [vmem:[%s9 + $0xb4] sm:$0xff]
  %v1560 = vld [vmem:[%s9 + $0xbc] sm:$0xf]
  %v1561 = vld [vmem:[%s10] sm:$0x7]
  %v1562 = vld [vmem:[%s11] sm:$0x1]
  %v1563 = vld [vmem:[%s12] sm:$0x1]
  %v1564 = vld [vmem:[%s415] sm:$0xff]
  %v1565 = vld [vmem:[%s415 + $0x8] sm:$0xff]
  %v1566 = vld [vmem:[%s415 + $0x10] sm:$0xff]
  %v1568 = vlaneseq
  %v1569 = vshrl.u32 %v1568, 7
  %v1570 = vsub.s32 0, %v1569
  %v1571 = vrot.slane %v1561, %v1570
  %v1572 = vlaneseq
  %v1573 = vshrl.u32 %v1572, 7
  %v1574 = vsub.s32 1, %v1573
  %v1575 = vrot.slane %v1561, %v1574
  %v1576 = vlaneseq
  %v1577 = vshrl.u32 %v1576, 7
  %v1578 = vsub.s32 2, %v1577
  %v1579 = vrot.slane %v1561, %v1578
  %v1615 = vunpack.c.l.b16 %v1529
  %v1616 = vunpack.c.h.b16 %v1529
  %v1617 = vunpack.c.l.b16 %v1530
  %v1618 = vunpack.c.l.b16 %v1531
  %v1619 = vunpack.c.h.b16 %v1531
  %v1620 = vunpack.c.l.b16 %v1532
  %v1621 = vunpack.c.l.b16 %v1533
  %v1622 = vunpack.c.h.b16 %v1533
  %v1623 = vunpack.c.l.b16 %v1534
  %v1624 = vunpack.c.l.b16 %v1535
  %v1625 = vunpack.c.h.b16 %v1535
  %v1626 = vunpack.c.l.b16 %v1536
  %v1627 = vunpack.c.l.b16 %v1537
  %v1628 = vunpack.c.h.b16 %v1537
  %v1629 = vunpack.c.l.b16 %v1538
  %v1630 = vunpack.c.l.b16 %v1539
  %v1631 = vunpack.c.h.b16 %v1539
  %v1632 = vunpack.c.l.b16 %v1540
  %v1633 = vunpack.c.l.b16 %v1541
  %v1634 = vunpack.c.h.b16 %v1541
  %v1635 = vunpack.c.l.b16 %v1542
  %v1636 = vunpack.c.l.b16 %v1543
  %v1637 = vunpack.c.h.b16 %v1543
  %v1638 = vunpack.c.l.b16 %v1544
  %v1639 = vunpack.c.l.b16 %v1545
  %v1640 = vunpack.c.h.b16 %v1545
  %v1641 = vunpack.c.l.b16 %v1546
  %v1642 = vunpack.c.l.b16 %v1547
  %v1643 = vunpack.c.h.b16 %v1547
  %v1644 = vunpack.c.l.b16 %v1548
  %v1645 = vunpack.c.l.b16 %v1549
  %v1646 = vunpack.c.h.b16 %v1549
  %v1647 = vunpack.c.l.b16 %v1550
  %v1648 = vunpack.c.l.b16 %v1551
  %v1649 = vunpack.c.h.b16 %v1551
  %v1650 = vunpack.c.l.b16 %v1552
  %v1651 = vunpack.c.l.b16 %v1553
  %v1652 = vunpack.c.h.b16 %v1553
  %v1653 = vunpack.c.l.b16 %v1554
  %v1654 = vunpack.c.l.b16 %v1555
  %v1655 = vunpack.c.h.b16 %v1555
  %v1656 = vunpack.c.l.b16 %v1556
  %v1657 = vunpack.c.l.b16 %v1557
  %v1658 = vunpack.c.h.b16 %v1557
  %v1659 = vunpack.c.l.b16 %v1558
  %v1660 = vunpack.c.l.b16 %v1559
  %v1661 = vunpack.c.h.b16 %v1559
  %v1662 = vunpack.c.l.b16 %v1560
  %v1663 = vpack.c.b16 %v1618, %v1615
  %v1664 = vpack.c.b16 %v1619, %v1616
  %v1665 = vpack.c.b16 %v1620, %v1617
  %v1666 = vpack.c.b16 %v1624, %v1621
  %v1667 = vpack.c.b16 %v1625, %v1622
  %v1668 = vpack.c.b16 %v1626, %v1623
  %v1669 = vpack.c.b16 %v1630, %v1627
  %v1670 = vpack.c.b16 %v1631, %v1628
  %v1671 = vpack.c.b16 %v1632, %v1629
  %v1672 = vpack.c.b16 %v1636, %v1633
  %v1673 = vpack.c.b16 %v1637, %v1634
  %v1674 = vpack.c.b16 %v1638, %v1635
  %v1675 = vpack.c.b16 %v1642, %v1639
  %v1676 = vpack.c.b16 %v1643, %v1640
  %v1677 = vpack.c.b16 %v1644, %v1641
  %v1678 = vpack.c.b16 %v1648, %v1645
  %v1679 = vpack.c.b16 %v1649, %v1646
  %v1680 = vpack.c.b16 %v1650, %v1647
  %v1681 = vpack.c.b16 %v1654, %v1651
  %v1682 = vpack.c.b16 %v1655, %v1652
  %v1683 = vpack.c.b16 %v1656, %v1653
  %v1684 = vpack.c.b16 %v1660, %v1657
  %v1685 = vpack.c.b16 %v1661, %v1658
  %v1686 = vpack.c.b16 %v1662, %v1659
  %1711 = vmatprep.subr.bf16.mxu0 %v1685
  %1712 = vmatpush1.bf16.msra.mxu0 %v1684
  %1713 = vmatprep.subr.bf16.mxu0 %v1682
  %1714 = vmatpush1.bf16.msra.mxu0 %v1681
  %1715 = vmatprep.subr.bf16.mxu0 %v1679
  %1716 = vmatpush1.bf16.msra.mxu0 %v1678
  %1717 = vmatprep.subr.bf16.mxu0 %v1676
  %1718 = vmatpush1.bf16.msra.mxu0 %v1675
  %1719 = vmatprep.subr.bf16.mxu0 %v1673
  %1720 = vmatpush1.bf16.msra.mxu0 %v1672
  %1721 = vmatprep.subr.bf16.mxu0 %v1670
  %1722 = vmatpush1.bf16.msra.mxu0 %v1669
  %1723 = vmatprep.subr.bf16.mxu0 %v1667
  %1724 = vmatpush1.bf16.msra.mxu0 %v1666
  %1725 = vmatprep.subr.bf16.mxu0 %v1664
  %1726 = vmatpush1.bf16.msra.mxu0 %v1663
  %1727 = vmatprep.subr.bf16.mxu0 0
  %1728 = vmatpush2.bf16.msra.mxu0 0
  %1729 = vmatprep.subr.bf16.mxu0 0
  %1730 = vmatpush2.bf16.msra.mxu0 0
  %1731 = vmatprep.subr.bf16.mxu0 0
  %1732 = vmatpush2.bf16.msra.mxu0 0
  %1733 = vmatprep.subr.bf16.mxu0 0
  %1734 = vmatpush2.bf16.msra.mxu0 0
  %1735 = vmatprep.subr.bf16.mxu0 0
  %1736 = vmatpush2.bf16.msra.mxu0 0
  %1737 = vmatprep.subr.bf16.mxu0 0
  %1738 = vmatpush2.bf16.msra.mxu0 0
  %1739 = vmatprep.subr.bf16.mxu0 0
  %1740 = vmatpush2.bf16.msra.mxu0 0
  %1741 = vmatprep.subr.bf16.mxu0 0
  %1742 = vmatpush2.bf16.msra.mxu0 0
  %1743 = vmatprep.mubr.bf16.mxu0 0
  %1744 = vmatmul.mubr.bf16.gmra.mxu0 0
  %v1745 = vpop.f32.mrf.mxu0
  %v1746 = vadd.f32 %v1571, %v1745
  %v1747 = vpop.f32.mrf.mxu0
  %v1748 = vadd.f32 %v1575, %v1747
  %v1749 = vpop.f32.mrf.mxu0
  %v1750 = vpop.f32.mrf.mxu0
  %1751 = vdwg.mxu0
  %1752 = vmatprep.subr.bf16.mxu0 0
  %1753 = vmatpush1.bf16.msra.mxu0 %v1686
  %1754 = vmatprep.subr.bf16.mxu0 0
  %1755 = vmatpush1.bf16.msra.mxu0 %v1683
  %1756 = vmatprep.subr.bf16.mxu0 0
  %1757 = vmatpush1.bf16.msra.mxu0 %v1680
  %1758 = vmatprep.subr.bf16.mxu0 0
  %1759 = vmatpush1.bf16.msra.mxu0 %v1677
  %1760 = vmatprep.subr.bf16.mxu0 0
  %1761 = vmatpush1.bf16.msra.mxu0 %v1674
  %1762 = vmatprep.subr.bf16.mxu0 0
  %1763 = vmatpush1.bf16.msra.mxu0 %v1671
  %1764 = vmatprep.subr.bf16.mxu0 0
  %1765 = vmatpush1.bf16.msra.mxu0 %v1668
  %1766 = vmatprep.subr.bf16.mxu0 0
  %1767 = vmatpush1.bf16.msra.mxu0 %v1665
  %1768 = vmatprep.subr.bf16.mxu0 0
  %1769 = vmatpush2.bf16.msra.mxu0 0
  %1770 = vmatprep.subr.bf16.mxu0 0
  %1771 = vmatpush2.bf16.msra.mxu0 0
  %1772 = vmatprep.subr.bf16.mxu0 0
  %1773 = vmatpush2.bf16.msra.mxu0 0
  %1774 = vmatprep.subr.bf16.mxu0 0
  %1775 = vmatpush2.bf16.msra.mxu0 0
  %1776 = vmatprep.subr.bf16.mxu0 0
  %1777 = vmatpush2.bf16.msra.mxu0 0
  %1778 = vmatprep.subr.bf16.mxu0 0
  %1779 = vmatpush2.bf16.msra.mxu0 0
  %1780 = vmatprep.subr.bf16.mxu0 0
  %1781 = vmatpush2.bf16.msra.mxu0 0
  %1782 = vmatprep.subr.bf16.mxu0 0
  %1783 = vmatpush2.bf16.msra.mxu0 0
  %1784 = vmatprep.mubr.bf16.mxu0 0
  %1785 = vmatmul.mubr.bf16.gmra.mxu0 0
  %v1786 = vpop.f32.mrf.mxu0
  %v1787 = vadd.f32 %v1579, %v1786
  %v1788 = vpop.f32.mrf.mxu0
  %v1789 = vpop.f32.mrf.mxu0
  %v1790 = vpop.f32.mrf.mxu0
  %1791 = vdwg.mxu0
  %v1792 = vadd.f32 %v1564, %v1746
  %v1793 = vxor.u32 %v1792, 2147483648
  %v1794 = vmul.f32 %v1793, 1.442695
  %v1795 = vpow.pop %v1794
  %v1796 = vadd.f32 %v1795, 1.0
  %v1797 = vrcp.pop %v1796
  %v1798 = vmul.f32 1.0, %v1797
  %v1799 = vadd.f32 %v1565, %v1748
  %v1800 = vxor.u32 %v1799, 2147483648
  %v1801 = vmul.f32 %v1800, 1.442695
  %v1802 = vpow.pop %v1801
  %v1803 = vadd.f32 %v1802, 1.0
  %v1804 = vrcp.pop %v1803
  %v1805 = vmul.f32 1.0, %v1804
  %v1806 = vmul.f32 %v1798, %v1787
  %v1807 = vadd.f32 %v1566, %v1806
  %v1808 = vtanh.pop %v1807
  %v1809 = vsub.f32 1.0, %v1805
  %v1810 = vmul.f32 %v1809, %v1808
  %v1811 = vmul.f32 %v1805, 0.0
  %v1812 = vadd.f32 %v1810, %v1811
  %1813 = vst [vmem:[%s14] sm:$0xff] %v1812
  %1814 = vadd.xlane.f32.xlu0 %v1812
  %v1815 = vpop.xlane.xlu0 %1814
  %v1816 = vmul.f32 %v1815, %v668
  %v1817 = vmul.f32 %v1812, %v1812
  %1818 = vadd.xlane.f32.xlu0 %v1817
  %v1819 = vpop.xlane.xlu0 %1818
  %v1820 = vmul.f32 %v1819, %v668
  %v1821 = vmul.f32 %v1816, %v1816
  %v1822 = vsub.f32 %v1820, %v1821
  %v1823 = vsub.f32 %v1812, %v1816
  %v1824 = vadd.f32 %v1822, 1e-05
  %v1825 = vrsqrt.pop %v1824
  %v1826 = vmul.f32 %v1823, %v1825
  %v1828 = vlaneseq
  %v1829 = vshrl.u32 %v1828, 7
  %v1830 = vsub.s32 0, %v1829
  %v1831 = vrot.slane %v1562, %v1830
  %v1833 = vmul.f32 %v1826, %v1831
  %v1835 = vlaneseq
  %v1836 = vshrl.u32 %v1835, 7
  %v1837 = vsub.s32 0, %v1836
  %v1838 = vrot.slane %v1563, %v1837
  %v1840 = vadd.f32 %v1833, %v1838
  %v1841 = vmax.f32 %v1840, 0.0
  %v1842 = vadd.f32 %v1841, 0.0
  %v1843 = vld [vmem:[%s698] sm:$0xff]
  %v1844 = vld [vmem:[%s698 + $0x8] sm:$0xff]
  %v1845 = vld [vmem:[%s698 + $0x10] sm:$0xff]
  %v1846 = vpack.c.bf16 %v1812, %v1812
  %1847 = vmatprep.subr.bf16.mxu0 %v1685
  %1848 = vmatpush1.bf16.msra.mxu0 %v1684
  %1849 = vmatprep.subr.bf16.mxu0 %v1682
  %1850 = vmatpush1.bf16.msra.mxu0 %v1681
  %1851 = vmatprep.subr.bf16.mxu0 %v1679
  %1852 = vmatpush1.bf16.msra.mxu0 %v1678
  %1853 = vmatprep.subr.bf16.mxu0 %v1676
  %1854 = vmatpush1.bf16.msra.mxu0 %v1675
  %1855 = vmatprep.subr.bf16.mxu0 %v1673
  %1856 = vmatpush1.bf16.msra.mxu0 %v1672
  %1857 = vmatprep.subr.bf16.mxu0 %v1670
  %1858 = vmatpush1.bf16.msra.mxu0 %v1669
  %1859 = vmatprep.subr.bf16.mxu0 %v1667
  %1860 = vmatpush1.bf16.msra.mxu0 %v1666
  %1861 = vmatprep.subr.bf16.mxu0 %v1664
  %1862 = vmatpush1.bf16.msra.mxu0 %v1663
  %1863 = vmatprep.subr.bf16.mxu0 0
  %1864 = vmatpush2.bf16.msra.mxu0 0
  %1865 = vmatprep.subr.bf16.mxu0 0
  %1866 = vmatpush2.bf16.msra.mxu0 0
  %1867 = vmatprep.subr.bf16.mxu0 0
  %1868 = vmatpush2.bf16.msra.mxu0 0
  %1869 = vmatprep.subr.bf16.mxu0 0
  %1870 = vmatpush2.bf16.msra.mxu0 0
  %1871 = vmatprep.subr.bf16.mxu0 0
  %1872 = vmatpush2.bf16.msra.mxu0 0
  %1873 = vmatprep.subr.bf16.mxu0 0
  %1874 = vmatpush2.bf16.msra.mxu0 0
  %1875 = vmatprep.subr.bf16.mxu0 0
  %1876 = vmatpush2.bf16.msra.mxu0 0
  %1877 = vmatprep.subr.bf16.mxu0 0
  %1878 = vmatpush2.bf16.msra.mxu0 0
  %1879 = vmatprep.mubr.bf16.mxu0 0
  %1880 = vmatmul.mubr.bf16.gmra.mxu0 %v1846
  %v1881 = vpop.f32.mrf.mxu0
  %v1882 = vadd.f32 %v1571, %v1881
  %v1883 = vpop.f32.mrf.mxu0
  %v1884 = vadd.f32 %v1575, %v1883
  %v1885 = vpop.f32.mrf.mxu0
  %v1886 = vpop.f32.mrf.mxu0
  %1887 = vdwg.mxu0
  %1888 = vmatprep.subr.bf16.mxu0 0
  %1889 = vmatpush1.bf16.msra.mxu0 %v1686
  %1890 = vmatprep.subr.bf16.mxu0 0
  %1891 = vmatpush1.bf16.msra.mxu0 %v1683
  %1892 = vmatprep.subr.bf16.mxu0 0
  %1893 = vmatpush1.bf16.msra.mxu0 %v1680
  %1894 = vmatprep.subr.bf16.mxu0 0
  %1895 = vmatpush1.bf16.msra.mxu0 %v1677
  %1896 = vmatprep.subr.bf16.mxu0 0
  %1897 = vmatpush1.bf16.msra.mxu0 %v1674
  %1898 = vmatprep.subr.bf16.mxu0 0
  %1899 = vmatpush1.bf16.msra.mxu0 %v1671
  %1900 = vmatprep.subr.bf16.mxu0 0
  %1901 = vmatpush1.bf16.msra.mxu0 %v1668
  %1902 = vmatprep.subr.bf16.mxu0 0
  %1903 = vmatpush1.bf16.msra.mxu0 %v1665
  %1904 = vmatprep.subr.bf16.mxu0 0
  %1905 = vmatpush2.bf16.msra.mxu0 0
  %1906 = vmatprep.subr.bf16.mxu0 0
  %1907 = vmatpush2.bf16.msra.mxu0 0
  %1908 = vmatprep.subr.bf16.mxu0 0
  %1909 = vmatpush2.bf16.msra.mxu0 0
  %1910 = vmatprep.subr.bf16.mxu0 0
  %1911 = vmatpush2.bf16.msra.mxu0 0
  %1912 = vmatprep.subr.bf16.mxu0 0
  %1913 = vmatpush2.bf16.msra.mxu0 0
  %1914 = vmatprep.subr.bf16.mxu0 0
  %1915 = vmatpush2.bf16.msra.mxu0 0
  %1916 = vmatprep.subr.bf16.mxu0 0
  %1917 = vmatpush2.bf16.msra.mxu0 0
  %1918 = vmatprep.subr.bf16.mxu0 0
  %1919 = vmatpush2.bf16.msra.mxu0 0
  %1920 = vmatprep.mubr.bf16.mxu0 0
  %1921 = vmatmul.mubr.bf16.gmra.mxu0 %v1846
  %v1922 = vpop.f32.mrf.mxu0
  %v1923 = vadd.f32 %v1579, %v1922
  %v1924 = vpop.f32.mrf.mxu0
  %v1925 = vpop.f32.mrf.mxu0
  %v1926 = vpop.f32.mrf.mxu0
  %1927 = vdwg.mxu0
  %v1928 = vadd.f32 %v1843, %v1882
  %v1929 = vxor.u32 %v1928, 2147483648
  %v1930 = vmul.f32 %v1929, 1.442695
  %v1931 = vpow.pop %v1930
  %v1932 = vadd.f32 %v1931, 1.0
  %v1933 = vrcp.pop %v1932
  %v1934 = vmul.f32 1.0, %v1933
  %v1935 = vadd.f32 %v1844, %v1884
  %v1936 = vxor.u32 %v1935, 2147483648
  %v1937 = vmul.f32 %v1936, 1.442695
  %v1938 = vpow.pop %v1937
  %v1939 = vadd.f32 %v1938, 1.0
  %v1940 = vrcp.pop %v1939
  %v1941 = vmul.f32 1.0, %v1940
  %v1942 = vmul.f32 %v1934, %v1923
  %v1943 = vadd.f32 %v1845, %v1942
  %v1944 = vtanh.pop %v1943
  %v1945 = vsub.f32 1.0, %v1941
  %v1946 = vmul.f32 %v1945, %v1944
  %v1947 = vmul.f32 %v1941, %v1812
  %v1948 = vadd.f32 %v1946, %v1947
  %s1949 = scalar_lea.vmem %s14, 8
  %1950 = vst [vmem:[%s1949] sm:$0xff] %v1948
  %1951 = vadd.xlane.f32.xlu0 %v1948
  %v1952 = vpop.xlane.xlu0 %1951
  %v1953 = vmul.f32 %v1952, %v668
  %v1954 = vmul.f32 %v1948, %v1948
  %1955 = vadd.xlane.f32.xlu0 %v1954
  %v1956 = vpop.xlane.xlu0 %1955
  %v1957 = vmul.f32 %v1956, %v668
  %v1958 = vmul.f32 %v1953, %v1953
  %v1959 = vsub.f32 %v1957, %v1958
  %v1960 = vsub.f32 %v1948, %v1953
  %v1961 = vadd.f32 %v1959, 1e-05
  %v1962 = vrsqrt.pop %v1961
  %v1963 = vmul.f32 %v1960, %v1962
  %v1964 = vmul.f32 %v1963, %v1831
  %v1965 = vadd.f32 %v1964, %v1838
  %v1966 = vmax.f32 %v1965, 0.0
  %v1967 = vadd.f32 %v1842, %v1966
  %v1968 = vld [vmem:[%s827] sm:$0xff]
  %v1969 = vld [vmem:[%s827 + $0x8] sm:$0xff]
  %v1970 = vld [vmem:[%s827 + $0x10] sm:$0xff]
  %v1971 = vpack.c.bf16 %v1948, %v1948
  %1972 = vmatprep.subr.bf16.mxu0 %v1685
  %1973 = vmatpush1.bf16.msra.mxu0 %v1684
  %1974 = vmatprep.subr.bf16.mxu0 %v1682
  %1975 = vmatpush1.bf16.msra.mxu0 %v1681
  %1976 = vmatprep.subr.bf16.mxu0 %v1679
  %1977 = vmatpush1.bf16.msra.mxu0 %v1678
  %1978 = vmatprep.subr.bf16.mxu0 %v1676
  %1979 = vmatpush1.bf16.msra.mxu0 %v1675
  %1980 = vmatprep.subr.bf16.mxu0 %v1673
  %1981 = vmatpush1.bf16.msra.mxu0 %v1672
  %1982 = vmatprep.subr.bf16.mxu0 %v1670
  %1983 = vmatpush1.bf16.msra.mxu0 %v1669
  %1984 = vmatprep.subr.bf16.mxu0 %v1667
  %1985 = vmatpush1.bf16.msra.mxu0 %v1666
  %1986 = vmatprep.subr.bf16.mxu0 %v1664
  %1987 = vmatpush1.bf16.msra.mxu0 %v1663
  %1988 = vmatprep.subr.bf16.mxu0 0
  %1989 = vmatpush2.bf16.msra.mxu0 0
  %1990 = vmatprep.subr.bf16.mxu0 0
  %1991 = vmatpush2.bf16.msra.mxu0 0
  %1992 = vmatprep.subr.bf16.mxu0 0
  %1993 = vmatpush2.bf16.msra.mxu0 0
  %1994 = vmatprep.subr.bf16.mxu0 0
  %1995 = vmatpush2.bf16.msra.mxu0 0
  %1996 = vmatprep.subr.bf16.mxu0 0
  %1997 = vmatpush2.bf16.msra.mxu0 0
  %1998 = vmatprep.subr.bf16.mxu0 0
  %1999 = vmatpush2.bf16.msra.mxu0 0
  %2000 = vmatprep.subr.bf16.mxu0 0
  %2001 = vmatpush2.bf16.msra.mxu0 0
  %2002 = vmatprep.subr.bf16.mxu0 0
  %2003 = vmatpush2.bf16.msra.mxu0 0
  %2004 = vmatprep.mubr.bf16.mxu0 0
  %2005 = vmatmul.mubr.bf16.gmra.mxu0 %v1971
  %v2006 = vpop.f32.mrf.mxu0
  %v2007 = vadd.f32 %v1571, %v2006
  %v2008 = vpop.f32.mrf.mxu0
  %v2009 = vadd.f32 %v1575, %v2008
  %v2010 = vpop.f32.mrf.mxu0
  %v2011 = vpop.f32.mrf.mxu0
  %2012 = vdwg.mxu0
  %2013 = vmatprep.subr.bf16.mxu0 0
  %2014 = vmatpush1.bf16.msra.mxu0 %v1686
  %2015 = vmatprep.subr.bf16.mxu0 0
  %2016 = vmatpush1.bf16.msra.mxu0 %v1683
  %2017 = vmatprep.subr.bf16.mxu0 0
  %2018 = vmatpush1.bf16.msra.mxu0 %v1680
  %2019 = vmatprep.subr.bf16.mxu0 0
  %2020 = vmatpush1.bf16.msra.mxu0 %v1677
  %2021 = vmatprep.subr.bf16.mxu0 0
  %2022 = vmatpush1.bf16.msra.mxu0 %v1674
  %2023 = vmatprep.subr.bf16.mxu0 0
  %2024 = vmatpush1.bf16.msra.mxu0 %v1671
  %2025 = vmatprep.subr.bf16.mxu0 0
  %2026 = vmatpush1.bf16.msra.mxu0 %v1668
  %2027 = vmatprep.subr.bf16.mxu0 0
  %2028 = vmatpush1.bf16.msra.mxu0 %v1665
  %2029 = vmatprep.subr.bf16.mxu0 0
  %2030 = vmatpush2.bf16.msra.mxu0 0
  %2031 = vmatprep.subr.bf16.mxu0 0
  %2032 = vmatpush2.bf16.msra.mxu0 0
  %2033 = vmatprep.subr.bf16.mxu0 0
  %2034 = vmatpush2.bf16.msra.mxu0 0
  %2035 = vmatprep.subr.bf16.mxu0 0
  %2036 = vmatpush2.bf16.msra.mxu0 0
  %2037 = vmatprep.subr.bf16.mxu0 0
  %2038 = vmatpush2.bf16.msra.mxu0 0
  %2039 = vmatprep.subr.bf16.mxu0 0
  %2040 = vmatpush2.bf16.msra.mxu0 0
  %2041 = vmatprep.subr.bf16.mxu0 0
  %2042 = vmatpush2.bf16.msra.mxu0 0
  %2043 = vmatprep.subr.bf16.mxu0 0
  %2044 = vmatpush2.bf16.msra.mxu0 0
  %2045 = vmatprep.mubr.bf16.mxu0 0
  %2046 = vmatmul.mubr.bf16.gmra.mxu0 %v1971
  %v2047 = vpop.f32.mrf.mxu0
  %v2048 = vadd.f32 %v1579, %v2047
  %v2049 = vpop.f32.mrf.mxu0
  %v2050 = vpop.f32.mrf.mxu0
  %v2051 = vpop.f32.mrf.mxu0
  %2052 = vdwg.mxu0
  %v2053 = vadd.f32 %v1968, %v2007
  %v2054 = vxor.u32 %v2053, 2147483648
  %v2055 = vmul.f32 %v2054, 1.442695
  %v2056 = vpow.pop %v2055
  %v2057 = vadd.f32 %v2056, 1.0
  %v2058 = vrcp.pop %v2057
  %v2059 = vmul.f32 1.0, %v2058
  %v2060 = vadd.f32 %v1969, %v2009
  %v2061 = vxor.u32 %v2060, 2147483648
  %v2062 = vmul.f32 %v2061, 1.442695
  %v2063 = vpow.pop %v2062
  %v2064 = vadd.f32 %v2063, 1.0
  %v2065 = vrcp.pop %v2064
  %v2066 = vmul.f32 1.0, %v2065
  %v2067 = vmul.f32 %v2059, %v2048
  %v2068 = vadd.f32 %v1970, %v2067
  %v2069 = vtanh.pop %v2068
  %v2070 = vsub.f32 1.0, %v2066
  %v2071 = vmul.f32 %v2070, %v2069
  %v2072 = vmul.f32 %v2066, %v1948
  %v2073 = vadd.f32 %v2071, %v2072
  %s2074 = scalar_lea.vmem %s14, 16
  %2075 = vst [vmem:[%s2074] sm:$0xff] %v2073
  %2076 = vadd.xlane.f32.xlu0 %v2073
  %v2077 = vpop.xlane.xlu0 %2076
  %v2078 = vmul.f32 %v2077, %v668
  %v2079 = vmul.f32 %v2073, %v2073
  %2080 = vadd.xlane.f32.xlu0 %v2079
  %v2081 = vpop.xlane.xlu0 %2080
  %v2082 = vmul.f32 %v2081, %v668
  %v2083 = vmul.f32 %v2078, %v2078
  %v2084 = vsub.f32 %v2082, %v2083
  %v2085 = vsub.f32 %v2073, %v2078
  %v2086 = vadd.f32 %v2084, 1e-05
  %v2087 = vrsqrt.pop %v2086
  %v2088 = vmul.f32 %v2085, %v2087
  %v2089 = vmul.f32 %v2088, %v1831
  %v2090 = vadd.f32 %v2089, %v1838
  %v2091 = vmax.f32 %v2090, 0.0
  %v2092 = vadd.f32 %v1967, %v2091
  %v2093 = vld [vmem:[%s956] sm:$0xff]
  %v2094 = vld [vmem:[%s956 + $0x8] sm:$0xff]
  %v2095 = vld [vmem:[%s956 + $0x10] sm:$0xff]
  %v2096 = vpack.c.bf16 %v2073, %v2073
  %2097 = vmatprep.subr.bf16.mxu0 %v1685
  %2098 = vmatpush1.bf16.msra.mxu0 %v1684
  %2099 = vmatprep.subr.bf16.mxu0 %v1682
  %2100 = vmatpush1.bf16.msra.mxu0 %v1681
  %2101 = vmatprep.subr.bf16.mxu0 %v1679
  %2102 = vmatpush1.bf16.msra.mxu0 %v1678
  %2103 = vmatprep.subr.bf16.mxu0 %v1676
  %2104 = vmatpush1.bf16.msra.mxu0 %v1675
  %2105 = vmatprep.subr.bf16.mxu0 %v1673
  %2106 = vmatpush1.bf16.msra.mxu0 %v1672
  %2107 = vmatprep.subr.bf16.mxu0 %v1670
  %2108 = vmatpush1.bf16.msra.mxu0 %v1669
  %2109 = vmatprep.subr.bf16.mxu0 %v1667
  %2110 = vmatpush1.bf16.msra.mxu0 %v1666
  %2111 = vmatprep.subr.bf16.mxu0 %v1664
  %2112 = vmatpush1.bf16.msra.mxu0 %v1663
  %2113 = vmatprep.subr.bf16.mxu0 0
  %2114 = vmatpush2.bf16.msra.mxu0 0
  %2115 = vmatprep.subr.bf16.mxu0 0
  %2116 = vmatpush2.bf16.msra.mxu0 0
  %2117 = vmatprep.subr.bf16.mxu0 0
  %2118 = vmatpush2.bf16.msra.mxu0 0
  %2119 = vmatprep.subr.bf16.mxu0 0
  %2120 = vmatpush2.bf16.msra.mxu0 0
  %2121 = vmatprep.subr.bf16.mxu0 0
  %2122 = vmatpush2.bf16.msra.mxu0 0
  %2123 = vmatprep.subr.bf16.mxu0 0
  %2124 = vmatpush2.bf16.msra.mxu0 0
  %2125 = vmatprep.subr.bf16.mxu0 0
  %2126 = vmatpush2.bf16.msra.mxu0 0
  %2127 = vmatprep.subr.bf16.mxu0 0
  %2128 = vmatpush2.bf16.msra.mxu0 0
  %2129 = vmatprep.mubr.bf16.mxu0 0
  %2130 = vmatmul.mubr.bf16.gmra.mxu0 %v2096
  %v2131 = vpop.f32.mrf.mxu0
  %v2132 = vadd.f32 %v1571, %v2131
  %v2133 = vpop.f32.mrf.mxu0
  %v2134 = vadd.f32 %v1575, %v2133
  %v2135 = vpop.f32.mrf.mxu0
  %v2136 = vpop.f32.mrf.mxu0
  %2137 = vdwg.mxu0
  %2138 = vmatprep.subr.bf16.mxu0 0
  %2139 = vmatpush1.bf16.msra.mxu0 %v1686
  %2140 = vmatprep.subr.bf16.mxu0 0
  %2141 = vmatpush1.bf16.msra.mxu0 %v1683
  %2142 = vmatprep.subr.bf16.mxu0 0
  %2143 = vmatpush1.bf16.msra.mxu0 %v1680
  %2144 = vmatprep.subr.bf16.mxu0 0
  %2145 = vmatpush1.bf16.msra.mxu0 %v1677
  %2146 = vmatprep.subr.bf16.mxu0 0
  %2147 = vmatpush1.bf16.msra.mxu0 %v1674
  %2148 = vmatprep.subr.bf16.mxu0 0
  %2149 = vmatpush1.bf16.msra.mxu0 %v1671
  %2150 = vmatprep.subr.bf16.mxu0 0
  %2151 = vmatpush1.bf16.msra.mxu0 %v1668
  %2152 = vmatprep.subr.bf16.mxu0 0
  %2153 = vmatpush1.bf16.msra.mxu0 %v1665
  %2154 = vmatprep.subr.bf16.mxu0 0
  %2155 = vmatpush2.bf16.msra.mxu0 0
  %2156 = vmatprep.subr.bf16.mxu0 0
  %2157 = vmatpush2.bf16.msra.mxu0 0
  %2158 = vmatprep.subr.bf16.mxu0 0
  %2159 = vmatpush2.bf16.msra.mxu0 0
  %2160 = vmatprep.subr.bf16.mxu0 0
  %2161 = vmatpush2.bf16.msra.mxu0 0
  %2162 = vmatprep.subr.bf16.mxu0 0
  %2163 = vmatpush2.bf16.msra.mxu0 0
  %2164 = vmatprep.subr.bf16.mxu0 0
  %2165 = vmatpush2.bf16.msra.mxu0 0
  %2166 = vmatprep.subr.bf16.mxu0 0
  %2167 = vmatpush2.bf16.msra.mxu0 0
  %2168 = vmatprep.subr.bf16.mxu0 0
  %2169 = vmatpush2.bf16.msra.mxu0 0
  %2170 = vmatprep.mubr.bf16.mxu0 0
  %2171 = vmatmul.mubr.bf16.gmra.mxu0 %v2096
  %v2172 = vpop.f32.mrf.mxu0
  %v2173 = vadd.f32 %v1579, %v2172
  %v2174 = vpop.f32.mrf.mxu0
  %v2175 = vpop.f32.mrf.mxu0
  %v2176 = vpop.f32.mrf.mxu0
  %2177 = vdwg.mxu0
  %v2178 = vadd.f32 %v2093, %v2132
  %v2179 = vxor.u32 %v2178, 2147483648
  %v2180 = vmul.f32 %v2179, 1.442695
  %v2181 = vpow.pop %v2180
  %v2182 = vadd.f32 %v2181, 1.0
  %v2183 = vrcp.pop %v2182
  %v2184 = vmul.f32 1.0, %v2183
  %v2185 = vadd.f32 %v2094, %v2134
  %v2186 = vxor.u32 %v2185, 2147483648
  %v2187 = vmul.f32 %v2186, 1.442695
  %v2188 = vpow.pop %v2187
  %v2189 = vadd.f32 %v2188, 1.0
  %v2190 = vrcp.pop %v2189
  %v2191 = vmul.f32 1.0, %v2190
  %v2192 = vmul.f32 %v2184, %v2173
  %v2193 = vadd.f32 %v2095, %v2192
  %v2194 = vtanh.pop %v2193
  %v2195 = vsub.f32 1.0, %v2191
  %v2196 = vmul.f32 %v2195, %v2194
  %v2197 = vmul.f32 %v2191, %v2073
  %v2198 = vadd.f32 %v2196, %v2197
  %s2199 = scalar_lea.vmem %s14, 24
  %2200 = vst [vmem:[%s2199] sm:$0xff] %v2198
  %2201 = vadd.xlane.f32.xlu0 %v2198
  %v2202 = vpop.xlane.xlu0 %2201
  %v2203 = vmul.f32 %v2202, %v668
  %v2204 = vmul.f32 %v2198, %v2198
  %2205 = vadd.xlane.f32.xlu0 %v2204
  %v2206 = vpop.xlane.xlu0 %2205
  %v2207 = vmul.f32 %v2206, %v668
  %v2208 = vmul.f32 %v2203, %v2203
  %v2209 = vsub.f32 %v2207, %v2208
  %v2210 = vsub.f32 %v2198, %v2203
  %v2211 = vadd.f32 %v2209, 1e-05
  %v2212 = vrsqrt.pop %v2211
  %v2213 = vmul.f32 %v2210, %v2212
  %v2214 = vmul.f32 %v2213, %v1831
  %v2215 = vadd.f32 %v2214, %v1838
  %v2216 = vmax.f32 %v2215, 0.0
  %v2217 = vadd.f32 %v2092, %v2216
  %v2218 = vld [vmem:[%s1085] sm:$0xff]
  %v2219 = vld [vmem:[%s1085 + $0x8] sm:$0xff]
  %v2220 = vld [vmem:[%s1085 + $0x10] sm:$0xff]
  %v2221 = vpack.c.bf16 %v2198, %v2198
  %2222 = vmatprep.subr.bf16.mxu0 %v1685
  %2223 = vmatpush1.bf16.msra.mxu0 %v1684
  %2224 = vmatprep.subr.bf16.mxu0 %v1682
  %2225 = vmatpush1.bf16.msra.mxu0 %v1681
  %2226 = vmatprep.subr.bf16.mxu0 %v1679
  %2227 = vmatpush1.bf16.msra.mxu0 %v1678
  %2228 = vmatprep.subr.bf16.mxu0 %v1676
  %2229 = vmatpush1.bf16.msra.mxu0 %v1675
  %2230 = vmatprep.subr.bf16.mxu0 %v1673
  %2231 = vmatpush1.bf16.msra.mxu0 %v1672
  %2232 = vmatprep.subr.bf16.mxu0 %v1670
  %2233 = vmatpush1.bf16.msra.mxu0 %v1669
  %2234 = vmatprep.subr.bf16.mxu0 %v1667
  %2235 = vmatpush1.bf16.msra.mxu0 %v1666
  %2236 = vmatprep.subr.bf16.mxu0 %v1664
  %2237 = vmatpush1.bf16.msra.mxu0 %v1663
  %2238 = vmatprep.subr.bf16.mxu0 0
  %2239 = vmatpush2.bf16.msra.mxu0 0
  %2240 = vmatprep.subr.bf16.mxu0 0
  %2241 = vmatpush2.bf16.msra.mxu0 0
  %2242 = vmatprep.subr.bf16.mxu0 0
  %2243 = vmatpush2.bf16.msra.mxu0 0
  %2244 = vmatprep.subr.bf16.mxu0 0
  %2245 = vmatpush2.bf16.msra.mxu0 0
  %2246 = vmatprep.subr.bf16.mxu0 0
  %2247 = vmatpush2.bf16.msra.mxu0 0
  %2248 = vmatprep.subr.bf16.mxu0 0
  %2249 = vmatpush2.bf16.msra.mxu0 0
  %2250 = vmatprep.subr.bf16.mxu0 0
  %2251 = vmatpush2.bf16.msra.mxu0 0
  %2252 = vmatprep.subr.bf16.mxu0 0
  %2253 = vmatpush2.bf16.msra.mxu0 0
  %2254 = vmatprep.mubr.bf16.mxu0 0
  %2255 = vmatmul.mubr.bf16.gmra.mxu0 %v2221
  %v2256 = vpop.f32.mrf.mxu0
  %v2257 = vadd.f32 %v1571, %v2256
  %v2258 = vpop.f32.mrf.mxu0
  %v2259 = vadd.f32 %v1575, %v2258
  %v2260 = vpop.f32.mrf.mxu0
  %v2261 = vpop.f32.mrf.mxu0
  %2262 = vdwg.mxu0
  %2263 = vmatprep.subr.bf16.mxu0 0
  %2264 = vmatpush1.bf16.msra.mxu0 %v1686
  %2265 = vmatprep.subr.bf16.mxu0 0
  %2266 = vmatpush1.bf16.msra.mxu0 %v1683
  %2267 = vmatprep.subr.bf16.mxu0 0
  %2268 = vmatpush1.bf16.msra.mxu0 %v1680
  %2269 = vmatprep.subr.bf16.mxu0 0
  %2270 = vmatpush1.bf16.msra.mxu0 %v1677
  %2271 = vmatprep.subr.bf16.mxu0 0
  %2272 = vmatpush1.bf16.msra.mxu0 %v1674
  %2273 = vmatprep.subr.bf16.mxu0 0
  %2274 = vmatpush1.bf16.msra.mxu0 %v1671
  %2275 = vmatprep.subr.bf16.mxu0 0
  %2276 = vmatpush1.bf16.msra.mxu0 %v1668
  %2277 = vmatprep.subr.bf16.mxu0 0
  %2278 = vmatpush1.bf16.msra.mxu0 %v1665
  %2279 = vmatprep.subr.bf16.mxu0 0
  %2280 = vmatpush2.bf16.msra.mxu0 0
  %2281 = vmatprep.subr.bf16.mxu0 0
  %2282 = vmatpush2.bf16.msra.mxu0 0
  %2283 = vmatprep.subr.bf16.mxu0 0
  %2284 = vmatpush2.bf16.msra.mxu0 0
  %2285 = vmatprep.subr.bf16.mxu0 0
  %2286 = vmatpush2.bf16.msra.mxu0 0
  %2287 = vmatprep.subr.bf16.mxu0 0
  %2288 = vmatpush2.bf16.msra.mxu0 0
  %2289 = vmatprep.subr.bf16.mxu0 0
  %2290 = vmatpush2.bf16.msra.mxu0 0
  %2291 = vmatprep.subr.bf16.mxu0 0
  %2292 = vmatpush2.bf16.msra.mxu0 0
  %2293 = vmatprep.subr.bf16.mxu0 0
  %2294 = vmatpush2.bf16.msra.mxu0 0
  %2295 = vmatprep.mubr.bf16.mxu0 0
  %2296 = vmatmul.mubr.bf16.gmra.mxu0 %v2221
  %v2297 = vpop.f32.mrf.mxu0
  %v2298 = vadd.f32 %v1579, %v2297
  %v2299 = vpop.f32.mrf.mxu0
  %v2300 = vpop.f32.mrf.mxu0
  %v2301 = vpop.f32.mrf.mxu0
  %2302 = vdwg.mxu0
  %v2303 = vadd.f32 %v2218, %v2257
  %v2304 = vxor.u32 %v2303, 2147483648
  %v2305 = vmul.f32 %v2304, 1.442695
  %v2306 = vpow.pop %v2305
  %v2307 = vadd.f32 %v2306, 1.0
  %v2308 = vrcp.pop %v2307
  %v2309 = vmul.f32 1.0, %v2308
  %v2310 = vadd.f32 %v2219, %v2259
  %v2311 = vxor.u32 %v2310, 2147483648
  %v2312 = vmul.f32 %v2311, 1.442695
  %v2313 = vpow.pop %v2312
  %v2314 = vadd.f32 %v2313, 1.0
  %v2315 = vrcp.pop %v2314
  %v2316 = vmul.f32 1.0, %v2315
  %v2317 = vmul.f32 %v2309, %v2298
  %v2318 = vadd.f32 %v2220, %v2317
  %v2319 = vtanh.pop %v2318
  %v2320 = vsub.f32 1.0, %v2316
  %v2321 = vmul.f32 %v2320, %v2319
  %v2322 = vmul.f32 %v2316, %v2198
  %v2323 = vadd.f32 %v2321, %v2322
  %s2324 = scalar_lea.vmem %s14, 32
  %2325 = vst [vmem:[%s2324] sm:$0xff] %v2323
  %2326 = vadd.xlane.f32.xlu0 %v2323
  %v2327 = vpop.xlane.xlu0 %2326
  %v2328 = vmul.f32 %v2327, %v668
  %v2329 = vmul.f32 %v2323, %v2323
  %2330 = vadd.xlane.f32.xlu0 %v2329
  %v2331 = vpop.xlane.xlu0 %2330
  %v2332 = vmul.f32 %v2331, %v668
  %v2333 = vmul.f32 %v2328, %v2328
  %v2334 = vsub.f32 %v2332, %v2333
  %v2335 = vsub.f32 %v2323, %v2328
  %v2336 = vadd.f32 %v2334, 1e-05
  %v2337 = vrsqrt.pop %v2336
  %v2338 = vmul.f32 %v2335, %v2337
  %v2339 = vmul.f32 %v2338, %v1831
  %v2340 = vadd.f32 %v2339, %v1838
  %v2341 = vmax.f32 %v2340, 0.0
  %v2342 = vadd.f32 %v2217, %v2341
  %v2343 = vmul.f32 %v2342, 0.2
  %2344 = vst [vmem:[%s15] sm:$0xff] %v2343
  // Predicated region
  $region54: #{en_de_model_3_forward.1} parent=0 // pred_check
    _
  $region55: #{en_de_model_3_forward.1} parent=0 // pred_check_branch
    %2346 = sbr.rel (0) target = $region57
  $region56: #{en_de_model_3_forward.1} parent=0 // pred_region
    _
  $region57: #{en_de_model_3_forward.1} parent=0 // pred_fallthru
    _
  // Predicated region
  $region58: #{en_de_model_3_forward.1} parent=0 // pred_check
    _
  $region59: #{en_de_model_3_forward.1} parent=0 // pred_check_branch
    %2348 = sbr.rel (0) target = $region61
  $region60: #{en_de_model_3_forward.1} parent=0 // pred_region
    _
  $region61: #{en_de_model_3_forward.1} parent=0 // pred_fallthru
    _
  // Predicated region
  $region62: #{en_de_model_3_forward.1} parent=0 // pred_check
    _
  $region63: #{en_de_model_3_forward.1} parent=0 // pred_check_branch
    %2350 = sbr.rel (0) target = $region65
  $region64: #{en_de_model_3_forward.1} parent=0 // pred_region
    _
  $region65: #{en_de_model_3_forward.1} parent=0 // pred_fallthru
    _
  // Predicated region
  $region66: #{en_de_model_3_forward.1} parent=0 // pred_check
    _
  $region67: #{en_de_model_3_forward.1} parent=0 // pred_check_branch
    %2352 = sbr.rel (0) target = $region69
  $region68: #{en_de_model_3_forward.1} parent=0 // pred_region
    _
  $region69: #{en_de_model_3_forward.1} parent=0 // pred_fallthru
    _
  // Predicated region
  $region70: #{en_de_model_3_forward.1} parent=0 // pred_check
    _
  $region71: #{en_de_model_3_forward.1} parent=0 // pred_check_branch
    %2354 = sbr.rel (0) target = $region73
  $region72: #{en_de_model_3_forward.1} parent=0 // pred_region
    _
  $region73: #{en_de_model_3_forward.1} parent=0 // pred_fallthru
    _
  // Predicated region
  $region74: #{en_de_model_3_forward.1} parent=0 // pred_check
    _
  $region75: #{en_de_model_3_forward.1} parent=0 // pred_check_branch
    %2356 = sbr.rel (0) target = $region77
  $region76: #{en_de_model_3_forward.1} parent=0 // pred_region
    _
  $region77: #{en_de_model_3_forward.1} parent=0 // pred_fallthru
    _

</llo_original>
